<compile_context>
chip_gen: v7x
topology: tpu7x:2x2x1
jax: 0.10.0
libtpu: 0.0.40
codegen_flags: <defaults>
</compile_context>

<pallas_src>
import functools
import math

import jax
import jax.numpy as jnp
from jax import lax
from jax.experimental import pallas as pl
from jax.experimental.pallas import tpu as pltpu


# ----------------------------- plain-JAX glue --------------------------------

def swish(x):
    return x * jax.nn.sigmoid(x)


def get_timestep_embedding(timesteps, embedding_dim):
    assert timesteps.ndim == 1
    half_dim = embedding_dim // 2
    emb = math.log(10000.0) / (half_dim - 1)
    emb = jnp.exp(jnp.arange(half_dim, dtype=jnp.float32) * -emb)
    emb = timesteps.astype(jnp.float32)[:, None] * emb[None, :]
    emb = jnp.concatenate([jnp.sin(emb), jnp.cos(emb)], axis=1)
    if embedding_dim % 2 == 1:
        emb = jnp.pad(emb, ((0, 0), (0, 1)))
    return emb


# --------------------- fully fused decoder Pallas kernel ---------------------

def _make_decoder_kernel(C, L, K, Cin, Cout, num_layers):
    f32 = jnp.float32
    inv_sqrt_d = 1.0 / math.sqrt(C)
    LOG_VALID = math.log(1.0 + 1e-6)     # log(mask + 1e-6) at valid positions
    LOG_INVALID = math.log(1e-6)         # log(mask + 1e-6) at invalid positions

    def pdot(a, b):
        return jnp.dot(a, b, preferred_element_type=f32)

    def layer_body(x, conv_w, conv_b, wqkv, bqkv, w1, b1, w2, b2, dilation, lane):
        # x: (C, L) f32 activation for one batch element.
        padding = (K // 2) * dilation

        # Stacked Q/K/V projection: one (3C, C) @ (C, L) matmul.
        qkv = pdot(wqkv, x) + bqkv
        xq = qkv[0:C]
        xk = qkv[C:2 * C]
        xv = qkv[2 * C:3 * C]

        # Stacked dilated-conv taps: one (K*C, C) @ (C, L) matmul (bias later).
        y = pdot(conv_w, x)

        conv_acc = None
        logits = []          # K small (1, L) tensors
        masks = []           # K (1, L) masks (None when trivially all-valid)
        for j in range(K):
            off = j * dilation - padding            # static per tap
            sh = (-off) % L                          # roll(x, sh)[l] = x[l + off]
            yj = y[j * C:(j + 1) * C]
            kj = xk
            if sh != 0:
                yj = pltpu.roll(yj, sh, axis=1)
                kj = pltpu.roll(xk, sh, axis=1)
            raw = jnp.sum(xq * kj, axis=0, keepdims=True) * inv_sqrt_d
            if off == 0:
                masks.append(None)
                logits.append(raw + LOG_VALID)
                term = yj
            else:
                valid = ((lane + off) >= 0) & ((lane + off) < L)
                maskf = valid.astype(f32)
                masks.append(maskf)
                # valid: dot/sqrt(d) + log(1+1e-6); invalid: 0 + log(1e-6)
                logits.append(jnp.where(valid, raw + LOG_VALID, LOG_INVALID))
                term = yj * maskf                   # zero-padded conv tap
            conv_acc = term if conv_acc is None else conv_acc + term
        out1 = conv_acc + conv_b                     # dilated conv output

        # softmax over the K window positions (K is small and static)
        m = logits[0]
        for j in range(1, K):
            m = jnp.maximum(m, logits[j])
        exps = [jnp.exp(l - m) for l in logits]
        denom = exps[0]
        for j in range(1, K):
            denom = denom + exps[j]
        inv_denom = 1.0 / denom

        out2 = None
        for j in range(K):
            off = j * dilation - padding
            sh = (-off) % L
            vj = xv if sh == 0 else pltpu.roll(xv, sh, axis=1)
            att_j = exps[j] * inv_denom
            if masks[j] is not None:
                att_j = att_j * masks[j]             # re-mask, as in the reference
            contrib = att_j * vj
            out2 = contrib if out2 is None else out2 + contrib

        s = out1 + out2
        # InstanceNorm1d (affine=False, eps=1e-5, biased variance over L)
        mean = jnp.mean(s, axis=1, keepdims=True)
        var = jnp.mean((s - mean) ** 2, axis=1, keepdims=True)
        sn = (s - mean) * lax.rsqrt(var + 1e-5)

        # ffn: 1x1 conv -> ReLU -> 1x1 conv, residual
        h = jnp.maximum(pdot(w1, sn) + b1, 0.0)
        out = pdot(w2, h) + b2
        return x + out

    def kernel(x_ref, tproj_ref, cin_w_ref, cin_b_ref,
               conv_w_ref, conv_b_ref, wqkv_ref, bqkv_ref,
               w1_ref, b1_ref, w2_ref, b2_ref,
               cout_w_ref, cout_b_ref, o_ref):
        # hoisted lane iota, shared by all layers / taps
        lane = lax.broadcasted_iota(jnp.int32, (1, L), 1)

        x0 = x_ref[0]                                            # (Cin, L)
        # conv_in + per-batch time-projection bias
        h = pdot(cin_w_ref[...], x0) + cin_b_ref[...] + tproj_ref[0]

        for i in range(num_layers):                              # unrolled, static
            h = layer_body(h,
                           conv_w_ref[i], conv_b_ref[i],
                           wqkv_ref[i], bqkv_ref[i],
                           w1_ref[i], b1_ref[i],
                           w2_ref[i], b2_ref[i],
                           2 ** i, lane)

        o_ref[0] = pdot(cout_w_ref[...], h) + cout_b_ref[...]     # conv_out

    return kernel


def decoder_pallas(params, x_cat, tproj, *, num_layers, kernel_size):
    N, Cin, L = x_cat.shape
    C = params["conv_in_w"].shape[0]
    Cout = params["conv_out_w"].shape[0]
    K = kernel_size
    kern = _make_decoder_kernel(C, L, K, Cin, Cout, num_layers)

    def rep(rank):
        return lambda n: (0,) * rank

    return pl.pallas_call(
        kern,
        out_shape=jax.ShapeDtypeStruct((N, Cout, L), jnp.float32),
        grid=(N,),
        in_specs=[
            pl.BlockSpec((1, Cin, L), lambda n: (n, 0, 0)),          # x_cat
            pl.BlockSpec((1, C, 1), lambda n: (n, 0, 0)),            # time proj bias
            pl.BlockSpec((C, Cin), rep(2)),                          # conv_in w
            pl.BlockSpec((C, 1), rep(2)),                            # conv_in b
            pl.BlockSpec((num_layers, K * C, C), rep(3)),            # conv taps (stacked)
            pl.BlockSpec((num_layers, C, 1), rep(3)),                # conv bias
            pl.BlockSpec((num_layers, 3 * C, C), rep(3)),            # Wq|Wk|Wv (stacked)
            pl.BlockSpec((num_layers, 3 * C, 1), rep(3)),            # bq|bk|bv
            pl.BlockSpec((num_layers, C, C), rep(3)),                # ffn w1
            pl.BlockSpec((num_layers, C, 1), rep(3)),                # ffn b1
            pl.BlockSpec((num_layers, C, C), rep(3)),                # ffn w2
            pl.BlockSpec((num_layers, C, 1), rep(3)),                # ffn b2
            pl.BlockSpec((Cout, C), rep(2)),                         # conv_out w
            pl.BlockSpec((Cout, 1), rep(2)),                         # conv_out b
        ],
        out_specs=pl.BlockSpec((1, Cout, L), lambda n: (n, 0, 0)),
        compiler_params=pltpu.CompilerParams(dimension_semantics=("parallel",)),
    )(x_cat, tproj,
      params["conv_in_w"], params["conv_in_b"],
      params["conv_w"], params["conv_b"],
      params["wqkv"], params["bqkv"],
      params["ffn_w1"], params["ffn_b1"],
      params["ffn_w2"], params["ffn_b2"],
      params["conv_out_w"], params["conv_out_b"])


# ----------------------------- parameters ------------------------------------

def init_params(key, *, input_dim, num_classes, num_layers, num_f_maps,
                time_emb_dim, ant_emb_dim, kernel_size):
    keys = iter(jax.random.split(key, 128))

    def mat(i, o):
        return jax.random.normal(next(keys), (i, o), jnp.float32) / math.sqrt(i)

    def vec(o):
        return jax.random.normal(next(keys), (o,), jnp.float32) * 0.01

    C, T, A, K = num_f_maps, time_emb_dim, ant_emb_dim, kernel_size
    Cin = input_dim + num_classes

    def stack(fn):
        return jnp.stack([fn() for _ in range(num_layers)], axis=0)

    p = {
        "time_in0_w": mat(T, T), "time_in0_b": vec(T),
        "time_in1_w": mat(T, T), "time_in1_b": vec(T),
        "ant_in0_w": mat(A, A), "ant_in0_b": vec(A),
        "ant_in1_w": mat(A, T), "ant_in1_b": vec(T),
        "time_proj_w": mat(T, C), "time_proj_b": vec(C),
        # 1x1 convs stored as (Cout, Cin) + (Cout, 1)
        "conv_in_w": mat(Cin, C).T, "conv_in_b": vec(C)[:, None],
        "conv_out_w": mat(C, num_classes).T, "conv_out_b": vec(num_classes)[:, None],
        # per-layer weights stacked along a leading num_layers axis.
        # conv taps tap-major: rows [j*C:(j+1)*C] are PyTorch W[:, :, j].
        "conv_w": stack(lambda: jax.random.normal(next(keys), (K * C, C), jnp.float32)
                        / math.sqrt(C * K)),
        "conv_b": stack(lambda: vec(C)[:, None]),
        "wqkv": stack(lambda: jnp.concatenate(
            [mat(C, C).T, mat(C, C).T, mat(C, C).T], axis=0)),
        "bqkv": stack(lambda: vec(3 * C)[:, None]),
        "ffn_w1": stack(lambda: mat(C, C).T),
        "ffn_b1": stack(lambda: vec(C)[:, None]),
        "ffn_w2": stack(lambda: mat(C, C).T),
        "ffn_b2": stack(lambda: vec(C)[:, None]),
    }
    return p


# ------------------------------- forward --------------------------------------

def decoder_forward(params, x, t, event, ant_range, *, num_layers, kernel_size):
    T = params["time_in0_w"].shape[0]
    A = params["ant_in0_w"].shape[0]

    # time / anticipation embeddings (tiny; plain JAX glue)
    temb = get_timestep_embedding(t, T)
    temb = temb @ params["time_in0_w"] + params["time_in0_b"]
    temb = swish(temb)
    temb = temb @ params["time_in1_w"] + params["time_in1_b"]

    aemb = get_timestep_embedding(ant_range, A)
    aemb = aemb @ params["ant_in0_w"] + params["ant_in0_b"]
    aemb = swish(aemb)
    aemb = aemb @ params["ant_in1_w"] + params["ant_in1_b"]
    aemb = jnp.zeros_like(aemb)          # exactly as in the reference model

    emb = temb + aemb
    tproj = swish(emb) @ params["time_proj_w"] + params["time_proj_b"]   # (N, C)

    # conv_in(cat(x, event)) + time-proj bias + all layers + conv_out, in ONE kernel
    x_cat = jnp.concatenate([x, event], axis=1)
    return decoder_pallas(params, x_cat, tproj[:, :, None],
                          num_layers=num_layers, kernel_size=kernel_size)


# --------------------------------- main ----------------------------------------

if __name__ == "__main__":
    # TODO(synk): causal=True branch (causal pad + Identity norm) not instantiated;
    # this script reproduces the causal=False / eval-mode (dropout off) forward.
    N = 2
    input_dim = 8
    num_classes = 8
    num_layers = 2
    num_f_maps = 32
    time_emb_dim = 16
    ant_emb_dim = 16
    kernel_size = 3
    L = 128

    key = jax.random.PRNGKey(0)
    kp, kx, ke = jax.random.split(key, 3)

    params = init_params(kp, input_dim=input_dim, num_classes=num_classes,
                         num_layers=num_layers, num_f_maps=num_f_maps,
                         time_emb_dim=time_emb_dim, ant_emb_dim=ant_emb_dim,
                         kernel_size=kernel_size)

    x = jax.random.normal(kx, (N, input_dim, L), jnp.float32)
    event = jax.random.normal(ke, (N, num_classes, L), jnp.float32)
    t = jnp.array([5, 42], dtype=jnp.int32)
    ant_range = jnp.array([1, 3], dtype=jnp.int32)

    fwd = jax.jit(functools.partial(decoder_forward,
                                    num_layers=num_layers,
                                    kernel_size=kernel_size))
    out = fwd(params, x, t, event, ant_range)
    out = jax.block_until_ready(out)
    assert out.shape == (N, num_classes, L)
    print("KERNEL_OK")
</pallas_src>

<mosaic_0001>
module attributes {stable_mosaic.version = 11 : i64} {
  func.func @kernel(%arg0: i32, %arg1: memref<1x16x128xf32, #tpu.memory_space<vmem>>, %arg2: memref<1x32x1xf32, #tpu.memory_space<vmem>>, %arg3: memref<32x16xf32, #tpu.memory_space<vmem>>, %arg4: memref<32x1xf32, #tpu.memory_space<vmem>>, %arg5: memref<2x96x32xf32, #tpu.memory_space<vmem>>, %arg6: memref<2x32x1xf32, #tpu.memory_space<vmem>>, %arg7: memref<2x96x32xf32, #tpu.memory_space<vmem>>, %arg8: memref<2x96x1xf32, #tpu.memory_space<vmem>>, %arg9: memref<2x32x32xf32, #tpu.memory_space<vmem>>, %arg10: memref<2x32x1xf32, #tpu.memory_space<vmem>>, %arg11: memref<2x32x32xf32, #tpu.memory_space<vmem>>, %arg12: memref<2x32x1xf32, #tpu.memory_space<vmem>>, %arg13: memref<8x32xf32, #tpu.memory_space<vmem>>, %arg14: memref<8x1xf32, #tpu.memory_space<vmem>>, %arg15: memref<1x8x128xf32, #tpu.memory_space<vmem>>) attributes {dimension_semantics = [#tpu.dimension_semantics<parallel>], iteration_bounds = array<i64: 2>, scalar_prefetch = 0 : i64, scratch_operands = 0 : i64, tpu.core_type = #tpu.core_type<tc>, window_params = [{transform_indices = @transform_0, window_bounds = array<i64: 1, 16, 128>}, {transform_indices = @transform_1, window_bounds = array<i64: 1, 32, 1>}, {pipeline_mode = #tpu.pipeline_mode<synchronous>, transform_indices = @transform_2, window_bounds = array<i64: 32, 16>}, {pipeline_mode = #tpu.pipeline_mode<synchronous>, transform_indices = @transform_3, window_bounds = array<i64: 32, 1>}, {pipeline_mode = #tpu.pipeline_mode<synchronous>, transform_indices = @transform_4, window_bounds = array<i64: 2, 96, 32>}, {pipeline_mode = #tpu.pipeline_mode<synchronous>, transform_indices = @transform_5, window_bounds = array<i64: 2, 32, 1>}, {pipeline_mode = #tpu.pipeline_mode<synchronous>, transform_indices = @transform_6, window_bounds = array<i64: 2, 96, 32>}, {pipeline_mode = #tpu.pipeline_mode<synchronous>, transform_indices = @transform_7, window_bounds = array<i64: 2, 96, 1>}, {pipeline_mode = #tpu.pipeline_mode<synchronous>, transform_indices = @transform_8, window_bounds = array<i64: 2, 32, 32>}, {pipeline_mode = #tpu.pipeline_mode<synchronous>, transform_indices = @transform_9, window_bounds = array<i64: 2, 32, 1>}, {pipeline_mode = #tpu.pipeline_mode<synchronous>, transform_indices = @transform_10, window_bounds = array<i64: 2, 32, 32>}, {pipeline_mode = #tpu.pipeline_mode<synchronous>, transform_indices = @transform_11, window_bounds = array<i64: 2, 32, 1>}, {pipeline_mode = #tpu.pipeline_mode<synchronous>, transform_indices = @transform_12, window_bounds = array<i64: 8, 32>}, {pipeline_mode = #tpu.pipeline_mode<synchronous>, transform_indices = @transform_13, window_bounds = array<i64: 8, 1>}, {transform_indices = @transform_14, window_bounds = array<i64: 1, 8, 128>}]} {
    %0 = tpu.iota {dimensions = array<i32: 1>} : vector<1x128xi32>
    %c0 = arith.constant 0 : index
    %c0_0 = arith.constant 0 : index
    %c0_1 = arith.constant 0 : index
    %1 = vector.load %arg1[%c0, %c0_0, %c0_1] : memref<1x16x128xf32, #tpu.memory_space<vmem>>, vector<1x16x128xf32>
    %2 = vector.shape_cast %1 : vector<1x16x128xf32> to vector<16x128xf32>
    %c0_2 = arith.constant 0 : index
    %c0_3 = arith.constant 0 : index
    %3 = vector.load %arg3[%c0_2, %c0_3] : memref<32x16xf32, #tpu.memory_space<vmem>>, vector<32x16xf32>
    %cst = arith.constant dense<0.000000e+00> : vector<32x128xf32>
    %4 = tpu.matmul %3, %2, %cst {dimension_numbers = #tpu.dot_dimension_numbers<[1], [0], [0], [1], [0, 0, 1, 1], [], []>} : vector<32x16xf32>, vector<16x128xf32>, vector<32x128xf32> -> vector<32x128xf32>
    %c0_4 = arith.constant 0 : index
    %c0_5 = arith.constant 0 : index
    %5 = vector.load %arg4[%c0_4, %c0_5] : memref<32x1xf32, #tpu.memory_space<vmem>>, vector<32x1xf32>
    %6 = vector.broadcast %5 : vector<32x1xf32> to vector<32x128xf32>
    %7 = arith.addf %4, %6 : vector<32x128xf32>
    %c0_6 = arith.constant 0 : index
    %c0_7 = arith.constant 0 : index
    %c0_8 = arith.constant 0 : index
    %8 = vector.load %arg2[%c0_6, %c0_7, %c0_8] : memref<1x32x1xf32, #tpu.memory_space<vmem>>, vector<1x32x1xf32>
    %9 = vector.shape_cast %8 : vector<1x32x1xf32> to vector<32x1xf32>
    %10 = vector.broadcast %9 : vector<32x1xf32> to vector<32x128xf32>
    %11 = arith.addf %7, %10 : vector<32x128xf32>
    %c0_9 = arith.constant 0 : index
    %c0_10 = arith.constant 0 : index
    %c0_11 = arith.constant 0 : index
    %12 = vector.load %arg5[%c0_9, %c0_10, %c0_11] : memref<2x96x32xf32, #tpu.memory_space<vmem>>, vector<1x96x32xf32>
    %13 = vector.shape_cast %12 : vector<1x96x32xf32> to vector<96x32xf32>
    %c0_12 = arith.constant 0 : index
    %c0_13 = arith.constant 0 : index
    %c0_14 = arith.constant 0 : index
    %14 = vector.load %arg6[%c0_12, %c0_13, %c0_14] : memref<2x32x1xf32, #tpu.memory_space<vmem>>, vector<1x32x1xf32>
    %15 = vector.shape_cast %14 : vector<1x32x1xf32> to vector<32x1xf32>
    %c0_15 = arith.constant 0 : index
    %c0_16 = arith.constant 0 : index
    %c0_17 = arith.constant 0 : index
    %16 = vector.load %arg7[%c0_15, %c0_16, %c0_17] : memref<2x96x32xf32, #tpu.memory_space<vmem>>, vector<1x96x32xf32>
    %17 = vector.shape_cast %16 : vector<1x96x32xf32> to vector<96x32xf32>
    %c0_18 = arith.constant 0 : index
    %c0_19 = arith.constant 0 : index
    %c0_20 = arith.constant 0 : index
    %18 = vector.load %arg8[%c0_18, %c0_19, %c0_20] : memref<2x96x1xf32, #tpu.memory_space<vmem>>, vector<1x96x1xf32>
    %19 = vector.shape_cast %18 : vector<1x96x1xf32> to vector<96x1xf32>
    %c0_21 = arith.constant 0 : index
    %c0_22 = arith.constant 0 : index
    %c0_23 = arith.constant 0 : index
    %20 = vector.load %arg9[%c0_21, %c0_22, %c0_23] : memref<2x32x32xf32, #tpu.memory_space<vmem>>, vector<1x32x32xf32>
    %21 = vector.shape_cast %20 : vector<1x32x32xf32> to vector<32x32xf32>
    %c0_24 = arith.constant 0 : index
    %c0_25 = arith.constant 0 : index
    %c0_26 = arith.constant 0 : index
    %22 = vector.load %arg10[%c0_24, %c0_25, %c0_26] : memref<2x32x1xf32, #tpu.memory_space<vmem>>, vector<1x32x1xf32>
    %23 = vector.shape_cast %22 : vector<1x32x1xf32> to vector<32x1xf32>
    %c0_27 = arith.constant 0 : index
    %c0_28 = arith.constant 0 : index
    %c0_29 = arith.constant 0 : index
    %24 = vector.load %arg11[%c0_27, %c0_28, %c0_29] : memref<2x32x32xf32, #tpu.memory_space<vmem>>, vector<1x32x32xf32>
    %25 = vector.shape_cast %24 : vector<1x32x32xf32> to vector<32x32xf32>
    %c0_30 = arith.constant 0 : index
    %c0_31 = arith.constant 0 : index
    %c0_32 = arith.constant 0 : index
    %26 = vector.load %arg12[%c0_30, %c0_31, %c0_32] : memref<2x32x1xf32, #tpu.memory_space<vmem>>, vector<1x32x1xf32>
    %27 = vector.shape_cast %26 : vector<1x32x1xf32> to vector<32x1xf32>
    %cst_33 = arith.constant dense<0.000000e+00> : vector<96x128xf32>
    %28 = tpu.matmul %17, %11, %cst_33 {dimension_numbers = #tpu.dot_dimension_numbers<[1], [0], [0], [1], [0, 0, 1, 1], [], []>} : vector<96x32xf32>, vector<32x128xf32>, vector<96x128xf32> -> vector<96x128xf32>
    %29 = vector.broadcast %19 : vector<96x1xf32> to vector<96x128xf32>
    %30 = arith.addf %28, %29 : vector<96x128xf32>
    %31 = vector.extract_strided_slice %30 {offsets = [0, 0], sizes = [32, 128], strides = [1, 1]} : vector<96x128xf32> to vector<32x128xf32>
    %32 = vector.extract_strided_slice %30 {offsets = [32, 0], sizes = [32, 128], strides = [1, 1]} : vector<96x128xf32> to vector<32x128xf32>
    %33 = vector.extract_strided_slice %30 {offsets = [64, 0], sizes = [32, 128], strides = [1, 1]} : vector<96x128xf32> to vector<32x128xf32>
    %cst_34 = arith.constant dense<0.000000e+00> : vector<96x128xf32>
    %34 = tpu.matmul %13, %11, %cst_34 {dimension_numbers = #tpu.dot_dimension_numbers<[1], [0], [0], [1], [0, 0, 1, 1], [], []>} : vector<96x32xf32>, vector<32x128xf32>, vector<96x128xf32> -> vector<96x128xf32>
    %35 = vector.extract_strided_slice %34 {offsets = [0, 0], sizes = [32, 128], strides = [1, 1]} : vector<96x128xf32> to vector<32x128xf32>
    %c1_i32 = arith.constant 1 : i32
    %36 = tpu.dynamic_rotate %35 by %c1_i32 dim 1 : vector<32x128xf32>, i32 -> vector<32x128xf32>
    %c1_i32_35 = arith.constant 1 : i32
    %37 = tpu.dynamic_rotate %32 by %c1_i32_35 dim 1 : vector<32x128xf32>, i32 -> vector<32x128xf32>
    %38 = arith.mulf %31, %37 : vector<32x128xf32>
    %cst_36 = arith.constant dense<0.000000e+00> : vector<128xf32>
    %39 = vector.multi_reduction <add>, %38, %cst_36 [0] : vector<32x128xf32> to vector<128xf32>
    %40 = vector.shape_cast %39 : vector<128xf32> to vector<1x128xf32>
    %cst_37 = arith.constant 0.176776692 : f32
    %41 = vector.broadcast %cst_37 : f32 to vector<1x128xf32>
    %42 = arith.mulf %40, %41 : vector<1x128xf32>
    %c-1_i32 = arith.constant -1 : i32
    %43 = vector.broadcast %c-1_i32 : i32 to vector<1x128xi32>
    %44 = arith.addi %0, %43 : vector<1x128xi32>
    %c0_i32 = arith.constant 0 : i32
    %45 = vector.broadcast %c0_i32 : i32 to vector<1x128xi32>
    %46 = arith.cmpi sge, %44, %45 : vector<1x128xi32>
    %c-1_i32_38 = arith.constant -1 : i32
    %47 = vector.broadcast %c-1_i32_38 : i32 to vector<1x128xi32>
    %48 = arith.addi %0, %47 : vector<1x128xi32>
    %c128_i32 = arith.constant 128 : i32
    %49 = vector.broadcast %c128_i32 : i32 to vector<1x128xi32>
    %50 = arith.cmpi slt, %48, %49 : vector<1x128xi32>
    %51 = arith.andi %46, %50 : vector<1x128xi1>
    %52 = arith.extui %51 : vector<1x128xi1> to vector<1x128xi32>
    %53 = arith.sitofp %52 : vector<1x128xi32> to vector<1x128xf32>
    %cst_39 = arith.constant 9.99999543E-7 : f32
    %54 = vector.broadcast %cst_39 : f32 to vector<1x128xf32>
    %55 = arith.addf %42, %54 : vector<1x128xf32>
    %cst_40 = arith.constant -13.8155107 : f32
    %56 = vector.broadcast %cst_40 : f32 to vector<1x128xf32>
    %57 = arith.select %51, %55, %56 : vector<1x128xi1>, vector<1x128xf32>
    %58 = vector.broadcast %53 : vector<1x128xf32> to vector<32x128xf32>
    %59 = arith.mulf %36, %58 : vector<32x128xf32>
    %60 = vector.extract_strided_slice %34 {offsets = [32, 0], sizes = [32, 128], strides = [1, 1]} : vector<96x128xf32> to vector<32x128xf32>
    %61 = arith.mulf %31, %32 : vector<32x128xf32>
    %cst_41 = arith.constant dense<0.000000e+00> : vector<128xf32>
    %62 = vector.multi_reduction <add>, %61, %cst_41 [0] : vector<32x128xf32> to vector<128xf32>
    %63 = vector.shape_cast %62 : vector<128xf32> to vector<1x128xf32>
    %cst_42 = arith.constant 0.176776692 : f32
    %64 = vector.broadcast %cst_42 : f32 to vector<1x128xf32>
    %65 = arith.mulf %63, %64 : vector<1x128xf32>
    %cst_43 = arith.constant 9.99999543E-7 : f32
    %66 = vector.broadcast %cst_43 : f32 to vector<1x128xf32>
    %67 = arith.addf %65, %66 : vector<1x128xf32>
    %68 = arith.addf %59, %60 : vector<32x128xf32>
    %69 = vector.extract_strided_slice %34 {offsets = [64, 0], sizes = [32, 128], strides = [1, 1]} : vector<96x128xf32> to vector<32x128xf32>
    %c127_i32 = arith.constant 127 : i32
    %70 = tpu.dynamic_rotate %69 by %c127_i32 dim 1 : vector<32x128xf32>, i32 -> vector<32x128xf32>
    %c127_i32_44 = arith.constant 127 : i32
    %71 = tpu.dynamic_rotate %32 by %c127_i32_44 dim 1 : vector<32x128xf32>, i32 -> vector<32x128xf32>
    %72 = arith.mulf %31, %71 : vector<32x128xf32>
    %cst_45 = arith.constant dense<0.000000e+00> : vector<128xf32>
    %73 = vector.multi_reduction <add>, %72, %cst_45 [0] : vector<32x128xf32> to vector<128xf32>
    %74 = vector.shape_cast %73 : vector<128xf32> to vector<1x128xf32>
    %cst_46 = arith.constant 0.176776692 : f32
    %75 = vector.broadcast %cst_46 : f32 to vector<1x128xf32>
    %76 = arith.mulf %74, %75 : vector<1x128xf32>
    %c1_i32_47 = arith.constant 1 : i32
    %77 = vector.broadcast %c1_i32_47 : i32 to vector<1x128xi32>
    %78 = arith.addi %0, %77 : vector<1x128xi32>
    %c0_i32_48 = arith.constant 0 : i32
    %79 = vector.broadcast %c0_i32_48 : i32 to vector<1x128xi32>
    %80 = arith.cmpi sge, %78, %79 : vector<1x128xi32>
    %c1_i32_49 = arith.constant 1 : i32
    %81 = vector.broadcast %c1_i32_49 : i32 to vector<1x128xi32>
    %82 = arith.addi %0, %81 : vector<1x128xi32>
    %c128_i32_50 = arith.constant 128 : i32
    %83 = vector.broadcast %c128_i32_50 : i32 to vector<1x128xi32>
    %84 = arith.cmpi slt, %82, %83 : vector<1x128xi32>
    %85 = arith.andi %80, %84 : vector<1x128xi1>
    %86 = arith.extui %85 : vector<1x128xi1> to vector<1x128xi32>
    %87 = arith.sitofp %86 : vector<1x128xi32> to vector<1x128xf32>
    %cst_51 = arith.constant 9.99999543E-7 : f32
    %88 = vector.broadcast %cst_51 : f32 to vector<1x128xf32>
    %89 = arith.addf %76, %88 : vector<1x128xf32>
    %cst_52 = arith.constant -13.8155107 : f32
    %90 = vector.broadcast %cst_52 : f32 to vector<1x128xf32>
    %91 = arith.select %85, %89, %90 : vector<1x128xi1>, vector<1x128xf32>
    %92 = vector.broadcast %87 : vector<1x128xf32> to vector<32x128xf32>
    %93 = arith.mulf %70, %92 : vector<32x128xf32>
    %94 = arith.addf %68, %93 : vector<32x128xf32>
    %95 = vector.broadcast %15 : vector<32x1xf32> to vector<32x128xf32>
    %96 = arith.addf %94, %95 : vector<32x128xf32>
    %97 = arith.maximumf %57, %67 : vector<1x128xf32>
    %98 = arith.maximumf %97, %91 : vector<1x128xf32>
    %99 = arith.subf %57, %98 : vector<1x128xf32>
    %100 = math.exp %99 : vector<1x128xf32>
    %101 = arith.subf %67, %98 : vector<1x128xf32>
    %102 = math.exp %101 : vector<1x128xf32>
    %103 = arith.subf %91, %98 : vector<1x128xf32>
    %104 = math.exp %103 : vector<1x128xf32>
    %105 = arith.addf %100, %102 : vector<1x128xf32>
    %106 = arith.addf %105, %104 : vector<1x128xf32>
    %cst_53 = arith.constant 1.000000e+00 : f32
    %107 = vector.broadcast %cst_53 : f32 to vector<1x128xf32>
    %108 = arith.divf %107, %106 : vector<1x128xf32>
    %c1_i32_54 = arith.constant 1 : i32
    %109 = tpu.dynamic_rotate %33 by %c1_i32_54 dim 1 : vector<32x128xf32>, i32 -> vector<32x128xf32>
    %110 = arith.mulf %100, %108 : vector<1x128xf32>
    %111 = arith.mulf %110, %53 : vector<1x128xf32>
    %112 = vector.broadcast %111 : vector<1x128xf32> to vector<32x128xf32>
    %113 = arith.mulf %112, %109 : vector<32x128xf32>
    %114 = arith.mulf %102, %108 : vector<1x128xf32>
    %115 = vector.broadcast %114 : vector<1x128xf32> to vector<32x128xf32>
    %116 = arith.mulf %115, %33 : vector<32x128xf32>
    %117 = arith.addf %113, %116 : vector<32x128xf32>
    %c127_i32_55 = arith.constant 127 : i32
    %118 = tpu.dynamic_rotate %33 by %c127_i32_55 dim 1 : vector<32x128xf32>, i32 -> vector<32x128xf32>
    %119 = arith.mulf %104, %108 : vector<1x128xf32>
    %120 = arith.mulf %119, %87 : vector<1x128xf32>
    %121 = vector.broadcast %120 : vector<1x128xf32> to vector<32x128xf32>
    %122 = arith.mulf %121, %118 : vector<32x128xf32>
    %123 = arith.addf %117, %122 : vector<32x128xf32>
    %124 = arith.addf %96, %123 : vector<32x128xf32>
    %cst_56 = arith.constant dense<0.000000e+00> : vector<32xf32>
    %125 = vector.multi_reduction <add>, %124, %cst_56 [1] : vector<32x128xf32> to vector<32xf32>
    %126 = vector.shape_cast %125 : vector<32xf32> to vector<32x1xf32>
    %cst_57 = arith.constant 1.280000e+02 : f32
    %127 = vector.broadcast %cst_57 : f32 to vector<32x1xf32>
    %128 = arith.divf %126, %127 : vector<32x1xf32>
    %129 = vector.broadcast %128 : vector<32x1xf32> to vector<32x128xf32>
    %130 = arith.subf %124, %129 : vector<32x128xf32>
    %131 = arith.mulf %130, %130 : vector<32x128xf32>
    %cst_58 = arith.constant dense<0.000000e+00> : vector<32xf32>
    %132 = vector.multi_reduction <add>, %131, %cst_58 [1] : vector<32x128xf32> to vector<32xf32>
    %133 = vector.shape_cast %132 : vector<32xf32> to vector<32x1xf32>
    %cst_59 = arith.constant 1.280000e+02 : f32
    %134 = vector.broadcast %cst_59 : f32 to vector<32x1xf32>
    %135 = arith.divf %133, %134 : vector<32x1xf32>
    %136 = vector.broadcast %128 : vector<32x1xf32> to vector<32x128xf32>
    %137 = arith.subf %124, %136 : vector<32x128xf32>
    %cst_60 = arith.constant 9.99999974E-6 : f32
    %138 = vector.broadcast %cst_60 : f32 to vector<32x1xf32>
    %139 = arith.addf %135, %138 : vector<32x1xf32>
    %140 = math.rsqrt %139 : vector<32x1xf32>
    %141 = vector.broadcast %140 : vector<32x1xf32> to vector<32x128xf32>
    %142 = arith.mulf %137, %141 : vector<32x128xf32>
    %cst_61 = arith.constant dense<0.000000e+00> : vector<32x128xf32>
    %143 = tpu.matmul %21, %142, %cst_61 {dimension_numbers = #tpu.dot_dimension_numbers<[1], [0], [0], [1], [0, 0, 1, 1], [], []>} : vector<32x32xf32>, vector<32x128xf32>, vector<32x128xf32> -> vector<32x128xf32>
    %144 = vector.broadcast %23 : vector<32x1xf32> to vector<32x128xf32>
    %145 = arith.addf %143, %144 : vector<32x128xf32>
    %cst_62 = arith.constant 0.000000e+00 : f32
    %146 = vector.broadcast %cst_62 : f32 to vector<32x128xf32>
    %147 = arith.maximumf %145, %146 : vector<32x128xf32>
    %cst_63 = arith.constant dense<0.000000e+00> : vector<32x128xf32>
    %148 = tpu.matmul %25, %147, %cst_63 {dimension_numbers = #tpu.dot_dimension_numbers<[1], [0], [0], [1], [0, 0, 1, 1], [], []>} : vector<32x32xf32>, vector<32x128xf32>, vector<32x128xf32> -> vector<32x128xf32>
    %149 = vector.broadcast %27 : vector<32x1xf32> to vector<32x128xf32>
    %150 = arith.addf %148, %149 : vector<32x128xf32>
    %151 = arith.addf %11, %150 : vector<32x128xf32>
    %c1 = arith.constant 1 : index
    %c0_64 = arith.constant 0 : index
    %c0_65 = arith.constant 0 : index
    %152 = vector.load %arg5[%c1, %c0_64, %c0_65] : memref<2x96x32xf32, #tpu.memory_space<vmem>>, vector<1x96x32xf32>
    %153 = vector.shape_cast %152 : vector<1x96x32xf32> to vector<96x32xf32>
    %c1_66 = arith.constant 1 : index
    %c0_67 = arith.constant 0 : index
    %c0_68 = arith.constant 0 : index
    %154 = vector.load %arg6[%c1_66, %c0_67, %c0_68] : memref<2x32x1xf32, #tpu.memory_space<vmem>>, vector<1x32x1xf32>
    %155 = vector.shape_cast %154 : vector<1x32x1xf32> to vector<32x1xf32>
    %c1_69 = arith.constant 1 : index
    %c0_70 = arith.constant 0 : index
    %c0_71 = arith.constant 0 : index
    %156 = vector.load %arg7[%c1_69, %c0_70, %c0_71] : memref<2x96x32xf32, #tpu.memory_space<vmem>>, vector<1x96x32xf32>
    %157 = vector.shape_cast %156 : vector<1x96x32xf32> to vector<96x32xf32>
    %c1_72 = arith.constant 1 : index
    %c0_73 = arith.constant 0 : index
    %c0_74 = arith.constant 0 : index
    %158 = vector.load %arg8[%c1_72, %c0_73, %c0_74] : memref<2x96x1xf32, #tpu.memory_space<vmem>>, vector<1x96x1xf32>
    %159 = vector.shape_cast %158 : vector<1x96x1xf32> to vector<96x1xf32>
    %c1_75 = arith.constant 1 : index
    %c0_76 = arith.constant 0 : index
    %c0_77 = arith.constant 0 : index
    %160 = vector.load %arg9[%c1_75, %c0_76, %c0_77] : memref<2x32x32xf32, #tpu.memory_space<vmem>>, vector<1x32x32xf32>
    %161 = vector.shape_cast %160 : vector<1x32x32xf32> to vector<32x32xf32>
    %c1_78 = arith.constant 1 : index
    %c0_79 = arith.constant 0 : index
    %c0_80 = arith.constant 0 : index
    %162 = vector.load %arg10[%c1_78, %c0_79, %c0_80] : memref<2x32x1xf32, #tpu.memory_space<vmem>>, vector<1x32x1xf32>
    %163 = vector.shape_cast %162 : vector<1x32x1xf32> to vector<32x1xf32>
    %c1_81 = arith.constant 1 : index
    %c0_82 = arith.constant 0 : index
    %c0_83 = arith.constant 0 : index
    %164 = vector.load %arg11[%c1_81, %c0_82, %c0_83] : memref<2x32x32xf32, #tpu.memory_space<vmem>>, vector<1x32x32xf32>
    %165 = vector.shape_cast %164 : vector<1x32x32xf32> to vector<32x32xf32>
    %c1_84 = arith.constant 1 : index
    %c0_85 = arith.constant 0 : index
    %c0_86 = arith.constant 0 : index
    %166 = vector.load %arg12[%c1_84, %c0_85, %c0_86] : memref<2x32x1xf32, #tpu.memory_space<vmem>>, vector<1x32x1xf32>
    %167 = vector.shape_cast %166 : vector<1x32x1xf32> to vector<32x1xf32>
    %cst_87 = arith.constant dense<0.000000e+00> : vector<96x128xf32>
    %168 = tpu.matmul %157, %151, %cst_87 {dimension_numbers = #tpu.dot_dimension_numbers<[1], [0], [0], [1], [0, 0, 1, 1], [], []>} : vector<96x32xf32>, vector<32x128xf32>, vector<96x128xf32> -> vector<96x128xf32>
    %169 = vector.broadcast %159 : vector<96x1xf32> to vector<96x128xf32>
    %170 = arith.addf %168, %169 : vector<96x128xf32>
    %171 = vector.extract_strided_slice %170 {offsets = [0, 0], sizes = [32, 128], strides = [1, 1]} : vector<96x128xf32> to vector<32x128xf32>
    %172 = vector.extract_strided_slice %170 {offsets = [32, 0], sizes = [32, 128], strides = [1, 1]} : vector<96x128xf32> to vector<32x128xf32>
    %173 = vector.extract_strided_slice %170 {offsets = [64, 0], sizes = [32, 128], strides = [1, 1]} : vector<96x128xf32> to vector<32x128xf32>
    %cst_88 = arith.constant dense<0.000000e+00> : vector<96x128xf32>
    %174 = tpu.matmul %153, %151, %cst_88 {dimension_numbers = #tpu.dot_dimension_numbers<[1], [0], [0], [1], [0, 0, 1, 1], [], []>} : vector<96x32xf32>, vector<32x128xf32>, vector<96x128xf32> -> vector<96x128xf32>
    %175 = vector.extract_strided_slice %174 {offsets = [0, 0], sizes = [32, 128], strides = [1, 1]} : vector<96x128xf32> to vector<32x128xf32>
    %c2_i32 = arith.constant 2 : i32
    %176 = tpu.dynamic_rotate %175 by %c2_i32 dim 1 : vector<32x128xf32>, i32 -> vector<32x128xf32>
    %c2_i32_89 = arith.constant 2 : i32
    %177 = tpu.dynamic_rotate %172 by %c2_i32_89 dim 1 : vector<32x128xf32>, i32 -> vector<32x128xf32>
    %178 = arith.mulf %171, %177 : vector<32x128xf32>
    %cst_90 = arith.constant dense<0.000000e+00> : vector<128xf32>
    %179 = vector.multi_reduction <add>, %178, %cst_90 [0] : vector<32x128xf32> to vector<128xf32>
    %180 = vector.shape_cast %179 : vector<128xf32> to vector<1x128xf32>
    %cst_91 = arith.constant 0.176776692 : f32
    %181 = vector.broadcast %cst_91 : f32 to vector<1x128xf32>
    %182 = arith.mulf %180, %181 : vector<1x128xf32>
    %c-2_i32 = arith.constant -2 : i32
    %183 = vector.broadcast %c-2_i32 : i32 to vector<1x128xi32>
    %184 = arith.addi %0, %183 : vector<1x128xi32>
    %c0_i32_92 = arith.constant 0 : i32
    %185 = vector.broadcast %c0_i32_92 : i32 to vector<1x128xi32>
    %186 = arith.cmpi sge, %184, %185 : vector<1x128xi32>
    %c-2_i32_93 = arith.constant -2 : i32
    %187 = vector.broadcast %c-2_i32_93 : i32 to vector<1x128xi32>
    %188 = arith.addi %0, %187 : vector<1x128xi32>
    %c128_i32_94 = arith.constant 128 : i32
    %189 = vector.broadcast %c128_i32_94 : i32 to vector<1x128xi32>
    %190 = arith.cmpi slt, %188, %189 : vector<1x128xi32>
    %191 = arith.andi %186, %190 : vector<1x128xi1>
    %192 = arith.extui %191 : vector<1x128xi1> to vector<1x128xi32>
    %193 = arith.sitofp %192 : vector<1x128xi32> to vector<1x128xf32>
    %cst_95 = arith.constant 9.99999543E-7 : f32
    %194 = vector.broadcast %cst_95 : f32 to vector<1x128xf32>
    %195 = arith.addf %182, %194 : vector<1x128xf32>
    %cst_96 = arith.constant -13.8155107 : f32
    %196 = vector.broadcast %cst_96 : f32 to vector<1x128xf32>
    %197 = arith.select %191, %195, %196 : vector<1x128xi1>, vector<1x128xf32>
    %198 = vector.broadcast %193 : vector<1x128xf32> to vector<32x128xf32>
    %199 = arith.mulf %176, %198 : vector<32x128xf32>
    %200 = vector.extract_strided_slice %174 {offsets = [32, 0], sizes = [32, 128], strides = [1, 1]} : vector<96x128xf32> to vector<32x128xf32>
    %201 = arith.mulf %171, %172 : vector<32x128xf32>
    %cst_97 = arith.constant dense<0.000000e+00> : vector<128xf32>
    %202 = vector.multi_reduction <add>, %201, %cst_97 [0] : vector<32x128xf32> to vector<128xf32>
    %203 = vector.shape_cast %202 : vector<128xf32> to vector<1x128xf32>
    %cst_98 = arith.constant 0.176776692 : f32
    %204 = vector.broadcast %cst_98 : f32 to vector<1x128xf32>
    %205 = arith.mulf %203, %204 : vector<1x128xf32>
    %cst_99 = arith.constant 9.99999543E-7 : f32
    %206 = vector.broadcast %cst_99 : f32 to vector<1x128xf32>
    %207 = arith.addf %205, %206 : vector<1x128xf32>
    %208 = arith.addf %199, %200 : vector<32x128xf32>
    %209 = vector.extract_strided_slice %174 {offsets = [64, 0], sizes = [32, 128], strides = [1, 1]} : vector<96x128xf32> to vector<32x128xf32>
    %c126_i32 = arith.constant 126 : i32
    %210 = tpu.dynamic_rotate %209 by %c126_i32 dim 1 : vector<32x128xf32>, i32 -> vector<32x128xf32>
    %c126_i32_100 = arith.constant 126 : i32
    %211 = tpu.dynamic_rotate %172 by %c126_i32_100 dim 1 : vector<32x128xf32>, i32 -> vector<32x128xf32>
    %212 = arith.mulf %171, %211 : vector<32x128xf32>
    %cst_101 = arith.constant dense<0.000000e+00> : vector<128xf32>
    %213 = vector.multi_reduction <add>, %212, %cst_101 [0] : vector<32x128xf32> to vector<128xf32>
    %214 = vector.shape_cast %213 : vector<128xf32> to vector<1x128xf32>
    %cst_102 = arith.constant 0.176776692 : f32
    %215 = vector.broadcast %cst_102 : f32 to vector<1x128xf32>
    %216 = arith.mulf %214, %215 : vector<1x128xf32>
    %c2_i32_103 = arith.constant 2 : i32
    %217 = vector.broadcast %c2_i32_103 : i32 to vector<1x128xi32>
    %218 = arith.addi %0, %217 : vector<1x128xi32>
    %c0_i32_104 = arith.constant 0 : i32
    %219 = vector.broadcast %c0_i32_104 : i32 to vector<1x128xi32>
    %220 = arith.cmpi sge, %218, %219 : vector<1x128xi32>
    %c2_i32_105 = arith.constant 2 : i32
    %221 = vector.broadcast %c2_i32_105 : i32 to vector<1x128xi32>
    %222 = arith.addi %0, %221 : vector<1x128xi32>
    %c128_i32_106 = arith.constant 128 : i32
    %223 = vector.broadcast %c128_i32_106 : i32 to vector<1x128xi32>
    %224 = arith.cmpi slt, %222, %223 : vector<1x128xi32>
    %225 = arith.andi %220, %224 : vector<1x128xi1>
    %226 = arith.extui %225 : vector<1x128xi1> to vector<1x128xi32>
    %227 = arith.sitofp %226 : vector<1x128xi32> to vector<1x128xf32>
    %cst_107 = arith.constant 9.99999543E-7 : f32
    %228 = vector.broadcast %cst_107 : f32 to vector<1x128xf32>
    %229 = arith.addf %216, %228 : vector<1x128xf32>
    %cst_108 = arith.constant -13.8155107 : f32
    %230 = vector.broadcast %cst_108 : f32 to vector<1x128xf32>
    %231 = arith.select %225, %229, %230 : vector<1x128xi1>, vector<1x128xf32>
    %232 = vector.broadcast %227 : vector<1x128xf32> to vector<32x128xf32>
    %233 = arith.mulf %210, %232 : vector<32x128xf32>
    %234 = arith.addf %208, %233 : vector<32x128xf32>
    %235 = vector.broadcast %155 : vector<32x1xf32> to vector<32x128xf32>
    %236 = arith.addf %234, %235 : vector<32x128xf32>
    %237 = arith.maximumf %197, %207 : vector<1x128xf32>
    %238 = arith.maximumf %237, %231 : vector<1x128xf32>
    %239 = arith.subf %197, %238 : vector<1x128xf32>
    %240 = math.exp %239 : vector<1x128xf32>
    %241 = arith.subf %207, %238 : vector<1x128xf32>
    %242 = math.exp %241 : vector<1x128xf32>
    %243 = arith.subf %231, %238 : vector<1x128xf32>
    %244 = math.exp %243 : vector<1x128xf32>
    %245 = arith.addf %240, %242 : vector<1x128xf32>
    %246 = arith.addf %245, %244 : vector<1x128xf32>
    %cst_109 = arith.constant 1.000000e+00 : f32
    %247 = vector.broadcast %cst_109 : f32 to vector<1x128xf32>
    %248 = arith.divf %247, %246 : vector<1x128xf32>
    %c2_i32_110 = arith.constant 2 : i32
    %249 = tpu.dynamic_rotate %173 by %c2_i32_110 dim 1 : vector<32x128xf32>, i32 -> vector<32x128xf32>
    %250 = arith.mulf %240, %248 : vector<1x128xf32>
    %251 = arith.mulf %250, %193 : vector<1x128xf32>
    %252 = vector.broadcast %251 : vector<1x128xf32> to vector<32x128xf32>
    %253 = arith.mulf %252, %249 : vector<32x128xf32>
    %254 = arith.mulf %242, %248 : vector<1x128xf32>
    %255 = vector.broadcast %254 : vector<1x128xf32> to vector<32x128xf32>
    %256 = arith.mulf %255, %173 : vector<32x128xf32>
    %257 = arith.addf %253, %256 : vector<32x128xf32>
    %c126_i32_111 = arith.constant 126 : i32
    %258 = tpu.dynamic_rotate %173 by %c126_i32_111 dim 1 : vector<32x128xf32>, i32 -> vector<32x128xf32>
    %259 = arith.mulf %244, %248 : vector<1x128xf32>
    %260 = arith.mulf %259, %227 : vector<1x128xf32>
    %261 = vector.broadcast %260 : vector<1x128xf32> to vector<32x128xf32>
    %262 = arith.mulf %261, %258 : vector<32x128xf32>
    %263 = arith.addf %257, %262 : vector<32x128xf32>
    %264 = arith.addf %236, %263 : vector<32x128xf32>
    %cst_112 = arith.constant dense<0.000000e+00> : vector<32xf32>
    %265 = vector.multi_reduction <add>, %264, %cst_112 [1] : vector<32x128xf32> to vector<32xf32>
    %266 = vector.shape_cast %265 : vector<32xf32> to vector<32x1xf32>
    %cst_113 = arith.constant 1.280000e+02 : f32
    %267 = vector.broadcast %cst_113 : f32 to vector<32x1xf32>
    %268 = arith.divf %266, %267 : vector<32x1xf32>
    %269 = vector.broadcast %268 : vector<32x1xf32> to vector<32x128xf32>
    %270 = arith.subf %264, %269 : vector<32x128xf32>
    %271 = arith.mulf %270, %270 : vector<32x128xf32>
    %cst_114 = arith.constant dense<0.000000e+00> : vector<32xf32>
    %272 = vector.multi_reduction <add>, %271, %cst_114 [1] : vector<32x128xf32> to vector<32xf32>
    %273 = vector.shape_cast %272 : vector<32xf32> to vector<32x1xf32>
    %cst_115 = arith.constant 1.280000e+02 : f32
    %274 = vector.broadcast %cst_115 : f32 to vector<32x1xf32>
    %275 = arith.divf %273, %274 : vector<32x1xf32>
    %276 = vector.broadcast %268 : vector<32x1xf32> to vector<32x128xf32>
    %277 = arith.subf %264, %276 : vector<32x128xf32>
    %cst_116 = arith.constant 9.99999974E-6 : f32
    %278 = vector.broadcast %cst_116 : f32 to vector<32x1xf32>
    %279 = arith.addf %275, %278 : vector<32x1xf32>
    %280 = math.rsqrt %279 : vector<32x1xf32>
    %281 = vector.broadcast %280 : vector<32x1xf32> to vector<32x128xf32>
    %282 = arith.mulf %277, %281 : vector<32x128xf32>
    %cst_117 = arith.constant dense<0.000000e+00> : vector<32x128xf32>
    %283 = tpu.matmul %161, %282, %cst_117 {dimension_numbers = #tpu.dot_dimension_numbers<[1], [0], [0], [1], [0, 0, 1, 1], [], []>} : vector<32x32xf32>, vector<32x128xf32>, vector<32x128xf32> -> vector<32x128xf32>
    %284 = vector.broadcast %163 : vector<32x1xf32> to vector<32x128xf32>
    %285 = arith.addf %283, %284 : vector<32x128xf32>
    %cst_118 = arith.constant 0.000000e+00 : f32
    %286 = vector.broadcast %cst_118 : f32 to vector<32x128xf32>
    %287 = arith.maximumf %285, %286 : vector<32x128xf32>
    %cst_119 = arith.constant dense<0.000000e+00> : vector<32x128xf32>
    %288 = tpu.matmul %165, %287, %cst_119 {dimension_numbers = #tpu.dot_dimension_numbers<[1], [0], [0], [1], [0, 0, 1, 1], [], []>} : vector<32x32xf32>, vector<32x128xf32>, vector<32x128xf32> -> vector<32x128xf32>
    %289 = vector.broadcast %167 : vector<32x1xf32> to vector<32x128xf32>
    %290 = arith.addf %288, %289 : vector<32x128xf32>
    %291 = arith.addf %151, %290 : vector<32x128xf32>
    %c0_120 = arith.constant 0 : index
    %c0_121 = arith.constant 0 : index
    %292 = vector.load %arg13[%c0_120, %c0_121] : memref<8x32xf32, #tpu.memory_space<vmem>>, vector<8x32xf32>
    %cst_122 = arith.constant dense<0.000000e+00> : vector<8x128xf32>
    %293 = tpu.matmul %292, %291, %cst_122 {dimension_numbers = #tpu.dot_dimension_numbers<[1], [0], [0], [1], [0, 0, 1, 1], [], []>} : vector<8x32xf32>, vector<32x128xf32>, vector<8x128xf32> -> vector<8x128xf32>
    %c0_123 = arith.constant 0 : index
    %c0_124 = arith.constant 0 : index
    %294 = vector.load %arg14[%c0_123, %c0_124] : memref<8x1xf32, #tpu.memory_space<vmem>>, vector<8x1xf32>
    %295 = vector.broadcast %294 : vector<8x1xf32> to vector<8x128xf32>
    %296 = arith.addf %293, %295 : vector<8x128xf32>
    %c0_125 = arith.constant 0 : index
    %c0_126 = arith.constant 0 : index
    %c0_127 = arith.constant 0 : index
    %297 = vector.load %arg15[%c0_125, %c0_126, %c0_127] : memref<1x8x128xf32, #tpu.memory_space<vmem>>, vector<1x8x128xf32>
    %298 = vector.shape_cast %297 : vector<1x8x128xf32> to vector<8x128xf32>
    %299 = vector.shape_cast %296 : vector<8x128xf32> to vector<1x8x128xf32>
    tpu.vector_store %arg15[%c0_125, %c0_126, %c0_127], %299 {strides = array<i32>} : memref<1x8x128xf32, #tpu.memory_space<vmem>>, vector<1x8x128xf32>,
    return
  }
  func.func @transform_0(%arg0: i32) -> (i32, i32, i32) {
    %c0_i32 = arith.constant 0 : i32
    %c0_i32_0 = arith.constant 0 : i32
    %c0_i32_1 = arith.constant 0 : i32
    return %arg0, %c0_i32, %c0_i32_0 : i32, i32, i32
  }
  func.func @transform_1(%arg0: i32) -> (i32, i32, i32) {
    %c0_i32 = arith.constant 0 : i32
    %c0_i32_0 = arith.constant 0 : i32
    %c0_i32_1 = arith.constant 0 : i32
    return %arg0, %c0_i32, %c0_i32_0 : i32, i32, i32
  }
  func.func @transform_2(%arg0: i32) -> (i32, i32) {
    %c0_i32 = arith.constant 0 : i32
    %c0_i32_0 = arith.constant 0 : i32
    %c0_i32_1 = arith.constant 0 : i32
    return %c0_i32, %c0_i32_0 : i32, i32
  }
  func.func @transform_3(%arg0: i32) -> (i32, i32) {
    %c0_i32 = arith.constant 0 : i32
    %c0_i32_0 = arith.constant 0 : i32
    %c0_i32_1 = arith.constant 0 : i32
    return %c0_i32, %c0_i32_0 : i32, i32
  }
  func.func @transform_4(%arg0: i32) -> (i32, i32, i32) {
    %c0_i32 = arith.constant 0 : i32
    %c0_i32_0 = arith.constant 0 : i32
    %c0_i32_1 = arith.constant 0 : i32
    %c0_i32_2 = arith.constant 0 : i32
    return %c0_i32, %c0_i32_0, %c0_i32_1 : i32, i32, i32
  }
  func.func @transform_5(%arg0: i32) -> (i32, i32, i32) {
    %c0_i32 = arith.constant 0 : i32
    %c0_i32_0 = arith.constant 0 : i32
    %c0_i32_1 = arith.constant 0 : i32
    %c0_i32_2 = arith.constant 0 : i32
    return %c0_i32, %c0_i32_0, %c0_i32_1 : i32, i32, i32
  }
  func.func @transform_6(%arg0: i32) -> (i32, i32, i32) {
    %c0_i32 = arith.constant 0 : i32
    %c0_i32_0 = arith.constant 0 : i32
    %c0_i32_1 = arith.constant 0 : i32
    %c0_i32_2 = arith.constant 0 : i32
    return %c0_i32, %c0_i32_0, %c0_i32_1 : i32, i32, i32
  }
  func.func @transform_7(%arg0: i32) -> (i32, i32, i32) {
    %c0_i32 = arith.constant 0 : i32
    %c0_i32_0 = arith.constant 0 : i32
    %c0_i32_1 = arith.constant 0 : i32
    %c0_i32_2 = arith.constant 0 : i32
    return %c0_i32, %c0_i32_0, %c0_i32_1 : i32, i32, i32
  }
  func.func @transform_8(%arg0: i32) -> (i32, i32, i32) {
    %c0_i32 = arith.constant 0 : i32
    %c0_i32_0 = arith.constant 0 : i32
    %c0_i32_1 = arith.constant 0 : i32
    %c0_i32_2 = arith.constant 0 : i32
    return %c0_i32, %c0_i32_0, %c0_i32_1 : i32, i32, i32
  }
  func.func @transform_9(%arg0: i32) -> (i32, i32, i32) {
    %c0_i32 = arith.constant 0 : i32
    %c0_i32_0 = arith.constant 0 : i32
    %c0_i32_1 = arith.constant 0 : i32
    %c0_i32_2 = arith.constant 0 : i32
    return %c0_i32, %c0_i32_0, %c0_i32_1 : i32, i32, i32
  }
  func.func @transform_10(%arg0: i32) -> (i32, i32, i32) {
    %c0_i32 = arith.constant 0 : i32
    %c0_i32_0 = arith.constant 0 : i32
    %c0_i32_1 = arith.constant 0 : i32
    %c0_i32_2 = arith.constant 0 : i32
    return %c0_i32, %c0_i32_0, %c0_i32_1 : i32, i32, i32
  }
  func.func @transform_11(%arg0: i32) -> (i32, i32, i32) {
    %c0_i32 = arith.constant 0 : i32
    %c0_i32_0 = arith.constant 0 : i32
    %c0_i32_1 = arith.constant 0 : i32
    %c0_i32_2 = arith.constant 0 : i32
    return %c0_i32, %c0_i32_0, %c0_i32_1 : i32, i32, i32
  }
  func.func @transform_12(%arg0: i32) -> (i32, i32) {
    %c0_i32 = arith.constant 0 : i32
    %c0_i32_0 = arith.constant 0 : i32
    %c0_i32_1 = arith.constant 0 : i32
    return %c0_i32, %c0_i32_0 : i32, i32
  }
  func.func @transform_13(%arg0: i32) -> (i32, i32) {
    %c0_i32 = arith.constant 0 : i32
    %c0_i32_0 = arith.constant 0 : i32
    %c0_i32_1 = arith.constant 0 : i32
    return %c0_i32, %c0_i32_0 : i32, i32
  }
  func.func @transform_14(%arg0: i32) -> (i32, i32, i32) {
    %c0_i32 = arith.constant 0 : i32
    %c0_i32_0 = arith.constant 0 : i32
    %c0_i32_1 = arith.constant 0 : i32
    return %arg0, %c0_i32, %c0_i32_0 : i32, i32, i32
  }
}

</mosaic_0001>

<llo_original>
// kernel: decoder_forward.1
$region0: #{decoder_forward.1}
  #allocation0 [shape = 'u32[]', space=smem, size = 0x4, offset = 0x4, fixed_abs, tag = 'smem constant byte address 0x4 - core index']
  #allocation1 [shape = 'u32[144,128]{1,0:T(1,128)}', space=vmem, size = 0x12000, scoped, tag = 'internal scratch']
  %s0 = inlined_call_operand.vmem [shape: f32[2,16,128], index: 0, kind: input, shape index: {}]
  %s1 = inlined_call_operand.vmem [shape: f32[2,32,1], index: 1, kind: input, shape index: {}]
  %s2 = inlined_call_operand.vmem [shape: f32[32,16], index: 2, kind: input, shape index: {}]
  %s3 = inlined_call_operand.vmem [shape: f32[32,1], index: 3, kind: input, shape index: {}]
  %s4 = inlined_call_operand.vmem [shape: f32[2,96,32], index: 4, kind: input, shape index: {}]
  %s5 = inlined_call_operand.vmem [shape: f32[2,32,1], index: 5, kind: input, shape index: {}]
  %s6 = inlined_call_operand.vmem [shape: f32[2,96,32], index: 6, kind: input, shape index: {}]
  %s7 = inlined_call_operand.vmem [shape: f32[2,96,1], index: 7, kind: input, shape index: {}]
  %s8 = inlined_call_operand.vmem [shape: f32[2,32,32], index: 8, kind: input, shape index: {}]
  %s9 = inlined_call_operand.vmem [shape: f32[2,32,1], index: 9, kind: input, shape index: {}]
  %s10 = inlined_call_operand.vmem [shape: f32[2,32,32], index: 10, kind: input, shape index: {}]
  %s11 = inlined_call_operand.vmem [shape: f32[2,32,1], index: 11, kind: input, shape index: {}]
  %s12 = inlined_call_operand.vmem [shape: f32[8,32], index: 12, kind: input, shape index: {}]
  %s13 = inlined_call_operand.vmem [shape: f32[8,1], index: 13, kind: input, shape index: {}]
  %s14 = inlined_call_operand.hbm [shape: f32[2,8,128], index: 14, kind: output, shape index: {}]
  %s15 = sld [smem:[#allocation0]]
  $region89: #{decoder_forward.1} parent=0
    _
  %s17 = ssub.s32 1, %s15
  %s18 = scalar_select 0, %s17, %s15
  $region1: #{decoder_forward.1} parent=0
    #allocation2 [shape = 'u8[8192]{0}', space=vmem, size = 0x2000, scoped, tag = 'output window, operand 0']
    #allocation3 [shape = 's32[2]{0}', space=sflag, size = 0x8, scoped, tag = 'scoped memory for decoder_forward.1']
    %19 = vsyncpa [#allocation3], 0
    %s20 = scalar_lea.sflag [#allocation3], 1
    %21 = vsyncpa %s20, 0
    loop: start=0, step=1, limit=4
    $region2: #{decoder_forward.1} parent=1 // loop_pre_header
      _
    $region3: #{decoder_forward.1} parent=1 // loop_header
      %s23 = sphi 0, %s27
      %p24 = scmp.ge.s32.totalorder %s23, 4
      %s33 = sphi 0, %s35
      %s36 = sphi 0, %s33
      %s37 = sphi 0, %s36
      %s53 = sphi 0, %s37
      %s59 = sphi 0, %s61
      %s62 = sphi 0, %s59
      %s63 = sphi 0, %s62
      %s79 = sphi 0, %s63
      %s83 = sphi 0, %s83
      %s85 = sphi 0, %s83
      %s86 = sphi 0, %s85
      %s100 = sphi 0, %s86
      %s104 = sphi 0, %s104
      %s106 = sphi 0, %s104
      %s107 = sphi 0, %s106
      %s121 = sphi 0, %s107
      %s125 = sphi 0, %s125
      %s127 = sphi 0, %s125
      %s128 = sphi 0, %s127
      %s142 = sphi 0, %s128
      %s146 = sphi 0, %s146
      %s148 = sphi 0, %s146
      %s149 = sphi 0, %s148
      %s163 = sphi 0, %s149
      %s167 = sphi 0, %s167
      %s169 = sphi 0, %s167
      %s170 = sphi 0, %s169
      %s184 = sphi 0, %s170
      %s188 = sphi 0, %s188
      %s190 = sphi 0, %s188
      %s191 = sphi 0, %s190
      %s205 = sphi 0, %s191
      %s209 = sphi 0, %s209
      %s211 = sphi 0, %s209
      %s212 = sphi 0, %s211
      %s226 = sphi 0, %s212
      %s230 = sphi 0, %s230
      %s232 = sphi 0, %s230
      %s233 = sphi 0, %s232
      %s247 = sphi 0, %s233
      %s251 = sphi 0, %s251
      %s253 = sphi 0, %s251
      %s254 = sphi 0, %s253
      %s268 = sphi 0, %s254
      %s272 = sphi 0, %s272
      %s274 = sphi 0, %s272
      %s275 = sphi 0, %s274
      %s289 = sphi 0, %s275
      %s293 = sphi 0, %s293
      %s295 = sphi 0, %s293
      %s296 = sphi 0, %s295
      %s310 = sphi 0, %s296
      %s314 = sphi 0, %s314
      %s316 = sphi 0, %s314
      %s317 = sphi 0, %s316
      %s331 = sphi 0, %s317
      %s337 = sphi 0, %s339
      %s340 = sphi 0, %s337
      %s341 = sphi 0, %s340
      %s357 = sphi 0, %s341
    $region4: #{decoder_forward.1} parent=1 // loop_header_branch
      %26 = sbr.rel (%p24) target = $region8
    $region5: #{decoder_forward.1} parent=1 // loop_body
      %s28 = ssub.s32 %s23, 1
      %s29 = ssub.s32 %s23, 2
      %s30 = sadd.s32 %s23, 1
      %s31 = ssub.s32 %s23, %s30
      %p32 = scmp.eq.s32.totalorder %s31, 0
      %s34 = sadd.s32 %s33, 1
      %s35 = scalar_select %p32, %s33, %s34
      %p38 = pneg %p32
      %p39 = scmp.eq.s32.totalorder %s23, 1
      %p40 = por %p38, %p39
      %p41 = scmp.ne.s32.totalorder %s33, %s36
      %p42 = scmp.eq.s32.totalorder %s23, 0
      %p43 = por %p41, %p42
      %p44 = scmp.ne.s32.totalorder %s33, %s36
      %p45 = scmp.eq.s32.totalorder %s28, 1
      %p46 = por %p44, %p45
      %p47 = scmp.ne.s32.totalorder %s36, %s37
      %p48 = scmp.eq.s32.totalorder %s28, 0
      %p49 = por %p47, %p48
      %p50 = scmp.ne.s32.totalorder %s36, %s37
      %p51 = scmp.eq.s32.totalorder %s29, 1
      %p52 = por %p50, %p51
      %p54 = scmp.ne.s32.totalorder %s37, %s53
      %p55 = scmp.eq.s32.totalorder %s29, 0
      %p56 = por %p54, %p55
      %s57 = ssub.s32 %s23, %s30
      %p58 = scmp.eq.s32.totalorder %s57, 0
      %s60 = sadd.s32 %s59, 1
      %s61 = scalar_select %p58, %s59, %s60
      %p64 = pneg %p58
      %p65 = scmp.eq.s32.totalorder %s23, 1
      %p66 = por %p64, %p65
      %p67 = scmp.ne.s32.totalorder %s59, %s62
      %p68 = scmp.eq.s32.totalorder %s23, 0
      %p69 = por %p67, %p68
      %p70 = scmp.ne.s32.totalorder %s59, %s62
      %p71 = scmp.eq.s32.totalorder %s28, 1
      %p72 = por %p70, %p71
      %p73 = scmp.ne.s32.totalorder %s62, %s63
      %p74 = scmp.eq.s32.totalorder %s28, 0
      %p75 = por %p73, %p74
      %p76 = scmp.ne.s32.totalorder %s62, %s63
      %p77 = scmp.eq.s32.totalorder %s29, 1
      %p78 = por %p76, %p77
      %p80 = scmp.ne.s32.totalorder %s63, %s79
      %p81 = scmp.eq.s32.totalorder %s29, 0
      %p82 = por %p80, %p81
      %s84 = sadd.s32 %s83, 1
      %p87 = scmp.eq.s32.totalorder %s23, 1
      %p88 = scmp.ne.s32.totalorder %s83, %s85
      %p89 = scmp.eq.s32.totalorder %s23, 0
      %p90 = por %p88, %p89
      %p91 = scmp.ne.s32.totalorder %s83, %s85
      %p92 = scmp.eq.s32.totalorder %s28, 1
      %p93 = por %p91, %p92
      %p94 = scmp.ne.s32.totalorder %s85, %s86
      %p95 = scmp.eq.s32.totalorder %s28, 0
      %p96 = por %p94, %p95
      %p97 = scmp.ne.s32.totalorder %s85, %s86
      %p98 = scmp.eq.s32.totalorder %s29, 1
      %p99 = por %p97, %p98
      %p101 = scmp.ne.s32.totalorder %s86, %s100
      %p102 = scmp.eq.s32.totalorder %s29, 0
      %p103 = por %p101, %p102
      %s105 = sadd.s32 %s104, 1
      %p108 = scmp.eq.s32.totalorder %s23, 1
      %p109 = scmp.ne.s32.totalorder %s104, %s106
      %p110 = scmp.eq.s32.totalorder %s23, 0
      %p111 = por %p109, %p110
      %p112 = scmp.ne.s32.totalorder %s104, %s106
      %p113 = scmp.eq.s32.totalorder %s28, 1
      %p114 = por %p112, %p113
      %p115 = scmp.ne.s32.totalorder %s106, %s107
      %p116 = scmp.eq.s32.totalorder %s28, 0
      %p117 = por %p115, %p116
      %p118 = scmp.ne.s32.totalorder %s106, %s107
      %p119 = scmp.eq.s32.totalorder %s29, 1
      %p120 = por %p118, %p119
      %p122 = scmp.ne.s32.totalorder %s107, %s121
      %p123 = scmp.eq.s32.totalorder %s29, 0
      %p124 = por %p122, %p123
      %s126 = sadd.s32 %s125, 1
      %p129 = scmp.eq.s32.totalorder %s23, 1
      %p130 = scmp.ne.s32.totalorder %s125, %s127
      %p131 = scmp.eq.s32.totalorder %s23, 0
      %p132 = por %p130, %p131
      %p133 = scmp.ne.s32.totalorder %s125, %s127
      %p134 = scmp.eq.s32.totalorder %s28, 1
      %p135 = por %p133, %p134
      %p136 = scmp.ne.s32.totalorder %s127, %s128
      %p137 = scmp.eq.s32.totalorder %s28, 0
      %p138 = por %p136, %p137
      %p139 = scmp.ne.s32.totalorder %s127, %s128
      %p140 = scmp.eq.s32.totalorder %s29, 1
      %p141 = por %p139, %p140
      %p143 = scmp.ne.s32.totalorder %s128, %s142
      %p144 = scmp.eq.s32.totalorder %s29, 0
      %p145 = por %p143, %p144
      %s147 = sadd.s32 %s146, 1
      %p150 = scmp.eq.s32.totalorder %s23, 1
      %p151 = scmp.ne.s32.totalorder %s146, %s148
      %p152 = scmp.eq.s32.totalorder %s23, 0
      %p153 = por %p151, %p152
      %p154 = scmp.ne.s32.totalorder %s146, %s148
      %p155 = scmp.eq.s32.totalorder %s28, 1
      %p156 = por %p154, %p155
      %p157 = scmp.ne.s32.totalorder %s148, %s149
      %p158 = scmp.eq.s32.totalorder %s28, 0
      %p159 = por %p157, %p158
      %p160 = scmp.ne.s32.totalorder %s148, %s149
      %p161 = scmp.eq.s32.totalorder %s29, 1
      %p162 = por %p160, %p161
      %p164 = scmp.ne.s32.totalorder %s149, %s163
      %p165 = scmp.eq.s32.totalorder %s29, 0
      %p166 = por %p164, %p165
      %s168 = sadd.s32 %s167, 1
      %p171 = scmp.eq.s32.totalorder %s23, 1
      %p172 = scmp.ne.s32.totalorder %s167, %s169
      %p173 = scmp.eq.s32.totalorder %s23, 0
      %p174 = por %p172, %p173
      %p175 = scmp.ne.s32.totalorder %s167, %s169
      %p176 = scmp.eq.s32.totalorder %s28, 1
      %p177 = por %p175, %p176
      %p178 = scmp.ne.s32.totalorder %s169, %s170
      %p179 = scmp.eq.s32.totalorder %s28, 0
      %p180 = por %p178, %p179
      %p181 = scmp.ne.s32.totalorder %s169, %s170
      %p182 = scmp.eq.s32.totalorder %s29, 1
      %p183 = por %p181, %p182
      %p185 = scmp.ne.s32.totalorder %s170, %s184
      %p186 = scmp.eq.s32.totalorder %s29, 0
      %p187 = por %p185, %p186
      %s189 = sadd.s32 %s188, 1
      %p192 = scmp.eq.s32.totalorder %s23, 1
      %p193 = scmp.ne.s32.totalorder %s188, %s190
      %p194 = scmp.eq.s32.totalorder %s23, 0
      %p195 = por %p193, %p194
      %p196 = scmp.ne.s32.totalorder %s188, %s190
      %p197 = scmp.eq.s32.totalorder %s28, 1
      %p198 = por %p196, %p197
      %p199 = scmp.ne.s32.totalorder %s190, %s191
      %p200 = scmp.eq.s32.totalorder %s28, 0
      %p201 = por %p199, %p200
      %p202 = scmp.ne.s32.totalorder %s190, %s191
      %p203 = scmp.eq.s32.totalorder %s29, 1
      %p204 = por %p202, %p203
      %p206 = scmp.ne.s32.totalorder %s191, %s205
      %p207 = scmp.eq.s32.totalorder %s29, 0
      %p208 = por %p206, %p207
      %s210 = sadd.s32 %s209, 1
      %p213 = scmp.eq.s32.totalorder %s23, 1
      %p214 = scmp.ne.s32.totalorder %s209, %s211
      %p215 = scmp.eq.s32.totalorder %s23, 0
      %p216 = por %p214, %p215
      %p217 = scmp.ne.s32.totalorder %s209, %s211
      %p218 = scmp.eq.s32.totalorder %s28, 1
      %p219 = por %p217, %p218
      %p220 = scmp.ne.s32.totalorder %s211, %s212
      %p221 = scmp.eq.s32.totalorder %s28, 0
      %p222 = por %p220, %p221
      %p223 = scmp.ne.s32.totalorder %s211, %s212
      %p224 = scmp.eq.s32.totalorder %s29, 1
      %p225 = por %p223, %p224
      %p227 = scmp.ne.s32.totalorder %s212, %s226
      %p228 = scmp.eq.s32.totalorder %s29, 0
      %p229 = por %p227, %p228
      %s231 = sadd.s32 %s230, 1
      %p234 = scmp.eq.s32.totalorder %s23, 1
      %p235 = scmp.ne.s32.totalorder %s230, %s232
      %p236 = scmp.eq.s32.totalorder %s23, 0
      %p237 = por %p235, %p236
      %p238 = scmp.ne.s32.totalorder %s230, %s232
      %p239 = scmp.eq.s32.totalorder %s28, 1
      %p240 = por %p238, %p239
      %p241 = scmp.ne.s32.totalorder %s232, %s233
      %p242 = scmp.eq.s32.totalorder %s28, 0
      %p243 = por %p241, %p242
      %p244 = scmp.ne.s32.totalorder %s232, %s233
      %p245 = scmp.eq.s32.totalorder %s29, 1
      %p246 = por %p244, %p245
      %p248 = scmp.ne.s32.totalorder %s233, %s247
      %p249 = scmp.eq.s32.totalorder %s29, 0
      %p250 = por %p248, %p249
      %s252 = sadd.s32 %s251, 1
      %p255 = scmp.eq.s32.totalorder %s23, 1
      %p256 = scmp.ne.s32.totalorder %s251, %s253
      %p257 = scmp.eq.s32.totalorder %s23, 0
      %p258 = por %p256, %p257
      %p259 = scmp.ne.s32.totalorder %s251, %s253
      %p260 = scmp.eq.s32.totalorder %s28, 1
      %p261 = por %p259, %p260
      %p262 = scmp.ne.s32.totalorder %s253, %s254
      %p263 = scmp.eq.s32.totalorder %s28, 0
      %p264 = por %p262, %p263
      %p265 = scmp.ne.s32.totalorder %s253, %s254
      %p266 = scmp.eq.s32.totalorder %s29, 1
      %p267 = por %p265, %p266
      %p269 = scmp.ne.s32.totalorder %s254, %s268
      %p270 = scmp.eq.s32.totalorder %s29, 0
      %p271 = por %p269, %p270
      %s273 = sadd.s32 %s272, 1
      %p276 = scmp.eq.s32.totalorder %s23, 1
      %p277 = scmp.ne.s32.totalorder %s272, %s274
      %p278 = scmp.eq.s32.totalorder %s23, 0
      %p279 = por %p277, %p278
      %p280 = scmp.ne.s32.totalorder %s272, %s274
      %p281 = scmp.eq.s32.totalorder %s28, 1
      %p282 = por %p280, %p281
      %p283 = scmp.ne.s32.totalorder %s274, %s275
      %p284 = scmp.eq.s32.totalorder %s28, 0
      %p285 = por %p283, %p284
      %p286 = scmp.ne.s32.totalorder %s274, %s275
      %p287 = scmp.eq.s32.totalorder %s29, 1
      %p288 = por %p286, %p287
      %p290 = scmp.ne.s32.totalorder %s275, %s289
      %p291 = scmp.eq.s32.totalorder %s29, 0
      %p292 = por %p290, %p291
      %s294 = sadd.s32 %s293, 1
      %p297 = scmp.eq.s32.totalorder %s23, 1
      %p298 = scmp.ne.s32.totalorder %s293, %s295
      %p299 = scmp.eq.s32.totalorder %s23, 0
      %p300 = por %p298, %p299
      %p301 = scmp.ne.s32.totalorder %s293, %s295
      %p302 = scmp.eq.s32.totalorder %s28, 1
      %p303 = por %p301, %p302
      %p304 = scmp.ne.s32.totalorder %s295, %s296
      %p305 = scmp.eq.s32.totalorder %s28, 0
      %p306 = por %p304, %p305
      %p307 = scmp.ne.s32.totalorder %s295, %s296
      %p308 = scmp.eq.s32.totalorder %s29, 1
      %p309 = por %p307, %p308
      %p311 = scmp.ne.s32.totalorder %s296, %s310
      %p312 = scmp.eq.s32.totalorder %s29, 0
      %p313 = por %p311, %p312
      %s315 = sadd.s32 %s314, 1
      %p318 = scmp.eq.s32.totalorder %s23, 1
      %p319 = scmp.ne.s32.totalorder %s314, %s316
      %p320 = scmp.eq.s32.totalorder %s23, 0
      %p321 = por %p319, %p320
      %p322 = scmp.ne.s32.totalorder %s314, %s316
      %p323 = scmp.eq.s32.totalorder %s28, 1
      %p324 = por %p322, %p323
      %p325 = scmp.ne.s32.totalorder %s316, %s317
      %p326 = scmp.eq.s32.totalorder %s28, 0
      %p327 = por %p325, %p326
      %p328 = scmp.ne.s32.totalorder %s316, %s317
      %p329 = scmp.eq.s32.totalorder %s29, 1
      %p330 = por %p328, %p329
      %p332 = scmp.ne.s32.totalorder %s317, %s331
      %p333 = scmp.eq.s32.totalorder %s29, 0
      %p334 = por %p332, %p333
      %s335 = ssub.s32 %s23, %s30
      %p336 = scmp.eq.s32.totalorder %s335, 0
      %s338 = sadd.s32 %s337, 1
      %s339 = scalar_select %p336, %s337, %s338
      %p342 = pneg %p336
      %p343 = scmp.eq.s32.totalorder %s23, 1
      %p344 = por %p342, %p343
      %p345 = scmp.ne.s32.totalorder %s337, %s340
      %p346 = scmp.eq.s32.totalorder %s23, 0
      %p347 = por %p345, %p346
      %p348 = scmp.ne.s32.totalorder %s337, %s340
      %p349 = scmp.eq.s32.totalorder %s28, 1
      %p350 = por %p348, %p349
      %p351 = scmp.ne.s32.totalorder %s340, %s341
      %p352 = scmp.eq.s32.totalorder %s28, 0
      %p353 = por %p351, %p352
      %p354 = scmp.ne.s32.totalorder %s340, %s341
      %p355 = scmp.eq.s32.totalorder %s29, 1
      %p356 = por %p354, %p355
      %p358 = scmp.ne.s32.totalorder %s341, %s357
      %p359 = scmp.eq.s32.totalorder %s29, 0
      %p360 = por %p358, %p359
      %p361 = scmp.le.s32.totalorder 1, %s23
      %p362 = scmp.lt.s32.totalorder %s23, 3
      %p363 = pnand %p361, %p362
      %p364 = pneg %p363
      // Predicated region
      $region9: #{decoder_forward.1} parent=5 // pred_check
        _
      $region10: #{decoder_forward.1} parent=5 // pred_check_branch
        %366 = sbr.rel (%p363) target = $region12
      $region11: #{decoder_forward.1} parent=5 // pred_region
        %s367 = ssub.s32 %s23, 1
        // Predicated region
        $region13: #{decoder_forward.1} parent=11 // pred_check
          %p368 = pneg %p96
        $region14: #{decoder_forward.1} parent=11 // pred_check_branch
          %370 = sbr.rel (%p368) target = $region16
        $region15: #{decoder_forward.1} parent=11 // pred_region
          _
        $region16: #{decoder_forward.1} parent=11 // pred_fallthru
          _
        // Predicated region
        $region17: #{decoder_forward.1} parent=11 // pred_check
          %p371 = pneg %p117
        $region18: #{decoder_forward.1} parent=11 // pred_check_branch
          %373 = sbr.rel (%p371) target = $region20
        $region19: #{decoder_forward.1} parent=11 // pred_region
          _
        $region20: #{decoder_forward.1} parent=11 // pred_fallthru
          _
        // Predicated region
        $region21: #{decoder_forward.1} parent=11 // pred_check
          %p374 = pneg %p138
        $region22: #{decoder_forward.1} parent=11 // pred_check_branch
          %376 = sbr.rel (%p374) target = $region24
        $region23: #{decoder_forward.1} parent=11 // pred_region
          _
        $region24: #{decoder_forward.1} parent=11 // pred_fallthru
          _
        // Predicated region
        $region25: #{decoder_forward.1} parent=11 // pred_check
          %p377 = pneg %p159
        $region26: #{decoder_forward.1} parent=11 // pred_check_branch
          %379 = sbr.rel (%p377) target = $region28
        $region27: #{decoder_forward.1} parent=11 // pred_region
          _
        $region28: #{decoder_forward.1} parent=11 // pred_fallthru
          _
        // Predicated region
        $region29: #{decoder_forward.1} parent=11 // pred_check
          %p380 = pneg %p180
        $region30: #{decoder_forward.1} parent=11 // pred_check_branch
          %382 = sbr.rel (%p380) target = $region32
        $region31: #{decoder_forward.1} parent=11 // pred_region
          _
        $region32: #{decoder_forward.1} parent=11 // pred_fallthru
          _
        // Predicated region
        $region33: #{decoder_forward.1} parent=11 // pred_check
          %p383 = pneg %p201
        $region34: #{decoder_forward.1} parent=11 // pred_check_branch
          %385 = sbr.rel (%p383) target = $region36
        $region35: #{decoder_forward.1} parent=11 // pred_region
          _
        $region36: #{decoder_forward.1} parent=11 // pred_fallthru
          _
        // Predicated region
        $region37: #{decoder_forward.1} parent=11 // pred_check
          %p386 = pneg %p222
        $region38: #{decoder_forward.1} parent=11 // pred_check_branch
          %388 = sbr.rel (%p386) target = $region40
        $region39: #{decoder_forward.1} parent=11 // pred_region
          _
        $region40: #{decoder_forward.1} parent=11 // pred_fallthru
          _
        // Predicated region
        $region41: #{decoder_forward.1} parent=11 // pred_check
          %p389 = pneg %p243
        $region42: #{decoder_forward.1} parent=11 // pred_check_branch
          %391 = sbr.rel (%p389) target = $region44
        $region43: #{decoder_forward.1} parent=11 // pred_region
          _
        $region44: #{decoder_forward.1} parent=11 // pred_fallthru
          _
        // Predicated region
        $region45: #{decoder_forward.1} parent=11 // pred_check
          %p392 = pneg %p264
        $region46: #{decoder_forward.1} parent=11 // pred_check_branch
          %394 = sbr.rel (%p392) target = $region48
        $region47: #{decoder_forward.1} parent=11 // pred_region
          _
        $region48: #{decoder_forward.1} parent=11 // pred_fallthru
          _
        // Predicated region
        $region49: #{decoder_forward.1} parent=11 // pred_check
          %p395 = pneg %p285
        $region50: #{decoder_forward.1} parent=11 // pred_check_branch
          %397 = sbr.rel (%p395) target = $region52
        $region51: #{decoder_forward.1} parent=11 // pred_region
          _
        $region52: #{decoder_forward.1} parent=11 // pred_fallthru
          _
        // Predicated region
        $region53: #{decoder_forward.1} parent=11 // pred_check
          %p398 = pneg %p306
        $region54: #{decoder_forward.1} parent=11 // pred_check_branch
          %400 = sbr.rel (%p398) target = $region56
        $region55: #{decoder_forward.1} parent=11 // pred_region
          _
        $region56: #{decoder_forward.1} parent=11 // pred_fallthru
          _
        // Predicated region
        $region57: #{decoder_forward.1} parent=11 // pred_check
          %p401 = pneg %p327
        $region58: #{decoder_forward.1} parent=11 // pred_check_branch
          %403 = sbr.rel (%p401) target = $region60
        $region59: #{decoder_forward.1} parent=11 // pred_region
          _
        $region60: #{decoder_forward.1} parent=11 // pred_fallthru
          _
      $region12: #{decoder_forward.1} parent=5 // pred_fallthru
        _
      %p404 = scmp.lt.s32.totalorder %s23, 2
      // Predicated region
      $region61: #{decoder_forward.1} parent=5 // pred_check
        %p405 = pneg %p404
      $region62: #{decoder_forward.1} parent=5 // pred_check_branch
        %407 = sbr.rel (%p405) target = $region64
      $region63: #{decoder_forward.1} parent=5 // pred_region
        // Predicated region
        $region65: #{decoder_forward.1} parent=63 // pred_check
          %p408 = pneg %p43
        $region66: #{decoder_forward.1} parent=63 // pred_check_branch
          %410 = sbr.rel (%p408) target = $region68
        $region67: #{decoder_forward.1} parent=63 // pred_region
          %p411 = scmp.lt.s32.totalorder %s23, 1
          %s412 = scalar_select %p411, %s23, 1
          %s413 = smul.addr %s412, 2
          %s414 = smul.addr %s413, 8
          %s415 = scalar_lea.vmem %s0, %s414
        $region68: #{decoder_forward.1} parent=63 // pred_fallthru
          _
        // Predicated region
        $region69: #{decoder_forward.1} parent=63 // pred_check
          %p416 = pneg %p69
        $region70: #{decoder_forward.1} parent=63 // pred_check_branch
          %418 = sbr.rel (%p416) target = $region72
        $region71: #{decoder_forward.1} parent=63 // pred_region
          %p419 = scmp.lt.s32.totalorder %s23, 1
          %s420 = scalar_select %p419, %s23, 1
          %s421 = smul.addr %s420, 4
          %s422 = smul.addr %s421, 8
          %s423 = scalar_lea.vmem %s1, %s422
        $region72: #{decoder_forward.1} parent=63 // pred_fallthru
          _
      $region64: #{decoder_forward.1} parent=5 // pred_fallthru
        _
      %p424 = scmp.le.s32.totalorder 1, %s23
      %p425 = scmp.lt.s32.totalorder %s23, 3
      %p426 = pnand %p424, %p425
      %p427 = pneg %p426
      // Predicated region
      $region73: #{decoder_forward.1} parent=5 // pred_check
        _
      $region74: #{decoder_forward.1} parent=5 // pred_check_branch
        %429 = sbr.rel (%p426) target = $region76
      $region75: #{decoder_forward.1} parent=5 // pred_region
        %s430 = ssub.s32 %s23, 1
        %p431 = scmp.lt.s32.totalorder %s28, 1
        %s432 = scalar_select %p431, %s28, 1
        %s433 = smul.addr %s432, 2
        %s434 = smul.addr %s433, 8
        %s435 = scalar_lea.vmem %s0, %s434
        %p436 = pneg %p49
        %p437 = pneg %p46
        %p438 = scmp.lt.s32.totalorder %s28, 1
        %s439 = scalar_select %p438, %s28, 1
        %s440 = smul.addr %s439, 4
        %s441 = smul.addr %s440, 8
        %s442 = scalar_lea.vmem %s1, %s441
        %p443 = pneg %p75
        %p444 = pneg %p72
        %p445 = pneg %p96
        %p446 = pneg %p93
        %p447 = pneg %p117
        %p448 = pneg %p114
        %p449 = pneg %p138
        %p450 = pneg %p135
        %p451 = pneg %p159
        %p452 = pneg %p156
        %p453 = pneg %p180
        %p454 = pneg %p177
        %p455 = pneg %p201
        %p456 = pneg %p198
        %p457 = pneg %p222
        %p458 = pneg %p219
        %p459 = pneg %p243
        %p460 = pneg %p240
        %p461 = pneg %p264
        %p462 = pneg %p261
        %p463 = pneg %p285
        %p464 = pneg %p282
        %p465 = pneg %p306
        %p466 = pneg %p303
        %p467 = pneg %p327
        %p468 = pneg %p324
        %p469 = pneg %p353
        %p470 = pneg %p350
        %s471 = sand.u32 %s340, 1
        %s472 = scalar_lea.sflag [#allocation3], %s471
        %s473 = sand.u32 %s340, 1
        %s474 = smul.addr %s473, 8
        %s475 = scalar_lea.vmem [#allocation2], %s474
        %p476 = scmp.lt.s32.totalorder %s28, 1
        %s477 = scalar_select %p476, %s28, 1
        %s478 = smul.addr %s477, 2
        %s479 = smul.addr %s478, 8
        %s480 = scalar_lea.vmem %s0, %s479
        %p481 = scmp.lt.s32.totalorder %s28, 1
        %s482 = scalar_select %p481, %s28, 1
        %s483 = smul.addr %s482, 4
        %s484 = smul.addr %s483, 8
        %s485 = scalar_lea.vmem %s1, %s484
        %v486 = vlaneseq
        %v487 = vand.u32 %v486, 127
        %v488 = vld [vmem:[%s480] sm:$0xff]
        %v489 = vld [vmem:[%s480 + $0x8] sm:$0xff]
        %v490 = vld [vmem:[%s2] sm:$0xff]
        %v491 = vld [vmem:[%s2 + $0x8] sm:$0xff]
        %v492 = vld [vmem:[%s2 + $0x10] sm:$0xff]
        %v493 = vld [vmem:[%s2 + $0x18] sm:$0xff]
        %v494 = vld [vmem:[%s3] sm:$0xff]
        %v495 = vld [vmem:[%s3 + $0x8] sm:$0xff]
        %v496 = vld [vmem:[%s3 + $0x10] sm:$0xff]
        %v497 = vld [vmem:[%s3 + $0x18] sm:$0xff]
        %499 = vset.pattern.permute.xlu0 0
        %500 = vperm.xlu0 %499, %v494
        %v501 = vpop.permute.xlu0 %500
        %504 = vset.pattern.permute.xlu0 0
        %505 = vperm.xlu0 %504, %v495
        %v506 = vpop.permute.xlu0 %505
        %509 = vset.pattern.permute.xlu0 0
        %510 = vperm.xlu0 %509, %v496
        %v511 = vpop.permute.xlu0 %510
        %514 = vset.pattern.permute.xlu0 0
        %515 = vperm.xlu0 %514, %v497
        %v516 = vpop.permute.xlu0 %515
        %vm518 = vcmask 130048
        %v520 = vsel %vm518, %v490, 0
        %v523 = vsel %vm518, %v491, 0
        %v526 = vsel %vm518, %v492, 0
        %v529 = vsel %vm518, %v493, 0
        %531 = vmatprep.subr.mxu0 0.0
        %532 = vmatpush1.msra.mxu0 %v488
        %533 = vmatprep.subr.mxu0 0.0
        %534 = vmatpush1.msra.mxu0 %v489
        %535 = vmatprep.subr.mxu0 0.0
        %536 = vmatpush1.msra.mxu0 0.0
        %537 = vmatprep.subr.mxu0 0.0
        %538 = vmatpush1.msra.mxu0 0.0
        %539 = vmatprep.subr.mxu0 0.0
        %540 = vmatpush1.msra.mxu0 0.0
        %541 = vmatprep.subr.mxu0 0.0
        %542 = vmatpush1.msra.mxu0 0.0
        %543 = vmatprep.subr.mxu0 0.0
        %544 = vmatpush1.msra.mxu0 0.0
        %545 = vmatprep.subr.mxu0 0.0
        %546 = vmatpush1.msra.mxu0 0.0
        %547 = vmatprep.subr.mxu0 0.0
        %548 = vmatpush1.msra.mxu0 0.0
        %549 = vmatprep.subr.mxu0 0.0
        %550 = vmatpush1.msra.mxu0 0.0
        %551 = vmatprep.subr.mxu0 0.0
        %552 = vmatpush1.msra.mxu0 0.0
        %553 = vmatprep.subr.mxu0 0.0
        %554 = vmatpush1.msra.mxu0 0.0
        %555 = vmatprep.subr.mxu0 0.0
        %556 = vmatpush1.msra.mxu0 0.0
        %557 = vmatprep.subr.mxu0 0.0
        %558 = vmatpush1.msra.mxu0 0.0
        %559 = vmatprep.subr.mxu0 0.0
        %560 = vmatpush1.msra.mxu0 0.0
        %561 = vmatprep.subr.mxu0 0.0
        %562 = vmatpush1.msra.mxu0 0.0
        %563 = vmatprep.subr.mxu0 0.0
        %564 = vmatpush1.msra.mxu0 0.0
        %565 = vmatprep.subr.mxu0 0.0
        %566 = vmatpush1.msra.mxu0 0.0
        %567 = vmatprep.subr.mxu0 0.0
        %568 = vmatpush1.msra.mxu0 0.0
        %569 = vmatprep.subr.mxu0 0.0
        %570 = vmatpush1.msra.mxu0 0.0
        %571 = vmatprep.subr.mxu0 0.0
        %572 = vmatpush1.msra.mxu0 0.0
        %573 = vmatprep.subr.mxu0 0.0
        %574 = vmatpush1.msra.mxu0 0.0
        %575 = vmatprep.subr.mxu0 0.0
        %576 = vmatpush1.msra.mxu0 0.0
        %577 = vmatprep.subr.mxu0 0.0
        %578 = vmatpush1.msra.mxu0 0.0
        %579 = vmatprep.subr.mxu0 0.0
        %580 = vmatpush1.msra.mxu0 0.0
        %581 = vmatprep.subr.mxu0 0.0
        %582 = vmatpush1.msra.mxu0 0.0
        %583 = vmatprep.subr.mxu0 0.0
        %584 = vmatpush1.msra.mxu0 0.0
        %585 = vmatprep.subr.mxu0 0.0
        %586 = vmatpush1.msra.mxu0 0.0
        %587 = vmatprep.subr.mxu0 0.0
        %588 = vmatpush1.msra.mxu0 0.0
        %589 = vmatprep.subr.mxu0 0.0
        %590 = vmatpush1.msra.mxu0 0.0
        %591 = vmatprep.subr.mxu0 0.0
        %592 = vmatpush1.msra.mxu0 0.0
        %593 = vmatprep.subr.mxu0 0.0
        %594 = vmatpush1.msra.mxu0 0.0
        %595 = vmatprep.mubr.f32.mxu0 0.0
        %596 = vmatmul.mubr.f32.gmra.mrb[0].mxu0 %v520
        %v597 = vpop.f32.mrb[0].mxu0
        %v598 = vadd.f32 %v501, %v597
        %v599 = vpop.f32.mrb[0].mxu0
        %600 = vmatprep.mubr.f32.mxu0 0.0
        %601 = vmatmul.mubr.f32.gmra.mrb[0].mxu0 %v523
        %v602 = vpop.f32.mrb[0].mxu0
        %v603 = vadd.f32 %v506, %v602
        %v604 = vpop.f32.mrb[0].mxu0
        %605 = vmatprep.mubr.f32.mxu0 0.0
        %606 = vmatmul.mubr.f32.gmra.mrb[0].mxu0 %v526
        %v607 = vpop.f32.mrb[0].mxu0
        %v608 = vadd.f32 %v511, %v607
        %v609 = vpop.f32.mrb[0].mxu0
        %610 = vmatprep.mubr.f32.mxu0 0.0
        %611 = vmatmul.mubr.f32.gmra.mrb[0].mxu0 %v529
        %v612 = vpop.f32.mrb[0].mxu0
        %v613 = vadd.f32 %v516, %v612
        %v614 = vpop.f32.mrb[0].mxu0
        %615 = vdwg.mxu0
        %v616 = vld [vmem:[%s485] sm:$0xff]
        %v617 = vld [vmem:[%s485 + $0x8] sm:$0xff]
        %v618 = vld [vmem:[%s485 + $0x10] sm:$0xff]
        %v619 = vld [vmem:[%s485 + $0x18] sm:$0xff]
        %621 = vset.pattern.permute.xlu0 0
        %622 = vperm.xlu0 %621, %v616
        %v623 = vpop.permute.xlu0 %622
        %626 = vset.pattern.permute.xlu0 0
        %627 = vperm.xlu0 %626, %v617
        %v628 = vpop.permute.xlu0 %627
        %631 = vset.pattern.permute.xlu0 0
        %632 = vperm.xlu0 %631, %v618
        %v633 = vpop.permute.xlu0 %632
        %636 = vset.pattern.permute.xlu0 0
        %637 = vperm.xlu0 %636, %v619
        %v638 = vpop.permute.xlu0 %637
        %v640 = vadd.f32 %v598, %v623
        %v641 = vadd.f32 %v603, %v628
        %v642 = vadd.f32 %v608, %v633
        %v643 = vadd.f32 %v613, %v638
        %v644 = vld [vmem:[%s4] sm:$0xff]
        %v645 = vld [vmem:[%s4 + $0x8] sm:$0xff]
        %v646 = vld [vmem:[%s4 + $0x10] sm:$0xff]
        %v647 = vld [vmem:[%s4 + $0x18] sm:$0xff]
        %v648 = vld [vmem:[%s4 + $0x20] sm:$0xff]
        %v649 = vld [vmem:[%s4 + $0x28] sm:$0xff]
        %v650 = vld [vmem:[%s4 + $0x30] sm:$0xff]
        %v651 = vld [vmem:[%s4 + $0x38] sm:$0xff]
        %v652 = vld [vmem:[%s4 + $0x40] sm:$0xff]
        %v653 = vld [vmem:[%s4 + $0x48] sm:$0xff]
        %v654 = vld [vmem:[%s4 + $0x50] sm:$0xff]
        %v655 = vld [vmem:[%s4 + $0x58] sm:$0xff]
        %v656 = vld [vmem:[%s5] sm:$0xff]
        %v657 = vld [vmem:[%s5 + $0x8] sm:$0xff]
        %v658 = vld [vmem:[%s5 + $0x10] sm:$0xff]
        %v659 = vld [vmem:[%s5 + $0x18] sm:$0xff]
        %v660 = vld [vmem:[%s6] sm:$0xff]
        %v661 = vld [vmem:[%s6 + $0x8] sm:$0xff]
        %v662 = vld [vmem:[%s6 + $0x10] sm:$0xff]
        %v663 = vld [vmem:[%s6 + $0x18] sm:$0xff]
        %v664 = vld [vmem:[%s6 + $0x20] sm:$0xff]
        %v665 = vld [vmem:[%s6 + $0x28] sm:$0xff]
        %v666 = vld [vmem:[%s6 + $0x30] sm:$0xff]
        %v667 = vld [vmem:[%s6 + $0x38] sm:$0xff]
        %v668 = vld [vmem:[%s6 + $0x40] sm:$0xff]
        %v669 = vld [vmem:[%s6 + $0x48] sm:$0xff]
        %v670 = vld [vmem:[%s6 + $0x50] sm:$0xff]
        %v671 = vld [vmem:[%s6 + $0x58] sm:$0xff]
        %v672 = vld [vmem:[%s7] sm:$0xff]
        %v673 = vld [vmem:[%s7 + $0x8] sm:$0xff]
        %v674 = vld [vmem:[%s7 + $0x10] sm:$0xff]
        %v675 = vld [vmem:[%s7 + $0x18] sm:$0xff]
        %v676 = vld [vmem:[%s7 + $0x20] sm:$0xff]
        %v677 = vld [vmem:[%s7 + $0x28] sm:$0xff]
        %v678 = vld [vmem:[%s7 + $0x30] sm:$0xff]
        %v679 = vld [vmem:[%s7 + $0x38] sm:$0xff]
        %v680 = vld [vmem:[%s7 + $0x40] sm:$0xff]
        %v681 = vld [vmem:[%s7 + $0x48] sm:$0xff]
        %v682 = vld [vmem:[%s7 + $0x50] sm:$0xff]
        %v683 = vld [vmem:[%s7 + $0x58] sm:$0xff]
        %v684 = vld [vmem:[%s8] sm:$0xff]
        %v685 = vld [vmem:[%s8 + $0x8] sm:$0xff]
        %v686 = vld [vmem:[%s8 + $0x10] sm:$0xff]
        %v687 = vld [vmem:[%s8 + $0x18] sm:$0xff]
        %v688 = vld [vmem:[%s9] sm:$0xff]
        %v689 = vld [vmem:[%s9 + $0x8] sm:$0xff]
        %v690 = vld [vmem:[%s9 + $0x10] sm:$0xff]
        %v691 = vld [vmem:[%s9 + $0x18] sm:$0xff]
        %v692 = vld [vmem:[%s10] sm:$0xff]
        %v693 = vld [vmem:[%s10 + $0x8] sm:$0xff]
        %v694 = vld [vmem:[%s10 + $0x10] sm:$0xff]
        %v695 = vld [vmem:[%s10 + $0x18] sm:$0xff]
        %v696 = vld [vmem:[%s11] sm:$0xff]
        %v697 = vld [vmem:[%s11 + $0x8] sm:$0xff]
        %v698 = vld [vmem:[%s11 + $0x10] sm:$0xff]
        %v699 = vld [vmem:[%s11 + $0x18] sm:$0xff]
        %701 = vset.pattern.permute.xlu0 0
        %702 = vperm.xlu0 %701, %v672
        %v703 = vpop.permute.xlu0 %702
        %706 = vset.pattern.permute.xlu0 0
        %707 = vperm.xlu0 %706, %v673
        %v708 = vpop.permute.xlu0 %707
        %711 = vset.pattern.permute.xlu0 0
        %712 = vperm.xlu0 %711, %v674
        %v713 = vpop.permute.xlu0 %712
        %716 = vset.pattern.permute.xlu0 0
        %717 = vperm.xlu0 %716, %v675
        %v718 = vpop.permute.xlu0 %717
        %721 = vset.pattern.permute.xlu0 0
        %722 = vperm.xlu0 %721, %v676
        %v723 = vpop.permute.xlu0 %722
        %726 = vset.pattern.permute.xlu0 0
        %727 = vperm.xlu0 %726, %v677
        %v728 = vpop.permute.xlu0 %727
        %731 = vset.pattern.permute.xlu0 0
        %732 = vperm.xlu0 %731, %v678
        %v733 = vpop.permute.xlu0 %732
        %736 = vset.pattern.permute.xlu0 0
        %737 = vperm.xlu0 %736, %v679
        %v738 = vpop.permute.xlu0 %737
        %741 = vset.pattern.permute.xlu0 0
        %742 = vperm.xlu0 %741, %v680
        %v743 = vpop.permute.xlu0 %742
        %746 = vset.pattern.permute.xlu0 0
        %747 = vperm.xlu0 %746, %v681
        %v748 = vpop.permute.xlu0 %747
        %751 = vset.pattern.permute.xlu0 0
        %752 = vperm.xlu0 %751, %v682
        %v753 = vpop.permute.xlu0 %752
        %756 = vset.pattern.permute.xlu0 0
        %757 = vperm.xlu0 %756, %v683
        %v758 = vpop.permute.xlu0 %757
        %vm760 = vcmask 261120
        %v762 = vsel %vm760, %v660, 0
        %v765 = vsel %vm760, %v661, 0
        %v768 = vsel %vm760, %v662, 0
        %v771 = vsel %vm760, %v663, 0
        %v774 = vsel %vm760, %v664, 0
        %v777 = vsel %vm760, %v665, 0
        %v780 = vsel %vm760, %v666, 0
        %v783 = vsel %vm760, %v667, 0
        %v786 = vsel %vm760, %v668, 0
        %v789 = vsel %vm760, %v669, 0
        %v792 = vsel %vm760, %v670, 0
        %v795 = vsel %vm760, %v671, 0
        %797 = vmatprep.subr.mxu0 0.0
        %798 = vmatpush1.msra.mxu0 %v640
        %799 = vmatprep.subr.mxu0 0.0
        %800 = vmatpush1.msra.mxu0 %v641
        %801 = vmatprep.subr.mxu0 0.0
        %802 = vmatpush1.msra.mxu0 %v642
        %803 = vmatprep.subr.mxu0 0.0
        %804 = vmatpush1.msra.mxu0 %v643
        %805 = vmatprep.subr.mxu0 0.0
        %806 = vmatpush1.msra.mxu0 0.0
        %807 = vmatprep.subr.mxu0 0.0
        %808 = vmatpush1.msra.mxu0 0.0
        %809 = vmatprep.subr.mxu0 0.0
        %810 = vmatpush1.msra.mxu0 0.0
        %811 = vmatprep.subr.mxu0 0.0
        %812 = vmatpush1.msra.mxu0 0.0
        %813 = vmatprep.subr.mxu0 0.0
        %814 = vmatpush1.msra.mxu0 0.0
        %815 = vmatprep.subr.mxu0 0.0
        %816 = vmatpush1.msra.mxu0 0.0
        %817 = vmatprep.subr.mxu0 0.0
        %818 = vmatpush1.msra.mxu0 0.0
        %819 = vmatprep.subr.mxu0 0.0
        %820 = vmatpush1.msra.mxu0 0.0
        %821 = vmatprep.subr.mxu0 0.0
        %822 = vmatpush1.msra.mxu0 0.0
        %823 = vmatprep.subr.mxu0 0.0
        %824 = vmatpush1.msra.mxu0 0.0
        %825 = vmatprep.subr.mxu0 0.0
        %826 = vmatpush1.msra.mxu0 0.0
        %827 = vmatprep.subr.mxu0 0.0
        %828 = vmatpush1.msra.mxu0 0.0
        %829 = vmatprep.subr.mxu0 0.0
        %830 = vmatpush1.msra.mxu0 0.0
        %831 = vmatprep.subr.mxu0 0.0
        %832 = vmatpush1.msra.mxu0 0.0
        %833 = vmatprep.subr.mxu0 0.0
        %834 = vmatpush1.msra.mxu0 0.0
        %835 = vmatprep.subr.mxu0 0.0
        %836 = vmatpush1.msra.mxu0 0.0
        %837 = vmatprep.subr.mxu0 0.0
        %838 = vmatpush1.msra.mxu0 0.0
        %839 = vmatprep.subr.mxu0 0.0
        %840 = vmatpush1.msra.mxu0 0.0
        %841 = vmatprep.subr.mxu0 0.0
        %842 = vmatpush1.msra.mxu0 0.0
        %843 = vmatprep.subr.mxu0 0.0
        %844 = vmatpush1.msra.mxu0 0.0
        %845 = vmatprep.subr.mxu0 0.0
        %846 = vmatpush1.msra.mxu0 0.0
        %847 = vmatprep.subr.mxu0 0.0
        %848 = vmatpush1.msra.mxu0 0.0
        %849 = vmatprep.subr.mxu0 0.0
        %850 = vmatpush1.msra.mxu0 0.0
        %851 = vmatprep.subr.mxu0 0.0
        %852 = vmatpush1.msra.mxu0 0.0
        %853 = vmatprep.subr.mxu0 0.0
        %854 = vmatpush1.msra.mxu0 0.0
        %855 = vmatprep.subr.mxu0 0.0
        %856 = vmatpush1.msra.mxu0 0.0
        %857 = vmatprep.subr.mxu0 0.0
        %858 = vmatpush1.msra.mxu0 0.0
        %859 = vmatprep.subr.mxu0 0.0
        %860 = vmatpush1.msra.mxu0 0.0
        %861 = vmatprep.mubr.f32.mxu0 0.0
        %862 = vmatmul.mubr.f32.gmra.mrb[0].mxu0 %v762
        %v863 = vpop.f32.mrb[0].mxu0
        %v864 = vadd.f32 %v703, %v863
        %v865 = vpop.f32.mrb[0].mxu0
        %866 = vmatprep.mubr.f32.mxu0 0.0
        %867 = vmatmul.mubr.f32.gmra.mrb[0].mxu0 %v765
        %v868 = vpop.f32.mrb[0].mxu0
        %v869 = vadd.f32 %v708, %v868
        %v870 = vpop.f32.mrb[0].mxu0
        %871 = vmatprep.mubr.f32.mxu0 0.0
        %872 = vmatmul.mubr.f32.gmra.mrb[0].mxu0 %v768
        %v873 = vpop.f32.mrb[0].mxu0
        %v874 = vadd.f32 %v713, %v873
        %v875 = vpop.f32.mrb[0].mxu0
        %876 = vmatprep.mubr.f32.mxu0 0.0
        %877 = vmatmul.mubr.f32.gmra.mrb[0].mxu0 %v771
        %v878 = vpop.f32.mrb[0].mxu0
        %v879 = vadd.f32 %v718, %v878
        %v880 = vpop.f32.mrb[0].mxu0
        %881 = vmatprep.mubr.f32.mxu0 0.0
        %882 = vmatmul.mubr.f32.gmra.mrb[0].mxu0 %v774
        %v883 = vpop.f32.mrb[0].mxu0
        %v884 = vadd.f32 %v723, %v883
        %v885 = vpop.f32.mrb[0].mxu0
        %886 = vmatprep.mubr.f32.mxu0 0.0
        %887 = vmatmul.mubr.f32.gmra.mrb[0].mxu0 %v777
        %v888 = vpop.f32.mrb[0].mxu0
        %v889 = vadd.f32 %v728, %v888
        %v890 = vpop.f32.mrb[0].mxu0
        %891 = vmatprep.mubr.f32.mxu0 0.0
        %892 = vmatmul.mubr.f32.gmra.mrb[0].mxu0 %v780
        %v893 = vpop.f32.mrb[0].mxu0
        %v894 = vadd.f32 %v733, %v893
        %v895 = vpop.f32.mrb[0].mxu0
        %896 = vmatprep.mubr.f32.mxu0 0.0
        %897 = vmatmul.mubr.f32.gmra.mrb[0].mxu0 %v783
        %v898 = vpop.f32.mrb[0].mxu0
        %v899 = vadd.f32 %v738, %v898
        %v900 = vpop.f32.mrb[0].mxu0
        %901 = vmatprep.mubr.f32.mxu0 0.0
        %902 = vmatmul.mubr.f32.gmra.mrb[0].mxu0 %v786
        %v903 = vpop.f32.mrb[0].mxu0
        %v904 = vadd.f32 %v743, %v903
        %v905 = vpop.f32.mrb[0].mxu0
        %906 = vmatprep.mubr.f32.mxu0 0.0
        %907 = vmatmul.mubr.f32.gmra.mrb[0].mxu0 %v789
        %v908 = vpop.f32.mrb[0].mxu0
        %v909 = vadd.f32 %v748, %v908
        %v910 = vpop.f32.mrb[0].mxu0
        %911 = vmatprep.mubr.f32.mxu0 0.0
        %912 = vmatmul.mubr.f32.gmra.mrb[0].mxu0 %v792
        %v913 = vpop.f32.mrb[0].mxu0
        %v914 = vadd.f32 %v753, %v913
        %v915 = vpop.f32.mrb[0].mxu0
        %916 = vmatprep.mubr.f32.mxu0 0.0
        %917 = vmatmul.mubr.f32.gmra.mrb[0].mxu0 %v795
        %v918 = vpop.f32.mrb[0].mxu0
        %v919 = vadd.f32 %v758, %v918
        %v920 = vpop.f32.mrb[0].mxu0
        %921 = vdwg.mxu0
        %v923 = vsel %vm760, %v644, 0
        %v926 = vsel %vm760, %v645, 0
        %v929 = vsel %vm760, %v646, 0
        %v932 = vsel %vm760, %v647, 0
        %v935 = vsel %vm760, %v648, 0
        %v938 = vsel %vm760, %v649, 0
        %v941 = vsel %vm760, %v650, 0
        %v944 = vsel %vm760, %v651, 0
        %v947 = vsel %vm760, %v652, 0
        %v950 = vsel %vm760, %v653, 0
        %v953 = vsel %vm760, %v654, 0
        %v956 = vsel %vm760, %v655, 0
        %958 = vmatprep.subr.mxu0 0.0
        %959 = vmatpush1.msra.mxu0 %v640
        %960 = vmatprep.subr.mxu0 0.0
        %961 = vmatpush1.msra.mxu0 %v641
        %962 = vmatprep.subr.mxu0 0.0
        %963 = vmatpush1.msra.mxu0 %v642
        %964 = vmatprep.subr.mxu0 0.0
        %965 = vmatpush1.msra.mxu0 %v643
        %966 = vmatprep.subr.mxu0 0.0
        %967 = vmatpush1.msra.mxu0 0.0
        %968 = vmatprep.subr.mxu0 0.0
        %969 = vmatpush1.msra.mxu0 0.0
        %970 = vmatprep.subr.mxu0 0.0
        %971 = vmatpush1.msra.mxu0 0.0
        %972 = vmatprep.subr.mxu0 0.0
        %973 = vmatpush1.msra.mxu0 0.0
        %974 = vmatprep.subr.mxu0 0.0
        %975 = vmatpush1.msra.mxu0 0.0
        %976 = vmatprep.subr.mxu0 0.0
        %977 = vmatpush1.msra.mxu0 0.0
        %978 = vmatprep.subr.mxu0 0.0
        %979 = vmatpush1.msra.mxu0 0.0
        %980 = vmatprep.subr.mxu0 0.0
        %981 = vmatpush1.msra.mxu0 0.0
        %982 = vmatprep.subr.mxu0 0.0
        %983 = vmatpush1.msra.mxu0 0.0
        %984 = vmatprep.subr.mxu0 0.0
        %985 = vmatpush1.msra.mxu0 0.0
        %986 = vmatprep.subr.mxu0 0.0
        %987 = vmatpush1.msra.mxu0 0.0
        %988 = vmatprep.subr.mxu0 0.0
        %989 = vmatpush1.msra.mxu0 0.0
        %990 = vmatprep.subr.mxu0 0.0
        %991 = vmatpush1.msra.mxu0 0.0
        %992 = vmatprep.subr.mxu0 0.0
        %993 = vmatpush1.msra.mxu0 0.0
        %994 = vmatprep.subr.mxu0 0.0
        %995 = vmatpush1.msra.mxu0 0.0
        %996 = vmatprep.subr.mxu0 0.0
        %997 = vmatpush1.msra.mxu0 0.0
        %998 = vmatprep.subr.mxu0 0.0
        %999 = vmatpush1.msra.mxu0 0.0
        %1000 = vmatprep.subr.mxu0 0.0
        %1001 = vmatpush1.msra.mxu0 0.0
        %1002 = vmatprep.subr.mxu0 0.0
        %1003 = vmatpush1.msra.mxu0 0.0
        %1004 = vmatprep.subr.mxu0 0.0
        %1005 = vmatpush1.msra.mxu0 0.0
        %1006 = vmatprep.subr.mxu0 0.0
        %1007 = vmatpush1.msra.mxu0 0.0
        %1008 = vmatprep.subr.mxu0 0.0
        %1009 = vmatpush1.msra.mxu0 0.0
        %1010 = vmatprep.subr.mxu0 0.0
        %1011 = vmatpush1.msra.mxu0 0.0
        %1012 = vmatprep.subr.mxu0 0.0
        %1013 = vmatpush1.msra.mxu0 0.0
        %1014 = vmatprep.subr.mxu0 0.0
        %1015 = vmatpush1.msra.mxu0 0.0
        %1016 = vmatprep.subr.mxu0 0.0
        %1017 = vmatpush1.msra.mxu0 0.0
        %1018 = vmatprep.subr.mxu0 0.0
        %1019 = vmatpush1.msra.mxu0 0.0
        %1020 = vmatprep.subr.mxu0 0.0
        %1021 = vmatpush1.msra.mxu0 0.0
        %1022 = vmatprep.mubr.f32.mxu0 0.0
        %1023 = vmatmul.mubr.f32.gmra.mrb[0].mxu0 %v923
        %v1024 = vpop.f32.mrb[0].mxu0
        %v1025 = vadd.f32 0.0, %v1024
        %v1026 = vpop.f32.mrb[0].mxu0
        %1027 = vmatprep.mubr.f32.mxu0 0.0
        %1028 = vmatmul.mubr.f32.gmra.mrb[0].mxu0 %v926
        %v1029 = vpop.f32.mrb[0].mxu0
        %v1030 = vadd.f32 0.0, %v1029
        %v1031 = vpop.f32.mrb[0].mxu0
        %1032 = vmatprep.mubr.f32.mxu0 0.0
        %1033 = vmatmul.mubr.f32.gmra.mrb[0].mxu0 %v929
        %v1034 = vpop.f32.mrb[0].mxu0
        %v1035 = vadd.f32 0.0, %v1034
        %v1036 = vpop.f32.mrb[0].mxu0
        %1037 = vmatprep.mubr.f32.mxu0 0.0
        %1038 = vmatmul.mubr.f32.gmra.mrb[0].mxu0 %v932
        %v1039 = vpop.f32.mrb[0].mxu0
        %v1040 = vadd.f32 0.0, %v1039
        %v1041 = vpop.f32.mrb[0].mxu0
        %1042 = vmatprep.mubr.f32.mxu0 0.0
        %1043 = vmatmul.mubr.f32.gmra.mrb[0].mxu0 %v935
        %v1044 = vpop.f32.mrb[0].mxu0
        %v1045 = vadd.f32 0.0, %v1044
        %v1046 = vpop.f32.mrb[0].mxu0
        %1047 = vmatprep.mubr.f32.mxu0 0.0
        %1048 = vmatmul.mubr.f32.gmra.mrb[0].mxu0 %v938
        %v1049 = vpop.f32.mrb[0].mxu0
        %v1050 = vadd.f32 0.0, %v1049
        %v1051 = vpop.f32.mrb[0].mxu0
        %1052 = vmatprep.mubr.f32.mxu0 0.0
        %1053 = vmatmul.mubr.f32.gmra.mrb[0].mxu0 %v941
        %v1054 = vpop.f32.mrb[0].mxu0
        %v1055 = vadd.f32 0.0, %v1054
        %v1056 = vpop.f32.mrb[0].mxu0
        %1057 = vmatprep.mubr.f32.mxu0 0.0
        %1058 = vmatmul.mubr.f32.gmra.mrb[0].mxu0 %v944
        %v1059 = vpop.f32.mrb[0].mxu0
        %v1060 = vadd.f32 0.0, %v1059
        %v1061 = vpop.f32.mrb[0].mxu0
        %1062 = vmatprep.mubr.f32.mxu0 0.0
        %1063 = vmatmul.mubr.f32.gmra.mrb[0].mxu0 %v947
        %v1064 = vpop.f32.mrb[0].mxu0
        %v1065 = vadd.f32 0.0, %v1064
        %v1066 = vpop.f32.mrb[0].mxu0
        %1067 = vmatprep.mubr.f32.mxu0 0.0
        %1068 = vmatmul.mubr.f32.gmra.mrb[0].mxu0 %v950
        %v1069 = vpop.f32.mrb[0].mxu0
        %v1070 = vadd.f32 0.0, %v1069
        %v1071 = vpop.f32.mrb[0].mxu0
        %1072 = vmatprep.mubr.f32.mxu0 0.0
        %1073 = vmatmul.mubr.f32.gmra.mrb[0].mxu0 %v953
        %v1074 = vpop.f32.mrb[0].mxu0
        %v1075 = vadd.f32 0.0, %v1074
        %v1076 = vpop.f32.mrb[0].mxu0
        %1077 = vmatprep.mubr.f32.mxu0 0.0
        %1078 = vmatmul.mubr.f32.gmra.mrb[0].mxu0 %v956
        %v1079 = vpop.f32.mrb[0].mxu0
        %v1080 = vadd.f32 0.0, %v1079
        %v1081 = vpop.f32.mrb[0].mxu0
        %1082 = vdwg.mxu0
        %1083 = vrot.lane.b32.xlu0 %v1025, 1
        %v1084 = vpop.permute.xlu0 %1083
        %1085 = vrot.lane.b32.xlu0 %v1030, 1
        %v1086 = vpop.permute.xlu0 %1085
        %1087 = vrot.lane.b32.xlu0 %v1035, 1
        %v1088 = vpop.permute.xlu0 %1087
        %1089 = vrot.lane.b32.xlu0 %v1040, 1
        %v1090 = vpop.permute.xlu0 %1089
        %1091 = vrot.lane.b32.xlu0 %v884, 1
        %v1092 = vpop.permute.xlu0 %1091
        %1093 = vrot.lane.b32.xlu0 %v889, 1
        %v1094 = vpop.permute.xlu0 %1093
        %1095 = vrot.lane.b32.xlu0 %v894, 1
        %v1096 = vpop.permute.xlu0 %1095
        %1097 = vrot.lane.b32.xlu0 %v899, 1
        %v1098 = vpop.permute.xlu0 %1097
        %v1099 = vmul.f32 %v864, %v1092
        %v1100 = vmul.f32 %v869, %v1094
        %v1101 = vmul.f32 %v874, %v1096
        %v1102 = vmul.f32 %v879, %v1098
        %v1103 = vadd.f32 %v1099, %v1100
        %v1104 = vadd.f32 %v1103, %v1101
        %v1105 = vadd.f32 %v1104, %v1102
        %v1106 = vrot.slane %v1105, 4
        %v1107 = vadd.f32 %v1105, %v1106
        %v1108 = vrot.slane %v1107, 2
        %v1109 = vadd.f32 %v1107, %v1108
        %v1110 = vrot.slane %v1109, 1
        %v1111 = vadd.f32 %v1109, %v1110
        %v1112 = vmul.f32 %v1111, 0.17677669
        %v1113 = vadd.s32 %v487, 4294967295
        %vm1114 = vcmp.ge.s32.totalorder %v1113, 0
        %vm1115 = vcmp.lt.s32.totalorder %v1113, 128
        %vm1116 = vmand %vm1114, %vm1115
        %v1117 = vsel %vm1116, 1, 0
        %v1118 = vcvt.s32.f32 %v1117
        %v1119 = vadd.f32 %v1112, 9.999995e-07
        %v1120 = vsel %vm1116, %v1119, -13.815511
        %v1121 = vmul.f32 %v1084, %v1118
        %v1122 = vmul.f32 %v1086, %v1118
        %v1123 = vmul.f32 %v1088, %v1118
        %v1124 = vmul.f32 %v1090, %v1118
        %v1125 = vmul.f32 %v864, %v884
        %v1126 = vmul.f32 %v869, %v889
        %v1127 = vmul.f32 %v874, %v894
        %v1128 = vmul.f32 %v879, %v899
        %v1129 = vadd.f32 %v1125, %v1126
        %v1130 = vadd.f32 %v1129, %v1127
        %v1131 = vadd.f32 %v1130, %v1128
        %v1132 = vrot.slane %v1131, 4
        %v1133 = vadd.f32 %v1131, %v1132
        %v1134 = vrot.slane %v1133, 2
        %v1135 = vadd.f32 %v1133, %v1134
        %v1136 = vrot.slane %v1135, 1
        %v1137 = vadd.f32 %v1135, %v1136
        %v1138 = vmul.f32 %v1137, 0.17677669
        %v1139 = vadd.f32 %v1138, 9.999995e-07
        %v1140 = vadd.f32 %v1121, %v1045
        %v1141 = vadd.f32 %v1122, %v1050
        %v1142 = vadd.f32 %v1123, %v1055
        %v1143 = vadd.f32 %v1124, %v1060
        %1144 = vrot.lane.b32.xlu0 %v1065, 127
        %v1145 = vpop.permute.xlu0 %1144
        %1146 = vrot.lane.b32.xlu0 %v1070, 127
        %v1147 = vpop.permute.xlu0 %1146
        %1148 = vrot.lane.b32.xlu0 %v1075, 127
        %v1149 = vpop.permute.xlu0 %1148
        %1150 = vrot.lane.b32.xlu0 %v1080, 127
        %v1151 = vpop.permute.xlu0 %1150
        %1152 = vrot.lane.b32.xlu0 %v884, 127
        %v1153 = vpop.permute.xlu0 %1152
        %1154 = vrot.lane.b32.xlu0 %v889, 127
        %v1155 = vpop.permute.xlu0 %1154
        %1156 = vrot.lane.b32.xlu0 %v894, 127
        %v1157 = vpop.permute.xlu0 %1156
        %1158 = vrot.lane.b32.xlu0 %v899, 127
        %v1159 = vpop.permute.xlu0 %1158
        %v1160 = vmul.f32 %v864, %v1153
        %v1161 = vmul.f32 %v869, %v1155
        %v1162 = vmul.f32 %v874, %v1157
        %v1163 = vmul.f32 %v879, %v1159
        %v1164 = vadd.f32 %v1160, %v1161
        %v1165 = vadd.f32 %v1164, %v1162
        %v1166 = vadd.f32 %v1165, %v1163
        %v1167 = vrot.slane %v1166, 4
        %v1168 = vadd.f32 %v1166, %v1167
        %v1169 = vrot.slane %v1168, 2
        %v1170 = vadd.f32 %v1168, %v1169
        %v1171 = vrot.slane %v1170, 1
        %v1172 = vadd.f32 %v1170, %v1171
        %v1173 = vmul.f32 %v1172, 0.17677669
        %v1174 = vadd.s32 %v487, 1
        %vm1175 = vcmp.ge.s32.totalorder %v1174, 0
        %vm1176 = vcmp.lt.s32.totalorder %v1174, 128
        %vm1177 = vmand %vm1175, %vm1176
        %v1178 = vsel %vm1177, 1, 0
        %v1179 = vcvt.s32.f32 %v1178
        %v1180 = vadd.f32 %v1173, 9.999995e-07
        %v1181 = vsel %vm1177, %v1180, -13.815511
        %v1182 = vmul.f32 %v1145, %v1179
        %v1183 = vmul.f32 %v1147, %v1179
        %v1184 = vmul.f32 %v1149, %v1179
        %v1185 = vmul.f32 %v1151, %v1179
        %v1186 = vadd.f32 %v1140, %v1182
        %v1187 = vadd.f32 %v1141, %v1183
        %v1188 = vadd.f32 %v1142, %v1184
        %v1189 = vadd.f32 %v1143, %v1185
        %1191 = vset.pattern.permute.xlu0 0
        %1192 = vperm.xlu0 %1191, %v656
        %v1193 = vpop.permute.xlu0 %1192
        %1196 = vset.pattern.permute.xlu0 0
        %1197 = vperm.xlu0 %1196, %v657
        %v1198 = vpop.permute.xlu0 %1197
        %1201 = vset.pattern.permute.xlu0 0
        %1202 = vperm.xlu0 %1201, %v658
        %v1203 = vpop.permute.xlu0 %1202
        %1206 = vset.pattern.permute.xlu0 0
        %1207 = vperm.xlu0 %1206, %v659
        %v1208 = vpop.permute.xlu0 %1207
        %v1210 = vadd.f32 %v1186, %v1193
        %v1211 = vadd.f32 %v1187, %v1198
        %v1212 = vadd.f32 %v1188, %v1203
        %v1213 = vadd.f32 %v1189, %v1208
        %v1214 = vmax.f32 %v1120, %v1139
        %v1215 = vmax.f32 %v1214, %v1181
        %v1216 = vsub.f32 %v1120, %v1215
        %v1217 = vmul.f32 %v1216, 1.442695
        %v1218 = vpow.pop %v1217
        %v1219 = vsub.f32 %v1139, %v1215
        %v1220 = vmul.f32 %v1219, 1.442695
        %v1221 = vpow.pop %v1220
        %v1222 = vsub.f32 %v1181, %v1215
        %v1223 = vmul.f32 %v1222, 1.442695
        %v1224 = vpow.pop %v1223
        %v1225 = vadd.f32 %v1218, %v1221
        %v1226 = vadd.f32 %v1225, %v1224
        %v1227 = vrcp.pop %v1226
        %v1228 = vmul.f32 1.0, %v1227
        %1229 = vrot.lane.b32.xlu0 %v904, 1
        %v1230 = vpop.permute.xlu0 %1229
        %1231 = vrot.lane.b32.xlu0 %v909, 1
        %v1232 = vpop.permute.xlu0 %1231
        %1233 = vrot.lane.b32.xlu0 %v914, 1
        %v1234 = vpop.permute.xlu0 %1233
        %1235 = vrot.lane.b32.xlu0 %v919, 1
        %v1236 = vpop.permute.xlu0 %1235
        %v1237 = vmul.f32 %v1218, %v1228
        %v1238 = vmul.f32 %v1237, %v1118
        %v1239 = vmul.f32 %v1238, %v1230
        %v1240 = vmul.f32 %v1238, %v1232
        %v1241 = vmul.f32 %v1238, %v1234
        %v1242 = vmul.f32 %v1238, %v1236
        %v1243 = vmul.f32 %v1221, %v1228
        %v1244 = vmul.f32 %v1243, %v904
        %v1245 = vmul.f32 %v1243, %v909
        %v1246 = vmul.f32 %v1243, %v914
        %v1247 = vmul.f32 %v1243, %v919
        %v1248 = vadd.f32 %v1239, %v1244
        %v1249 = vadd.f32 %v1240, %v1245
        %v1250 = vadd.f32 %v1241, %v1246
        %v1251 = vadd.f32 %v1242, %v1247
        %1252 = vrot.lane.b32.xlu0 %v904, 127
        %v1253 = vpop.permute.xlu0 %1252
        %1254 = vrot.lane.b32.xlu0 %v909, 127
        %v1255 = vpop.permute.xlu0 %1254
        %1256 = vrot.lane.b32.xlu0 %v914, 127
        %v1257 = vpop.permute.xlu0 %1256
        %1258 = vrot.lane.b32.xlu0 %v919, 127
        %v1259 = vpop.permute.xlu0 %1258
        %v1260 = vmul.f32 %v1224, %v1228
        %v1261 = vmul.f32 %v1260, %v1179
        %v1262 = vmul.f32 %v1261, %v1253
        %v1263 = vmul.f32 %v1261, %v1255
        %v1264 = vmul.f32 %v1261, %v1257
        %v1265 = vmul.f32 %v1261, %v1259
        %v1266 = vadd.f32 %v1248, %v1262
        %v1267 = vadd.f32 %v1249, %v1263
        %v1268 = vadd.f32 %v1250, %v1264
        %v1269 = vadd.f32 %v1251, %v1265
        %v1270 = vadd.f32 %v1210, %v1266
        %v1271 = vadd.f32 %v1211, %v1267
        %v1272 = vadd.f32 %v1212, %v1268
        %v1273 = vadd.f32 %v1213, %v1269
        %1274 = vadd.xlane.f32.xlu0 %v1270
        %v1275 = vpop.xlane.xlu0 %1274
        %1276 = vadd.xlane.f32.xlu0 %v1271
        %v1277 = vpop.xlane.xlu0 %1276
        %1278 = vadd.xlane.f32.xlu0 %v1272
        %v1279 = vpop.xlane.xlu0 %1278
        %1280 = vadd.xlane.f32.xlu0 %v1273
        %v1281 = vpop.xlane.xlu0 %1280
        %v1282 = vrcp.pop 128.0
        %v1283 = vmul.f32 %v1275, %v1282
        %v1284 = vmul.f32 %v1277, %v1282
        %v1285 = vmul.f32 %v1279, %v1282
        %v1286 = vmul.f32 %v1281, %v1282
        %v1287 = vsub.f32 %v1270, %v1283
        %v1288 = vsub.f32 %v1271, %v1284
        %v1289 = vsub.f32 %v1272, %v1285
        %v1290 = vsub.f32 %v1273, %v1286
        %v1291 = vmul.f32 %v1287, %v1287
        %v1292 = vmul.f32 %v1288, %v1288
        %v1293 = vmul.f32 %v1289, %v1289
        %v1294 = vmul.f32 %v1290, %v1290
        %1295 = vadd.xlane.f32.xlu0 %v1291
        %v1296 = vpop.xlane.xlu0 %1295
        %1297 = vadd.xlane.f32.xlu0 %v1292
        %v1298 = vpop.xlane.xlu0 %1297
        %1299 = vadd.xlane.f32.xlu0 %v1293
        %v1300 = vpop.xlane.xlu0 %1299
        %1301 = vadd.xlane.f32.xlu0 %v1294
        %v1302 = vpop.xlane.xlu0 %1301
        %v1303 = vmul.f32 %v1296, %v1282
        %v1304 = vmul.f32 %v1298, %v1282
        %v1305 = vmul.f32 %v1300, %v1282
        %v1306 = vmul.f32 %v1302, %v1282
        %v1307 = vadd.f32 %v1303, 1e-05
        %v1308 = vadd.f32 %v1304, 1e-05
        %v1309 = vadd.f32 %v1305, 1e-05
        %v1310 = vadd.f32 %v1306, 1e-05
        %v1311 = vrsqrt.pop %v1307
        %v1312 = vrsqrt.pop %v1308
        %v1313 = vrsqrt.pop %v1309
        %v1314 = vrsqrt.pop %v1310
        %v1315 = vmul.f32 %v1287, %v1311
        %v1316 = vmul.f32 %v1288, %v1312
        %v1317 = vmul.f32 %v1289, %v1313
        %v1318 = vmul.f32 %v1290, %v1314
        %1320 = vset.pattern.permute.xlu0 0
        %1321 = vperm.xlu0 %1320, %v688
        %v1322 = vpop.permute.xlu0 %1321
        %1325 = vset.pattern.permute.xlu0 0
        %1326 = vperm.xlu0 %1325, %v689
        %v1327 = vpop.permute.xlu0 %1326
        %1330 = vset.pattern.permute.xlu0 0
        %1331 = vperm.xlu0 %1330, %v690
        %v1332 = vpop.permute.xlu0 %1331
        %1335 = vset.pattern.permute.xlu0 0
        %1336 = vperm.xlu0 %1335, %v691
        %v1337 = vpop.permute.xlu0 %1336
        %v1340 = vsel %vm760, %v684, 0
        %v1343 = vsel %vm760, %v685, 0
        %v1346 = vsel %vm760, %v686, 0
        %v1349 = vsel %vm760, %v687, 0
        %1351 = vmatprep.subr.mxu0 0.0
        %1352 = vmatpush1.msra.mxu0 %v1315
        %1353 = vmatprep.subr.mxu0 0.0
        %1354 = vmatpush1.msra.mxu0 %v1316
        %1355 = vmatprep.subr.mxu0 0.0
        %1356 = vmatpush1.msra.mxu0 %v1317
        %1357 = vmatprep.subr.mxu0 0.0
        %1358 = vmatpush1.msra.mxu0 %v1318
        %1359 = vmatprep.subr.mxu0 0.0
        %1360 = vmatpush1.msra.mxu0 0.0
        %1361 = vmatprep.subr.mxu0 0.0
        %1362 = vmatpush1.msra.mxu0 0.0
        %1363 = vmatprep.subr.mxu0 0.0
        %1364 = vmatpush1.msra.mxu0 0.0
        %1365 = vmatprep.subr.mxu0 0.0
        %1366 = vmatpush1.msra.mxu0 0.0
        %1367 = vmatprep.subr.mxu0 0.0
        %1368 = vmatpush1.msra.mxu0 0.0
        %1369 = vmatprep.subr.mxu0 0.0
        %1370 = vmatpush1.msra.mxu0 0.0
        %1371 = vmatprep.subr.mxu0 0.0
        %1372 = vmatpush1.msra.mxu0 0.0
        %1373 = vmatprep.subr.mxu0 0.0
        %1374 = vmatpush1.msra.mxu0 0.0
        %1375 = vmatprep.subr.mxu0 0.0
        %1376 = vmatpush1.msra.mxu0 0.0
        %1377 = vmatprep.subr.mxu0 0.0
        %1378 = vmatpush1.msra.mxu0 0.0
        %1379 = vmatprep.subr.mxu0 0.0
        %1380 = vmatpush1.msra.mxu0 0.0
        %1381 = vmatprep.subr.mxu0 0.0
        %1382 = vmatpush1.msra.mxu0 0.0
        %1383 = vmatprep.subr.mxu0 0.0
        %1384 = vmatpush1.msra.mxu0 0.0
        %1385 = vmatprep.subr.mxu0 0.0
        %1386 = vmatpush1.msra.mxu0 0.0
        %1387 = vmatprep.subr.mxu0 0.0
        %1388 = vmatpush1.msra.mxu0 0.0
        %1389 = vmatprep.subr.mxu0 0.0
        %1390 = vmatpush1.msra.mxu0 0.0
        %1391 = vmatprep.subr.mxu0 0.0
        %1392 = vmatpush1.msra.mxu0 0.0
        %1393 = vmatprep.subr.mxu0 0.0
        %1394 = vmatpush1.msra.mxu0 0.0
        %1395 = vmatprep.subr.mxu0 0.0
        %1396 = vmatpush1.msra.mxu0 0.0
        %1397 = vmatprep.subr.mxu0 0.0
        %1398 = vmatpush1.msra.mxu0 0.0
        %1399 = vmatprep.subr.mxu0 0.0
        %1400 = vmatpush1.msra.mxu0 0.0
        %1401 = vmatprep.subr.mxu0 0.0
        %1402 = vmatpush1.msra.mxu0 0.0
        %1403 = vmatprep.subr.mxu0 0.0
        %1404 = vmatpush1.msra.mxu0 0.0
        %1405 = vmatprep.subr.mxu0 0.0
        %1406 = vmatpush1.msra.mxu0 0.0
        %1407 = vmatprep.subr.mxu0 0.0
        %1408 = vmatpush1.msra.mxu0 0.0
        %1409 = vmatprep.subr.mxu0 0.0
        %1410 = vmatpush1.msra.mxu0 0.0
        %1411 = vmatprep.subr.mxu0 0.0
        %1412 = vmatpush1.msra.mxu0 0.0
        %1413 = vmatprep.subr.mxu0 0.0
        %1414 = vmatpush1.msra.mxu0 0.0
        %1415 = vmatprep.mubr.f32.mxu0 0.0
        %1416 = vmatmul.mubr.f32.gmra.mrb[0].mxu0 %v1340
        %v1417 = vpop.f32.mrb[0].mxu0
        %v1418 = vadd.f32 %v1322, %v1417
        %v1419 = vpop.f32.mrb[0].mxu0
        %1420 = vmatprep.mubr.f32.mxu0 0.0
        %1421 = vmatmul.mubr.f32.gmra.mrb[0].mxu0 %v1343
        %v1422 = vpop.f32.mrb[0].mxu0
        %v1423 = vadd.f32 %v1327, %v1422
        %v1424 = vpop.f32.mrb[0].mxu0
        %1425 = vmatprep.mubr.f32.mxu0 0.0
        %1426 = vmatmul.mubr.f32.gmra.mrb[0].mxu0 %v1346
        %v1427 = vpop.f32.mrb[0].mxu0
        %v1428 = vadd.f32 %v1332, %v1427
        %v1429 = vpop.f32.mrb[0].mxu0
        %1430 = vmatprep.mubr.f32.mxu0 0.0
        %1431 = vmatmul.mubr.f32.gmra.mrb[0].mxu0 %v1349
        %v1432 = vpop.f32.mrb[0].mxu0
        %v1433 = vadd.f32 %v1337, %v1432
        %v1434 = vpop.f32.mrb[0].mxu0
        %1435 = vdwg.mxu0
        %v1436 = vmax.f32 %v1418, 0.0
        %v1437 = vmax.f32 %v1423, 0.0
        %v1438 = vmax.f32 %v1428, 0.0
        %v1439 = vmax.f32 %v1433, 0.0
        %1441 = vset.pattern.permute.xlu0 0
        %1442 = vperm.xlu0 %1441, %v696
        %v1443 = vpop.permute.xlu0 %1442
        %1446 = vset.pattern.permute.xlu0 0
        %1447 = vperm.xlu0 %1446, %v697
        %v1448 = vpop.permute.xlu0 %1447
        %1451 = vset.pattern.permute.xlu0 0
        %1452 = vperm.xlu0 %1451, %v698
        %v1453 = vpop.permute.xlu0 %1452
        %1456 = vset.pattern.permute.xlu0 0
        %1457 = vperm.xlu0 %1456, %v699
        %v1458 = vpop.permute.xlu0 %1457
        %v1461 = vsel %vm760, %v692, 0
        %v1464 = vsel %vm760, %v693, 0
        %v1467 = vsel %vm760, %v694, 0
        %v1470 = vsel %vm760, %v695, 0
        %1472 = vmatprep.subr.mxu0 0.0
        %1473 = vmatpush1.msra.mxu0 %v1436
        %1474 = vmatprep.subr.mxu0 0.0
        %1475 = vmatpush1.msra.mxu0 %v1437
        %1476 = vmatprep.subr.mxu0 0.0
        %1477 = vmatpush1.msra.mxu0 %v1438
        %1478 = vmatprep.subr.mxu0 0.0
        %1479 = vmatpush1.msra.mxu0 %v1439
        %1480 = vmatprep.subr.mxu0 0.0
        %1481 = vmatpush1.msra.mxu0 0.0
        %1482 = vmatprep.subr.mxu0 0.0
        %1483 = vmatpush1.msra.mxu0 0.0
        %1484 = vmatprep.subr.mxu0 0.0
        %1485 = vmatpush1.msra.mxu0 0.0
        %1486 = vmatprep.subr.mxu0 0.0
        %1487 = vmatpush1.msra.mxu0 0.0
        %1488 = vmatprep.subr.mxu0 0.0
        %1489 = vmatpush1.msra.mxu0 0.0
        %1490 = vmatprep.subr.mxu0 0.0
        %1491 = vmatpush1.msra.mxu0 0.0
        %1492 = vmatprep.subr.mxu0 0.0
        %1493 = vmatpush1.msra.mxu0 0.0
        %1494 = vmatprep.subr.mxu0 0.0
        %1495 = vmatpush1.msra.mxu0 0.0
        %1496 = vmatprep.subr.mxu0 0.0
        %1497 = vmatpush1.msra.mxu0 0.0
        %1498 = vmatprep.subr.mxu0 0.0
        %1499 = vmatpush1.msra.mxu0 0.0
        %1500 = vmatprep.subr.mxu0 0.0
        %1501 = vmatpush1.msra.mxu0 0.0
        %1502 = vmatprep.subr.mxu0 0.0
        %1503 = vmatpush1.msra.mxu0 0.0
        %1504 = vmatprep.subr.mxu0 0.0
        %1505 = vmatpush1.msra.mxu0 0.0
        %1506 = vmatprep.subr.mxu0 0.0
        %1507 = vmatpush1.msra.mxu0 0.0
        %1508 = vmatprep.subr.mxu0 0.0
        %1509 = vmatpush1.msra.mxu0 0.0
        %1510 = vmatprep.subr.mxu0 0.0
        %1511 = vmatpush1.msra.mxu0 0.0
        %1512 = vmatprep.subr.mxu0 0.0
        %1513 = vmatpush1.msra.mxu0 0.0
        %1514 = vmatprep.subr.mxu0 0.0
        %1515 = vmatpush1.msra.mxu0 0.0
        %1516 = vmatprep.subr.mxu0 0.0
        %1517 = vmatpush1.msra.mxu0 0.0
        %1518 = vmatprep.subr.mxu0 0.0
        %1519 = vmatpush1.msra.mxu0 0.0
        %1520 = vmatprep.subr.mxu0 0.0
        %1521 = vmatpush1.msra.mxu0 0.0
        %1522 = vmatprep.subr.mxu0 0.0
        %1523 = vmatpush1.msra.mxu0 0.0
        %1524 = vmatprep.subr.mxu0 0.0
        %1525 = vmatpush1.msra.mxu0 0.0
        %1526 = vmatprep.subr.mxu0 0.0
        %1527 = vmatpush1.msra.mxu0 0.0
        %1528 = vmatprep.subr.mxu0 0.0
        %1529 = vmatpush1.msra.mxu0 0.0
        %1530 = vmatprep.subr.mxu0 0.0
        %1531 = vmatpush1.msra.mxu0 0.0
        %1532 = vmatprep.subr.mxu0 0.0
        %1533 = vmatpush1.msra.mxu0 0.0
        %1534 = vmatprep.subr.mxu0 0.0
        %1535 = vmatpush1.msra.mxu0 0.0
        %1536 = vmatprep.mubr.f32.mxu0 0.0
        %1537 = vmatmul.mubr.f32.gmra.mrb[0].mxu0 %v1461
        %v1538 = vpop.f32.mrb[0].mxu0
        %v1539 = vadd.f32 %v1443, %v1538
        %v1540 = vpop.f32.mrb[0].mxu0
        %1541 = vmatprep.mubr.f32.mxu0 0.0
        %1542 = vmatmul.mubr.f32.gmra.mrb[0].mxu0 %v1464
        %v1543 = vpop.f32.mrb[0].mxu0
        %v1544 = vadd.f32 %v1448, %v1543
        %v1545 = vpop.f32.mrb[0].mxu0
        %1546 = vmatprep.mubr.f32.mxu0 0.0
        %1547 = vmatmul.mubr.f32.gmra.mrb[0].mxu0 %v1467
        %v1548 = vpop.f32.mrb[0].mxu0
        %v1549 = vadd.f32 %v1453, %v1548
        %v1550 = vpop.f32.mrb[0].mxu0
        %1551 = vmatprep.mubr.f32.mxu0 0.0
        %1552 = vmatmul.mubr.f32.gmra.mrb[0].mxu0 %v1470
        %v1553 = vpop.f32.mrb[0].mxu0
        %v1554 = vadd.f32 %v1458, %v1553
        %v1555 = vpop.f32.mrb[0].mxu0
        %1556 = vdwg.mxu0
        %v1557 = vadd.f32 %v640, %v1539
        %v1558 = vadd.f32 %v641, %v1544
        %v1559 = vadd.f32 %v642, %v1549
        %v1560 = vadd.f32 %v643, %v1554
        %s1561 = scalar_lea.vmem %s4, 96
        %v1562 = vld [vmem:[%s1561] sm:$0xff]
        %v1563 = vld [vmem:[%s1561 + $0x8] sm:$0xff]
        %v1564 = vld [vmem:[%s1561 + $0x10] sm:$0xff]
        %v1565 = vld [vmem:[%s1561 + $0x18] sm:$0xff]
        %v1566 = vld [vmem:[%s1561 + $0x20] sm:$0xff]
        %v1567 = vld [vmem:[%s1561 + $0x28] sm:$0xff]
        %v1568 = vld [vmem:[%s1561 + $0x30] sm:$0xff]
        %v1569 = vld [vmem:[%s1561 + $0x38] sm:$0xff]
        %v1570 = vld [vmem:[%s1561 + $0x40] sm:$0xff]
        %v1571 = vld [vmem:[%s1561 + $0x48] sm:$0xff]
        %v1572 = vld [vmem:[%s1561 + $0x50] sm:$0xff]
        %v1573 = vld [vmem:[%s1561 + $0x58] sm:$0xff]
        %s1574 = scalar_lea.vmem %s5, 32
        %v1575 = vld [vmem:[%s1574] sm:$0xff]
        %v1576 = vld [vmem:[%s1574 + $0x8] sm:$0xff]
        %v1577 = vld [vmem:[%s1574 + $0x10] sm:$0xff]
        %v1578 = vld [vmem:[%s1574 + $0x18] sm:$0xff]
        %s1579 = scalar_lea.vmem %s6, 96
        %v1580 = vld [vmem:[%s1579] sm:$0xff]
        %v1581 = vld [vmem:[%s1579 + $0x8] sm:$0xff]
        %v1582 = vld [vmem:[%s1579 + $0x10] sm:$0xff]
        %v1583 = vld [vmem:[%s1579 + $0x18] sm:$0xff]
        %v1584 = vld [vmem:[%s1579 + $0x20] sm:$0xff]
        %v1585 = vld [vmem:[%s1579 + $0x28] sm:$0xff]
        %v1586 = vld [vmem:[%s1579 + $0x30] sm:$0xff]
        %v1587 = vld [vmem:[%s1579 + $0x38] sm:$0xff]
        %v1588 = vld [vmem:[%s1579 + $0x40] sm:$0xff]
        %v1589 = vld [vmem:[%s1579 + $0x48] sm:$0xff]
        %v1590 = vld [vmem:[%s1579 + $0x50] sm:$0xff]
        %v1591 = vld [vmem:[%s1579 + $0x58] sm:$0xff]
        %s1592 = scalar_lea.vmem %s7, 96
        %v1593 = vld [vmem:[%s1592] sm:$0xff]
        %v1594 = vld [vmem:[%s1592 + $0x8] sm:$0xff]
        %v1595 = vld [vmem:[%s1592 + $0x10] sm:$0xff]
        %v1596 = vld [vmem:[%s1592 + $0x18] sm:$0xff]
        %v1597 = vld [vmem:[%s1592 + $0x20] sm:$0xff]
        %v1598 = vld [vmem:[%s1592 + $0x28] sm:$0xff]
        %v1599 = vld [vmem:[%s1592 + $0x30] sm:$0xff]
        %v1600 = vld [vmem:[%s1592 + $0x38] sm:$0xff]
        %v1601 = vld [vmem:[%s1592 + $0x40] sm:$0xff]
        %v1602 = vld [vmem:[%s1592 + $0x48] sm:$0xff]
        %v1603 = vld [vmem:[%s1592 + $0x50] sm:$0xff]
        %v1604 = vld [vmem:[%s1592 + $0x58] sm:$0xff]
        %s1605 = scalar_lea.vmem %s8, 32
        %v1606 = vld [vmem:[%s1605] sm:$0xff]
        %v1607 = vld [vmem:[%s1605 + $0x8] sm:$0xff]
        %v1608 = vld [vmem:[%s1605 + $0x10] sm:$0xff]
        %v1609 = vld [vmem:[%s1605 + $0x18] sm:$0xff]
        %s1610 = scalar_lea.vmem %s9, 32
        %v1611 = vld [vmem:[%s1610] sm:$0xff]
        %v1612 = vld [vmem:[%s1610 + $0x8] sm:$0xff]
        %v1613 = vld [vmem:[%s1610 + $0x10] sm:$0xff]
        %v1614 = vld [vmem:[%s1610 + $0x18] sm:$0xff]
        %s1615 = scalar_lea.vmem %s10, 32
        %v1616 = vld [vmem:[%s1615] sm:$0xff]
        %v1617 = vld [vmem:[%s1615 + $0x8] sm:$0xff]
        %v1618 = vld [vmem:[%s1615 + $0x10] sm:$0xff]
        %v1619 = vld [vmem:[%s1615 + $0x18] sm:$0xff]
        %s1620 = scalar_lea.vmem %s11, 32
        %v1621 = vld [vmem:[%s1620] sm:$0xff]
        %v1622 = vld [vmem:[%s1620 + $0x8] sm:$0xff]
        %v1623 = vld [vmem:[%s1620 + $0x10] sm:$0xff]
        %v1624 = vld [vmem:[%s1620 + $0x18] sm:$0xff]
        %1626 = vset.pattern.permute.xlu0 0
        %1627 = vperm.xlu0 %1626, %v1593
        %v1628 = vpop.permute.xlu0 %1627
        %1631 = vset.pattern.permute.xlu0 0
        %1632 = vperm.xlu0 %1631, %v1594
        %v1633 = vpop.permute.xlu0 %1632
        %1636 = vset.pattern.permute.xlu0 0
        %1637 = vperm.xlu0 %1636, %v1595
        %v1638 = vpop.permute.xlu0 %1637
        %1641 = vset.pattern.permute.xlu0 0
        %1642 = vperm.xlu0 %1641, %v1596
        %v1643 = vpop.permute.xlu0 %1642
        %1646 = vset.pattern.permute.xlu0 0
        %1647 = vperm.xlu0 %1646, %v1597
        %v1648 = vpop.permute.xlu0 %1647
        %1651 = vset.pattern.permute.xlu0 0
        %1652 = vperm.xlu0 %1651, %v1598
        %v1653 = vpop.permute.xlu0 %1652
        %1656 = vset.pattern.permute.xlu0 0
        %1657 = vperm.xlu0 %1656, %v1599
        %v1658 = vpop.permute.xlu0 %1657
        %1661 = vset.pattern.permute.xlu0 0
        %1662 = vperm.xlu0 %1661, %v1600
        %v1663 = vpop.permute.xlu0 %1662
        %1666 = vset.pattern.permute.xlu0 0
        %1667 = vperm.xlu0 %1666, %v1601
        %v1668 = vpop.permute.xlu0 %1667
        %1671 = vset.pattern.permute.xlu0 0
        %1672 = vperm.xlu0 %1671, %v1602
        %v1673 = vpop.permute.xlu0 %1672
        %1676 = vset.pattern.permute.xlu0 0
        %1677 = vperm.xlu0 %1676, %v1603
        %v1678 = vpop.permute.xlu0 %1677
        %1681 = vset.pattern.permute.xlu0 0
        %1682 = vperm.xlu0 %1681, %v1604
        %v1683 = vpop.permute.xlu0 %1682
        %v1686 = vsel %vm760, %v1580, 0
        %v1689 = vsel %vm760, %v1581, 0
        %v1692 = vsel %vm760, %v1582, 0
        %v1695 = vsel %vm760, %v1583, 0
        %v1698 = vsel %vm760, %v1584, 0
        %v1701 = vsel %vm760, %v1585, 0
        %v1704 = vsel %vm760, %v1586, 0
        %v1707 = vsel %vm760, %v1587, 0
        %v1710 = vsel %vm760, %v1588, 0
        %v1713 = vsel %vm760, %v1589, 0
        %v1716 = vsel %vm760, %v1590, 0
        %v1719 = vsel %vm760, %v1591, 0
        %1721 = vmatprep.subr.mxu0 0.0
        %1722 = vmatpush1.msra.mxu0 %v1557
        %1723 = vmatprep.subr.mxu0 0.0
        %1724 = vmatpush1.msra.mxu0 %v1558
        %1725 = vmatprep.subr.mxu0 0.0
        %1726 = vmatpush1.msra.mxu0 %v1559
        %1727 = vmatprep.subr.mxu0 0.0
        %1728 = vmatpush1.msra.mxu0 %v1560
        %1729 = vmatprep.subr.mxu0 0.0
        %1730 = vmatpush1.msra.mxu0 0.0
        %1731 = vmatprep.subr.mxu0 0.0
        %1732 = vmatpush1.msra.mxu0 0.0
        %1733 = vmatprep.subr.mxu0 0.0
        %1734 = vmatpush1.msra.mxu0 0.0
        %1735 = vmatprep.subr.mxu0 0.0
        %1736 = vmatpush1.msra.mxu0 0.0
        %1737 = vmatprep.subr.mxu0 0.0
        %1738 = vmatpush1.msra.mxu0 0.0
        %1739 = vmatprep.subr.mxu0 0.0
        %1740 = vmatpush1.msra.mxu0 0.0
        %1741 = vmatprep.subr.mxu0 0.0
        %1742 = vmatpush1.msra.mxu0 0.0
        %1743 = vmatprep.subr.mxu0 0.0
        %1744 = vmatpush1.msra.mxu0 0.0
        %1745 = vmatprep.subr.mxu0 0.0
        %1746 = vmatpush1.msra.mxu0 0.0
        %1747 = vmatprep.subr.mxu0 0.0
        %1748 = vmatpush1.msra.mxu0 0.0
        %1749 = vmatprep.subr.mxu0 0.0
        %1750 = vmatpush1.msra.mxu0 0.0
        %1751 = vmatprep.subr.mxu0 0.0
        %1752 = vmatpush1.msra.mxu0 0.0
        %1753 = vmatprep.subr.mxu0 0.0
        %1754 = vmatpush1.msra.mxu0 0.0
        %1755 = vmatprep.subr.mxu0 0.0
        %1756 = vmatpush1.msra.mxu0 0.0
        %1757 = vmatprep.subr.mxu0 0.0
        %1758 = vmatpush1.msra.mxu0 0.0
        %1759 = vmatprep.subr.mxu0 0.0
        %1760 = vmatpush1.msra.mxu0 0.0
        %1761 = vmatprep.subr.mxu0 0.0
        %1762 = vmatpush1.msra.mxu0 0.0
        %1763 = vmatprep.subr.mxu0 0.0
        %1764 = vmatpush1.msra.mxu0 0.0
        %1765 = vmatprep.subr.mxu0 0.0
        %1766 = vmatpush1.msra.mxu0 0.0
        %1767 = vmatprep.subr.mxu0 0.0
        %1768 = vmatpush1.msra.mxu0 0.0
        %1769 = vmatprep.subr.mxu0 0.0
        %1770 = vmatpush1.msra.mxu0 0.0
        %1771 = vmatprep.subr.mxu0 0.0
        %1772 = vmatpush1.msra.mxu0 0.0
        %1773 = vmatprep.subr.mxu0 0.0
        %1774 = vmatpush1.msra.mxu0 0.0
        %1775 = vmatprep.subr.mxu0 0.0
        %1776 = vmatpush1.msra.mxu0 0.0
        %1777 = vmatprep.subr.mxu0 0.0
        %1778 = vmatpush1.msra.mxu0 0.0
        %1779 = vmatprep.subr.mxu0 0.0
        %1780 = vmatpush1.msra.mxu0 0.0
        %1781 = vmatprep.subr.mxu0 0.0
        %1782 = vmatpush1.msra.mxu0 0.0
        %1783 = vmatprep.subr.mxu0 0.0
        %1784 = vmatpush1.msra.mxu0 0.0
        %1785 = vmatprep.mubr.f32.mxu0 0.0
        %1786 = vmatmul.mubr.f32.gmra.mrb[0].mxu0 %v1686
        %v1787 = vpop.f32.mrb[0].mxu0
        %v1788 = vadd.f32 %v1628, %v1787
        %v1789 = vpop.f32.mrb[0].mxu0
        %1790 = vmatprep.mubr.f32.mxu0 0.0
        %1791 = vmatmul.mubr.f32.gmra.mrb[0].mxu0 %v1689
        %v1792 = vpop.f32.mrb[0].mxu0
        %v1793 = vadd.f32 %v1633, %v1792
        %v1794 = vpop.f32.mrb[0].mxu0
        %1795 = vmatprep.mubr.f32.mxu0 0.0
        %1796 = vmatmul.mubr.f32.gmra.mrb[0].mxu0 %v1692
        %v1797 = vpop.f32.mrb[0].mxu0
        %v1798 = vadd.f32 %v1638, %v1797
        %v1799 = vpop.f32.mrb[0].mxu0
        %1800 = vmatprep.mubr.f32.mxu0 0.0
        %1801 = vmatmul.mubr.f32.gmra.mrb[0].mxu0 %v1695
        %v1802 = vpop.f32.mrb[0].mxu0
        %v1803 = vadd.f32 %v1643, %v1802
        %v1804 = vpop.f32.mrb[0].mxu0
        %1805 = vmatprep.mubr.f32.mxu0 0.0
        %1806 = vmatmul.mubr.f32.gmra.mrb[0].mxu0 %v1698
        %v1807 = vpop.f32.mrb[0].mxu0
        %v1808 = vadd.f32 %v1648, %v1807
        %v1809 = vpop.f32.mrb[0].mxu0
        %1810 = vmatprep.mubr.f32.mxu0 0.0
        %1811 = vmatmul.mubr.f32.gmra.mrb[0].mxu0 %v1701
        %v1812 = vpop.f32.mrb[0].mxu0
        %v1813 = vadd.f32 %v1653, %v1812
        %v1814 = vpop.f32.mrb[0].mxu0
        %1815 = vmatprep.mubr.f32.mxu0 0.0
        %1816 = vmatmul.mubr.f32.gmra.mrb[0].mxu0 %v1704
        %v1817 = vpop.f32.mrb[0].mxu0
        %v1818 = vadd.f32 %v1658, %v1817
        %v1819 = vpop.f32.mrb[0].mxu0
        %1820 = vmatprep.mubr.f32.mxu0 0.0
        %1821 = vmatmul.mubr.f32.gmra.mrb[0].mxu0 %v1707
        %v1822 = vpop.f32.mrb[0].mxu0
        %v1823 = vadd.f32 %v1663, %v1822
        %v1824 = vpop.f32.mrb[0].mxu0
        %1825 = vmatprep.mubr.f32.mxu0 0.0
        %1826 = vmatmul.mubr.f32.gmra.mrb[0].mxu0 %v1710
        %v1827 = vpop.f32.mrb[0].mxu0
        %v1828 = vadd.f32 %v1668, %v1827
        %v1829 = vpop.f32.mrb[0].mxu0
        %1830 = vmatprep.mubr.f32.mxu0 0.0
        %1831 = vmatmul.mubr.f32.gmra.mrb[0].mxu0 %v1713
        %v1832 = vpop.f32.mrb[0].mxu0
        %v1833 = vadd.f32 %v1673, %v1832
        %v1834 = vpop.f32.mrb[0].mxu0
        %1835 = vmatprep.mubr.f32.mxu0 0.0
        %1836 = vmatmul.mubr.f32.gmra.mrb[0].mxu0 %v1716
        %v1837 = vpop.f32.mrb[0].mxu0
        %v1838 = vadd.f32 %v1678, %v1837
        %v1839 = vpop.f32.mrb[0].mxu0
        %1840 = vmatprep.mubr.f32.mxu0 0.0
        %1841 = vmatmul.mubr.f32.gmra.mrb[0].mxu0 %v1719
        %v1842 = vpop.f32.mrb[0].mxu0
        %v1843 = vadd.f32 %v1683, %v1842
        %v1844 = vpop.f32.mrb[0].mxu0
        %1845 = vdwg.mxu0
        %v1847 = vsel %vm760, %v1562, 0
        %v1850 = vsel %vm760, %v1563, 0
        %v1853 = vsel %vm760, %v1564, 0
        %v1856 = vsel %vm760, %v1565, 0
        %v1859 = vsel %vm760, %v1566, 0
        %v1862 = vsel %vm760, %v1567, 0
        %v1865 = vsel %vm760, %v1568, 0
        %v1868 = vsel %vm760, %v1569, 0
        %v1871 = vsel %vm760, %v1570, 0
        %v1874 = vsel %vm760, %v1571, 0
        %v1877 = vsel %vm760, %v1572, 0
        %v1880 = vsel %vm760, %v1573, 0
        %1882 = vmatprep.subr.mxu0 0.0
        %1883 = vmatpush1.msra.mxu0 %v1557
        %1884 = vmatprep.subr.mxu0 0.0
        %1885 = vmatpush1.msra.mxu0 %v1558
        %1886 = vmatprep.subr.mxu0 0.0
        %1887 = vmatpush1.msra.mxu0 %v1559
        %1888 = vmatprep.subr.mxu0 0.0
        %1889 = vmatpush1.msra.mxu0 %v1560
        %1890 = vmatprep.subr.mxu0 0.0
        %1891 = vmatpush1.msra.mxu0 0.0
        %1892 = vmatprep.subr.mxu0 0.0
        %1893 = vmatpush1.msra.mxu0 0.0
        %1894 = vmatprep.subr.mxu0 0.0
        %1895 = vmatpush1.msra.mxu0 0.0
        %1896 = vmatprep.subr.mxu0 0.0
        %1897 = vmatpush1.msra.mxu0 0.0
        %1898 = vmatprep.subr.mxu0 0.0
        %1899 = vmatpush1.msra.mxu0 0.0
        %1900 = vmatprep.subr.mxu0 0.0
        %1901 = vmatpush1.msra.mxu0 0.0
        %1902 = vmatprep.subr.mxu0 0.0
        %1903 = vmatpush1.msra.mxu0 0.0
        %1904 = vmatprep.subr.mxu0 0.0
        %1905 = vmatpush1.msra.mxu0 0.0
        %1906 = vmatprep.subr.mxu0 0.0
        %1907 = vmatpush1.msra.mxu0 0.0
        %1908 = vmatprep.subr.mxu0 0.0
        %1909 = vmatpush1.msra.mxu0 0.0
        %1910 = vmatprep.subr.mxu0 0.0
        %1911 = vmatpush1.msra.mxu0 0.0
        %1912 = vmatprep.subr.mxu0 0.0
        %1913 = vmatpush1.msra.mxu0 0.0
        %1914 = vmatprep.subr.mxu0 0.0
        %1915 = vmatpush1.msra.mxu0 0.0
        %1916 = vmatprep.subr.mxu0 0.0
        %1917 = vmatpush1.msra.mxu0 0.0
        %1918 = vmatprep.subr.mxu0 0.0
        %1919 = vmatpush1.msra.mxu0 0.0
        %1920 = vmatprep.subr.mxu0 0.0
        %1921 = vmatpush1.msra.mxu0 0.0
        %1922 = vmatprep.subr.mxu0 0.0
        %1923 = vmatpush1.msra.mxu0 0.0
        %1924 = vmatprep.subr.mxu0 0.0
        %1925 = vmatpush1.msra.mxu0 0.0
        %1926 = vmatprep.subr.mxu0 0.0
        %1927 = vmatpush1.msra.mxu0 0.0
        %1928 = vmatprep.subr.mxu0 0.0
        %1929 = vmatpush1.msra.mxu0 0.0
        %1930 = vmatprep.subr.mxu0 0.0
        %1931 = vmatpush1.msra.mxu0 0.0
        %1932 = vmatprep.subr.mxu0 0.0
        %1933 = vmatpush1.msra.mxu0 0.0
        %1934 = vmatprep.subr.mxu0 0.0
        %1935 = vmatpush1.msra.mxu0 0.0
        %1936 = vmatprep.subr.mxu0 0.0
        %1937 = vmatpush1.msra.mxu0 0.0
        %1938 = vmatprep.subr.mxu0 0.0
        %1939 = vmatpush1.msra.mxu0 0.0
        %1940 = vmatprep.subr.mxu0 0.0
        %1941 = vmatpush1.msra.mxu0 0.0
        %1942 = vmatprep.subr.mxu0 0.0
        %1943 = vmatpush1.msra.mxu0 0.0
        %1944 = vmatprep.subr.mxu0 0.0
        %1945 = vmatpush1.msra.mxu0 0.0
        %1946 = vmatprep.mubr.f32.mxu0 0.0
        %1947 = vmatmul.mubr.f32.gmra.mrb[0].mxu0 %v1847
        %v1948 = vpop.f32.mrb[0].mxu0
        %v1949 = vadd.f32 0.0, %v1948
        %v1950 = vpop.f32.mrb[0].mxu0
        %1951 = vmatprep.mubr.f32.mxu0 0.0
        %1952 = vmatmul.mubr.f32.gmra.mrb[0].mxu0 %v1850
        %v1953 = vpop.f32.mrb[0].mxu0
        %v1954 = vadd.f32 0.0, %v1953
        %v1955 = vpop.f32.mrb[0].mxu0
        %1956 = vmatprep.mubr.f32.mxu0 0.0
        %1957 = vmatmul.mubr.f32.gmra.mrb[0].mxu0 %v1853
        %v1958 = vpop.f32.mrb[0].mxu0
        %v1959 = vadd.f32 0.0, %v1958
        %v1960 = vpop.f32.mrb[0].mxu0
        %1961 = vmatprep.mubr.f32.mxu0 0.0
        %1962 = vmatmul.mubr.f32.gmra.mrb[0].mxu0 %v1856
        %v1963 = vpop.f32.mrb[0].mxu0
        %v1964 = vadd.f32 0.0, %v1963
        %v1965 = vpop.f32.mrb[0].mxu0
        %1966 = vmatprep.mubr.f32.mxu0 0.0
        %1967 = vmatmul.mubr.f32.gmra.mrb[0].mxu0 %v1859
        %v1968 = vpop.f32.mrb[0].mxu0
        %v1969 = vadd.f32 0.0, %v1968
        %v1970 = vpop.f32.mrb[0].mxu0
        %1971 = vmatprep.mubr.f32.mxu0 0.0
        %1972 = vmatmul.mubr.f32.gmra.mrb[0].mxu0 %v1862
        %v1973 = vpop.f32.mrb[0].mxu0
        %v1974 = vadd.f32 0.0, %v1973
        %v1975 = vpop.f32.mrb[0].mxu0
        %1976 = vmatprep.mubr.f32.mxu0 0.0
        %1977 = vmatmul.mubr.f32.gmra.mrb[0].mxu0 %v1865
        %v1978 = vpop.f32.mrb[0].mxu0
        %v1979 = vadd.f32 0.0, %v1978
        %v1980 = vpop.f32.mrb[0].mxu0
        %1981 = vmatprep.mubr.f32.mxu0 0.0
        %1982 = vmatmul.mubr.f32.gmra.mrb[0].mxu0 %v1868
        %v1983 = vpop.f32.mrb[0].mxu0
        %v1984 = vadd.f32 0.0, %v1983
        %v1985 = vpop.f32.mrb[0].mxu0
        %1986 = vmatprep.mubr.f32.mxu0 0.0
        %1987 = vmatmul.mubr.f32.gmra.mrb[0].mxu0 %v1871
        %v1988 = vpop.f32.mrb[0].mxu0
        %v1989 = vadd.f32 0.0, %v1988
        %v1990 = vpop.f32.mrb[0].mxu0
        %1991 = vmatprep.mubr.f32.mxu0 0.0
        %1992 = vmatmul.mubr.f32.gmra.mrb[0].mxu0 %v1874
        %v1993 = vpop.f32.mrb[0].mxu0
        %v1994 = vadd.f32 0.0, %v1993
        %v1995 = vpop.f32.mrb[0].mxu0
        %1996 = vmatprep.mubr.f32.mxu0 0.0
        %1997 = vmatmul.mubr.f32.gmra.mrb[0].mxu0 %v1877
        %v1998 = vpop.f32.mrb[0].mxu0
        %v1999 = vadd.f32 0.0, %v1998
        %v2000 = vpop.f32.mrb[0].mxu0
        %2001 = vmatprep.mubr.f32.mxu0 0.0
        %2002 = vmatmul.mubr.f32.gmra.mrb[0].mxu0 %v1880
        %v2003 = vpop.f32.mrb[0].mxu0
        %v2004 = vadd.f32 0.0, %v2003
        %v2005 = vpop.f32.mrb[0].mxu0
        %2006 = vdwg.mxu0
        %2007 = vrot.lane.b32.xlu0 %v1949, 2
        %v2008 = vpop.permute.xlu0 %2007
        %2009 = vrot.lane.b32.xlu0 %v1954, 2
        %v2010 = vpop.permute.xlu0 %2009
        %2011 = vrot.lane.b32.xlu0 %v1959, 2
        %v2012 = vpop.permute.xlu0 %2011
        %2013 = vrot.lane.b32.xlu0 %v1964, 2
        %v2014 = vpop.permute.xlu0 %2013
        %2015 = vrot.lane.b32.xlu0 %v1808, 2
        %v2016 = vpop.permute.xlu0 %2015
        %2017 = vrot.lane.b32.xlu0 %v1813, 2
        %v2018 = vpop.permute.xlu0 %2017
        %2019 = vrot.lane.b32.xlu0 %v1818, 2
        %v2020 = vpop.permute.xlu0 %2019
        %2021 = vrot.lane.b32.xlu0 %v1823, 2
        %v2022 = vpop.permute.xlu0 %2021
        %v2023 = vmul.f32 %v1788, %v2016
        %v2024 = vmul.f32 %v1793, %v2018
        %v2025 = vmul.f32 %v1798, %v2020
        %v2026 = vmul.f32 %v1803, %v2022
        %v2027 = vadd.f32 %v2023, %v2024
        %v2028 = vadd.f32 %v2027, %v2025
        %v2029 = vadd.f32 %v2028, %v2026
        %v2030 = vrot.slane %v2029, 4
        %v2031 = vadd.f32 %v2029, %v2030
        %v2032 = vrot.slane %v2031, 2
        %v2033 = vadd.f32 %v2031, %v2032
        %v2034 = vrot.slane %v2033, 1
        %v2035 = vadd.f32 %v2033, %v2034
        %v2036 = vmul.f32 %v2035, 0.17677669
        %v2037 = vadd.s32 %v487, 4294967294
        %vm2038 = vcmp.ge.s32.totalorder %v2037, 0
        %vm2039 = vcmp.lt.s32.totalorder %v2037, 128
        %vm2040 = vmand %vm2038, %vm2039
        %v2041 = vsel %vm2040, 1, 0
        %v2042 = vcvt.s32.f32 %v2041
        %v2043 = vadd.f32 %v2036, 9.999995e-07
        %v2044 = vsel %vm2040, %v2043, -13.815511
        %v2045 = vmul.f32 %v2008, %v2042
        %v2046 = vmul.f32 %v2010, %v2042
        %v2047 = vmul.f32 %v2012, %v2042
        %v2048 = vmul.f32 %v2014, %v2042
        %v2049 = vmul.f32 %v1788, %v1808
        %v2050 = vmul.f32 %v1793, %v1813
        %v2051 = vmul.f32 %v1798, %v1818
        %v2052 = vmul.f32 %v1803, %v1823
        %v2053 = vadd.f32 %v2049, %v2050
        %v2054 = vadd.f32 %v2053, %v2051
        %v2055 = vadd.f32 %v2054, %v2052
        %v2056 = vrot.slane %v2055, 4
        %v2057 = vadd.f32 %v2055, %v2056
        %v2058 = vrot.slane %v2057, 2
        %v2059 = vadd.f32 %v2057, %v2058
        %v2060 = vrot.slane %v2059, 1
        %v2061 = vadd.f32 %v2059, %v2060
        %v2062 = vmul.f32 %v2061, 0.17677669
        %v2063 = vadd.f32 %v2062, 9.999995e-07
        %v2064 = vadd.f32 %v2045, %v1969
        %v2065 = vadd.f32 %v2046, %v1974
        %v2066 = vadd.f32 %v2047, %v1979
        %v2067 = vadd.f32 %v2048, %v1984
        %2068 = vrot.lane.b32.xlu0 %v1989, 126
        %v2069 = vpop.permute.xlu0 %2068
        %2070 = vrot.lane.b32.xlu0 %v1994, 126
        %v2071 = vpop.permute.xlu0 %2070
        %2072 = vrot.lane.b32.xlu0 %v1999, 126
        %v2073 = vpop.permute.xlu0 %2072
        %2074 = vrot.lane.b32.xlu0 %v2004, 126
        %v2075 = vpop.permute.xlu0 %2074
        %2076 = vrot.lane.b32.xlu0 %v1808, 126
        %v2077 = vpop.permute.xlu0 %2076
        %2078 = vrot.lane.b32.xlu0 %v1813, 126
        %v2079 = vpop.permute.xlu0 %2078
        %2080 = vrot.lane.b32.xlu0 %v1818, 126
        %v2081 = vpop.permute.xlu0 %2080
        %2082 = vrot.lane.b32.xlu0 %v1823, 126
        %v2083 = vpop.permute.xlu0 %2082
        %v2084 = vmul.f32 %v1788, %v2077
        %v2085 = vmul.f32 %v1793, %v2079
        %v2086 = vmul.f32 %v1798, %v2081
        %v2087 = vmul.f32 %v1803, %v2083
        %v2088 = vadd.f32 %v2084, %v2085
        %v2089 = vadd.f32 %v2088, %v2086
        %v2090 = vadd.f32 %v2089, %v2087
        %v2091 = vrot.slane %v2090, 4
        %v2092 = vadd.f32 %v2090, %v2091
        %v2093 = vrot.slane %v2092, 2
        %v2094 = vadd.f32 %v2092, %v2093
        %v2095 = vrot.slane %v2094, 1
        %v2096 = vadd.f32 %v2094, %v2095
        %v2097 = vmul.f32 %v2096, 0.17677669
        %v2098 = vadd.s32 %v487, 2
        %vm2099 = vcmp.ge.s32.totalorder %v2098, 0
        %vm2100 = vcmp.lt.s32.totalorder %v2098, 128
        %vm2101 = vmand %vm2099, %vm2100
        %v2102 = vsel %vm2101, 1, 0
        %v2103 = vcvt.s32.f32 %v2102
        %v2104 = vadd.f32 %v2097, 9.999995e-07
        %v2105 = vsel %vm2101, %v2104, -13.815511
        %v2106 = vmul.f32 %v2069, %v2103
        %v2107 = vmul.f32 %v2071, %v2103
        %v2108 = vmul.f32 %v2073, %v2103
        %v2109 = vmul.f32 %v2075, %v2103
        %v2110 = vadd.f32 %v2064, %v2106
        %v2111 = vadd.f32 %v2065, %v2107
        %v2112 = vadd.f32 %v2066, %v2108
        %v2113 = vadd.f32 %v2067, %v2109
        %2115 = vset.pattern.permute.xlu0 0
        %2116 = vperm.xlu0 %2115, %v1575
        %v2117 = vpop.permute.xlu0 %2116
        %2120 = vset.pattern.permute.xlu0 0
        %2121 = vperm.xlu0 %2120, %v1576
        %v2122 = vpop.permute.xlu0 %2121
        %2125 = vset.pattern.permute.xlu0 0
        %2126 = vperm.xlu0 %2125, %v1577
        %v2127 = vpop.permute.xlu0 %2126
        %2130 = vset.pattern.permute.xlu0 0
        %2131 = vperm.xlu0 %2130, %v1578
        %v2132 = vpop.permute.xlu0 %2131
        %v2134 = vadd.f32 %v2110, %v2117
        %v2135 = vadd.f32 %v2111, %v2122
        %v2136 = vadd.f32 %v2112, %v2127
        %v2137 = vadd.f32 %v2113, %v2132
        %v2138 = vmax.f32 %v2044, %v2063
        %v2139 = vmax.f32 %v2138, %v2105
        %v2140 = vsub.f32 %v2044, %v2139
        %v2141 = vmul.f32 %v2140, 1.442695
        %v2142 = vpow.pop %v2141
        %v2143 = vsub.f32 %v2063, %v2139
        %v2144 = vmul.f32 %v2143, 1.442695
        %v2145 = vpow.pop %v2144
        %v2146 = vsub.f32 %v2105, %v2139
        %v2147 = vmul.f32 %v2146, 1.442695
        %v2148 = vpow.pop %v2147
        %v2149 = vadd.f32 %v2142, %v2145
        %v2150 = vadd.f32 %v2149, %v2148
        %v2151 = vrcp.pop %v2150
        %v2152 = vmul.f32 1.0, %v2151
        %2153 = vrot.lane.b32.xlu0 %v1828, 2
        %v2154 = vpop.permute.xlu0 %2153
        %2155 = vrot.lane.b32.xlu0 %v1833, 2
        %v2156 = vpop.permute.xlu0 %2155
        %2157 = vrot.lane.b32.xlu0 %v1838, 2
        %v2158 = vpop.permute.xlu0 %2157
        %2159 = vrot.lane.b32.xlu0 %v1843, 2
        %v2160 = vpop.permute.xlu0 %2159
        %v2161 = vmul.f32 %v2142, %v2152
        %v2162 = vmul.f32 %v2161, %v2042
        %v2163 = vmul.f32 %v2162, %v2154
        %v2164 = vmul.f32 %v2162, %v2156
        %v2165 = vmul.f32 %v2162, %v2158
        %v2166 = vmul.f32 %v2162, %v2160
        %v2167 = vmul.f32 %v2145, %v2152
        %v2168 = vmul.f32 %v2167, %v1828
        %v2169 = vmul.f32 %v2167, %v1833
        %v2170 = vmul.f32 %v2167, %v1838
        %v2171 = vmul.f32 %v2167, %v1843
        %v2172 = vadd.f32 %v2163, %v2168
        %v2173 = vadd.f32 %v2164, %v2169
        %v2174 = vadd.f32 %v2165, %v2170
        %v2175 = vadd.f32 %v2166, %v2171
        %2176 = vrot.lane.b32.xlu0 %v1828, 126
        %v2177 = vpop.permute.xlu0 %2176
        %2178 = vrot.lane.b32.xlu0 %v1833, 126
        %v2179 = vpop.permute.xlu0 %2178
        %2180 = vrot.lane.b32.xlu0 %v1838, 126
        %v2181 = vpop.permute.xlu0 %2180
        %2182 = vrot.lane.b32.xlu0 %v1843, 126
        %v2183 = vpop.permute.xlu0 %2182
        %v2184 = vmul.f32 %v2148, %v2152
        %v2185 = vmul.f32 %v2184, %v2103
        %v2186 = vmul.f32 %v2185, %v2177
        %v2187 = vmul.f32 %v2185, %v2179
        %v2188 = vmul.f32 %v2185, %v2181
        %v2189 = vmul.f32 %v2185, %v2183
        %v2190 = vadd.f32 %v2172, %v2186
        %v2191 = vadd.f32 %v2173, %v2187
        %v2192 = vadd.f32 %v2174, %v2188
        %v2193 = vadd.f32 %v2175, %v2189
        %v2194 = vadd.f32 %v2134, %v2190
        %v2195 = vadd.f32 %v2135, %v2191
        %v2196 = vadd.f32 %v2136, %v2192
        %v2197 = vadd.f32 %v2137, %v2193
        %2198 = vadd.xlane.f32.xlu0 %v2194
        %v2199 = vpop.xlane.xlu0 %2198
        %2200 = vadd.xlane.f32.xlu0 %v2195
        %v2201 = vpop.xlane.xlu0 %2200
        %2202 = vadd.xlane.f32.xlu0 %v2196
        %v2203 = vpop.xlane.xlu0 %2202
        %2204 = vadd.xlane.f32.xlu0 %v2197
        %v2205 = vpop.xlane.xlu0 %2204
        %v2206 = vmul.f32 %v2199, %v1282
        %v2207 = vmul.f32 %v2201, %v1282
        %v2208 = vmul.f32 %v2203, %v1282
        %v2209 = vmul.f32 %v2205, %v1282
        %v2210 = vsub.f32 %v2194, %v2206
        %v2211 = vsub.f32 %v2195, %v2207
        %v2212 = vsub.f32 %v2196, %v2208
        %v2213 = vsub.f32 %v2197, %v2209
        %v2214 = vmul.f32 %v2210, %v2210
        %v2215 = vmul.f32 %v2211, %v2211
        %v2216 = vmul.f32 %v2212, %v2212
        %v2217 = vmul.f32 %v2213, %v2213
        %2218 = vadd.xlane.f32.xlu0 %v2214
        %v2219 = vpop.xlane.xlu0 %2218
        %2220 = vadd.xlane.f32.xlu0 %v2215
        %v2221 = vpop.xlane.xlu0 %2220
        %2222 = vadd.xlane.f32.xlu0 %v2216
        %v2223 = vpop.xlane.xlu0 %2222
        %2224 = vadd.xlane.f32.xlu0 %v2217
        %v2225 = vpop.xlane.xlu0 %2224
        %v2226 = vmul.f32 %v2219, %v1282
        %v2227 = vmul.f32 %v2221, %v1282
        %v2228 = vmul.f32 %v2223, %v1282
        %v2229 = vmul.f32 %v2225, %v1282
        %v2230 = vadd.f32 %v2226, 1e-05
        %v2231 = vadd.f32 %v2227, 1e-05
        %v2232 = vadd.f32 %v2228, 1e-05
        %v2233 = vadd.f32 %v2229, 1e-05
        %v2234 = vrsqrt.pop %v2230
        %v2235 = vrsqrt.pop %v2231
        %v2236 = vrsqrt.pop %v2232
        %v2237 = vrsqrt.pop %v2233
        %v2238 = vmul.f32 %v2210, %v2234
        %v2239 = vmul.f32 %v2211, %v2235
        %v2240 = vmul.f32 %v2212, %v2236
        %v2241 = vmul.f32 %v2213, %v2237
        %2243 = vset.pattern.permute.xlu0 0
        %2244 = vperm.xlu0 %2243, %v1611
        %v2245 = vpop.permute.xlu0 %2244
        %2248 = vset.pattern.permute.xlu0 0
        %2249 = vperm.xlu0 %2248, %v1612
        %v2250 = vpop.permute.xlu0 %2249
        %2253 = vset.pattern.permute.xlu0 0
        %2254 = vperm.xlu0 %2253, %v1613
        %v2255 = vpop.permute.xlu0 %2254
        %2258 = vset.pattern.permute.xlu0 0
        %2259 = vperm.xlu0 %2258, %v1614
        %v2260 = vpop.permute.xlu0 %2259
        %v2263 = vsel %vm760, %v1606, 0
        %v2266 = vsel %vm760, %v1607, 0
        %v2269 = vsel %vm760, %v1608, 0
        %v2272 = vsel %vm760, %v1609, 0
        %2274 = vmatprep.subr.mxu0 0.0
        %2275 = vmatpush1.msra.mxu0 %v2238
        %2276 = vmatprep.subr.mxu0 0.0
        %2277 = vmatpush1.msra.mxu0 %v2239
        %2278 = vmatprep.subr.mxu0 0.0
        %2279 = vmatpush1.msra.mxu0 %v2240
        %2280 = vmatprep.subr.mxu0 0.0
        %2281 = vmatpush1.msra.mxu0 %v2241
        %2282 = vmatprep.subr.mxu0 0.0
        %2283 = vmatpush1.msra.mxu0 0.0
        %2284 = vmatprep.subr.mxu0 0.0
        %2285 = vmatpush1.msra.mxu0 0.0
        %2286 = vmatprep.subr.mxu0 0.0
        %2287 = vmatpush1.msra.mxu0 0.0
        %2288 = vmatprep.subr.mxu0 0.0
        %2289 = vmatpush1.msra.mxu0 0.0
        %2290 = vmatprep.subr.mxu0 0.0
        %2291 = vmatpush1.msra.mxu0 0.0
        %2292 = vmatprep.subr.mxu0 0.0
        %2293 = vmatpush1.msra.mxu0 0.0
        %2294 = vmatprep.subr.mxu0 0.0
        %2295 = vmatpush1.msra.mxu0 0.0
        %2296 = vmatprep.subr.mxu0 0.0
        %2297 = vmatpush1.msra.mxu0 0.0
        %2298 = vmatprep.subr.mxu0 0.0
        %2299 = vmatpush1.msra.mxu0 0.0
        %2300 = vmatprep.subr.mxu0 0.0
        %2301 = vmatpush1.msra.mxu0 0.0
        %2302 = vmatprep.subr.mxu0 0.0
        %2303 = vmatpush1.msra.mxu0 0.0
        %2304 = vmatprep.subr.mxu0 0.0
        %2305 = vmatpush1.msra.mxu0 0.0
        %2306 = vmatprep.subr.mxu0 0.0
        %2307 = vmatpush1.msra.mxu0 0.0
        %2308 = vmatprep.subr.mxu0 0.0
        %2309 = vmatpush1.msra.mxu0 0.0
        %2310 = vmatprep.subr.mxu0 0.0
        %2311 = vmatpush1.msra.mxu0 0.0
        %2312 = vmatprep.subr.mxu0 0.0
        %2313 = vmatpush1.msra.mxu0 0.0
        %2314 = vmatprep.subr.mxu0 0.0
        %2315 = vmatpush1.msra.mxu0 0.0
        %2316 = vmatprep.subr.mxu0 0.0
        %2317 = vmatpush1.msra.mxu0 0.0
        %2318 = vmatprep.subr.mxu0 0.0
        %2319 = vmatpush1.msra.mxu0 0.0
        %2320 = vmatprep.subr.mxu0 0.0
        %2321 = vmatpush1.msra.mxu0 0.0
        %2322 = vmatprep.subr.mxu0 0.0
        %2323 = vmatpush1.msra.mxu0 0.0
        %2324 = vmatprep.subr.mxu0 0.0
        %2325 = vmatpush1.msra.mxu0 0.0
        %2326 = vmatprep.subr.mxu0 0.0
        %2327 = vmatpush1.msra.mxu0 0.0
        %2328 = vmatprep.subr.mxu0 0.0
        %2329 = vmatpush1.msra.mxu0 0.0
        %2330 = vmatprep.subr.mxu0 0.0
        %2331 = vmatpush1.msra.mxu0 0.0
        %2332 = vmatprep.subr.mxu0 0.0
        %2333 = vmatpush1.msra.mxu0 0.0
        %2334 = vmatprep.subr.mxu0 0.0
        %2335 = vmatpush1.msra.mxu0 0.0
        %2336 = vmatprep.subr.mxu0 0.0
        %2337 = vmatpush1.msra.mxu0 0.0
        %2338 = vmatprep.mubr.f32.mxu0 0.0
        %2339 = vmatmul.mubr.f32.gmra.mrb[0].mxu0 %v2263
        %v2340 = vpop.f32.mrb[0].mxu0
        %v2341 = vadd.f32 %v2245, %v2340
        %v2342 = vpop.f32.mrb[0].mxu0
        %2343 = vmatprep.mubr.f32.mxu0 0.0
        %2344 = vmatmul.mubr.f32.gmra.mrb[0].mxu0 %v2266
        %v2345 = vpop.f32.mrb[0].mxu0
        %v2346 = vadd.f32 %v2250, %v2345
        %v2347 = vpop.f32.mrb[0].mxu0
        %2348 = vmatprep.mubr.f32.mxu0 0.0
        %2349 = vmatmul.mubr.f32.gmra.mrb[0].mxu0 %v2269
        %v2350 = vpop.f32.mrb[0].mxu0
        %v2351 = vadd.f32 %v2255, %v2350
        %v2352 = vpop.f32.mrb[0].mxu0
        %2353 = vmatprep.mubr.f32.mxu0 0.0
        %2354 = vmatmul.mubr.f32.gmra.mrb[0].mxu0 %v2272
        %v2355 = vpop.f32.mrb[0].mxu0
        %v2356 = vadd.f32 %v2260, %v2355
        %v2357 = vpop.f32.mrb[0].mxu0
        %2358 = vdwg.mxu0
        %v2359 = vmax.f32 %v2341, 0.0
        %v2360 = vmax.f32 %v2346, 0.0
        %v2361 = vmax.f32 %v2351, 0.0
        %v2362 = vmax.f32 %v2356, 0.0
        %2364 = vset.pattern.permute.xlu0 0
        %2365 = vperm.xlu0 %2364, %v1621
        %v2366 = vpop.permute.xlu0 %2365
        %2369 = vset.pattern.permute.xlu0 0
        %2370 = vperm.xlu0 %2369, %v1622
        %v2371 = vpop.permute.xlu0 %2370
        %2374 = vset.pattern.permute.xlu0 0
        %2375 = vperm.xlu0 %2374, %v1623
        %v2376 = vpop.permute.xlu0 %2375
        %2379 = vset.pattern.permute.xlu0 0
        %2380 = vperm.xlu0 %2379, %v1624
        %v2381 = vpop.permute.xlu0 %2380
        %v2384 = vsel %vm760, %v1616, 0
        %v2387 = vsel %vm760, %v1617, 0
        %v2390 = vsel %vm760, %v1618, 0
        %v2393 = vsel %vm760, %v1619, 0
        %2395 = vmatprep.subr.mxu0 0.0
        %2396 = vmatpush1.msra.mxu0 %v2359
        %2397 = vmatprep.subr.mxu0 0.0
        %2398 = vmatpush1.msra.mxu0 %v2360
        %2399 = vmatprep.subr.mxu0 0.0
        %2400 = vmatpush1.msra.mxu0 %v2361
        %2401 = vmatprep.subr.mxu0 0.0
        %2402 = vmatpush1.msra.mxu0 %v2362
        %2403 = vmatprep.subr.mxu0 0.0
        %2404 = vmatpush1.msra.mxu0 0.0
        %2405 = vmatprep.subr.mxu0 0.0
        %2406 = vmatpush1.msra.mxu0 0.0
        %2407 = vmatprep.subr.mxu0 0.0
        %2408 = vmatpush1.msra.mxu0 0.0
        %2409 = vmatprep.subr.mxu0 0.0
        %2410 = vmatpush1.msra.mxu0 0.0
        %2411 = vmatprep.subr.mxu0 0.0
        %2412 = vmatpush1.msra.mxu0 0.0
        %2413 = vmatprep.subr.mxu0 0.0
        %2414 = vmatpush1.msra.mxu0 0.0
        %2415 = vmatprep.subr.mxu0 0.0
        %2416 = vmatpush1.msra.mxu0 0.0
        %2417 = vmatprep.subr.mxu0 0.0
        %2418 = vmatpush1.msra.mxu0 0.0
        %2419 = vmatprep.subr.mxu0 0.0
        %2420 = vmatpush1.msra.mxu0 0.0
        %2421 = vmatprep.subr.mxu0 0.0
        %2422 = vmatpush1.msra.mxu0 0.0
        %2423 = vmatprep.subr.mxu0 0.0
        %2424 = vmatpush1.msra.mxu0 0.0
        %2425 = vmatprep.subr.mxu0 0.0
        %2426 = vmatpush1.msra.mxu0 0.0
        %2427 = vmatprep.subr.mxu0 0.0
        %2428 = vmatpush1.msra.mxu0 0.0
        %2429 = vmatprep.subr.mxu0 0.0
        %2430 = vmatpush1.msra.mxu0 0.0
        %2431 = vmatprep.subr.mxu0 0.0
        %2432 = vmatpush1.msra.mxu0 0.0
        %2433 = vmatprep.subr.mxu0 0.0
        %2434 = vmatpush1.msra.mxu0 0.0
        %2435 = vmatprep.subr.mxu0 0.0
        %2436 = vmatpush1.msra.mxu0 0.0
        %2437 = vmatprep.subr.mxu0 0.0
        %2438 = vmatpush1.msra.mxu0 0.0
        %2439 = vmatprep.subr.mxu0 0.0
        %2440 = vmatpush1.msra.mxu0 0.0
        %2441 = vmatprep.subr.mxu0 0.0
        %2442 = vmatpush1.msra.mxu0 0.0
        %2443 = vmatprep.subr.mxu0 0.0
        %2444 = vmatpush1.msra.mxu0 0.0
        %2445 = vmatprep.subr.mxu0 0.0
        %2446 = vmatpush1.msra.mxu0 0.0
        %2447 = vmatprep.subr.mxu0 0.0
        %2448 = vmatpush1.msra.mxu0 0.0
        %2449 = vmatprep.subr.mxu0 0.0
        %2450 = vmatpush1.msra.mxu0 0.0
        %2451 = vmatprep.subr.mxu0 0.0
        %2452 = vmatpush1.msra.mxu0 0.0
        %2453 = vmatprep.subr.mxu0 0.0
        %2454 = vmatpush1.msra.mxu0 0.0
        %2455 = vmatprep.subr.mxu0 0.0
        %2456 = vmatpush1.msra.mxu0 0.0
        %2457 = vmatprep.subr.mxu0 0.0
        %2458 = vmatpush1.msra.mxu0 0.0
        %2459 = vmatprep.mubr.f32.mxu0 0.0
        %2460 = vmatmul.mubr.f32.gmra.mrb[0].mxu0 %v2384
        %v2461 = vpop.f32.mrb[0].mxu0
        %v2462 = vadd.f32 %v2366, %v2461
        %v2463 = vpop.f32.mrb[0].mxu0
        %2464 = vmatprep.mubr.f32.mxu0 0.0
        %2465 = vmatmul.mubr.f32.gmra.mrb[0].mxu0 %v2387
        %v2466 = vpop.f32.mrb[0].mxu0
        %v2467 = vadd.f32 %v2371, %v2466
        %v2468 = vpop.f32.mrb[0].mxu0
        %2469 = vmatprep.mubr.f32.mxu0 0.0
        %2470 = vmatmul.mubr.f32.gmra.mrb[0].mxu0 %v2390
        %v2471 = vpop.f32.mrb[0].mxu0
        %v2472 = vadd.f32 %v2376, %v2471
        %v2473 = vpop.f32.mrb[0].mxu0
        %2474 = vmatprep.mubr.f32.mxu0 0.0
        %2475 = vmatmul.mubr.f32.gmra.mrb[0].mxu0 %v2393
        %v2476 = vpop.f32.mrb[0].mxu0
        %v2477 = vadd.f32 %v2381, %v2476
        %v2478 = vpop.f32.mrb[0].mxu0
        %2479 = vdwg.mxu0
        %v2480 = vadd.f32 %v1557, %v2462
        %v2481 = vadd.f32 %v1558, %v2467
        %v2482 = vadd.f32 %v1559, %v2472
        %v2483 = vadd.f32 %v1560, %v2477
        %v2484 = vld [vmem:[%s12] sm:$0xff]
        %v2485 = vld [vmem:[%s13] sm:$0xff]
        %2487 = vset.pattern.permute.xlu0 0
        %2488 = vperm.xlu0 %2487, %v2485
        %v2489 = vpop.permute.xlu0 %2488
        %v2492 = vsel %vm760, %v2484, 0
        %2494 = vmatprep.subr.mxu0 0.0
        %2495 = vmatpush1.msra.mxu0 %v2480
        %2496 = vmatprep.subr.mxu0 0.0
        %2497 = vmatpush1.msra.mxu0 %v2481
        %2498 = vmatprep.subr.mxu0 0.0
        %2499 = vmatpush1.msra.mxu0 %v2482
        %2500 = vmatprep.subr.mxu0 0.0
        %2501 = vmatpush1.msra.mxu0 %v2483
        %2502 = vmatprep.subr.mxu0 0.0
        %2503 = vmatpush1.msra.mxu0 0.0
        %2504 = vmatprep.subr.mxu0 0.0
        %2505 = vmatpush1.msra.mxu0 0.0
        %2506 = vmatprep.subr.mxu0 0.0
        %2507 = vmatpush1.msra.mxu0 0.0
        %2508 = vmatprep.subr.mxu0 0.0
        %2509 = vmatpush1.msra.mxu0 0.0
        %2510 = vmatprep.subr.mxu0 0.0
        %2511 = vmatpush1.msra.mxu0 0.0
        %2512 = vmatprep.subr.mxu0 0.0
        %2513 = vmatpush1.msra.mxu0 0.0
        %2514 = vmatprep.subr.mxu0 0.0
        %2515 = vmatpush1.msra.mxu0 0.0
        %2516 = vmatprep.subr.mxu0 0.0
        %2517 = vmatpush1.msra.mxu0 0.0
        %2518 = vmatprep.subr.mxu0 0.0
        %2519 = vmatpush1.msra.mxu0 0.0
        %2520 = vmatprep.subr.mxu0 0.0
        %2521 = vmatpush1.msra.mxu0 0.0
        %2522 = vmatprep.subr.mxu0 0.0
        %2523 = vmatpush1.msra.mxu0 0.0
        %2524 = vmatprep.subr.mxu0 0.0
        %2525 = vmatpush1.msra.mxu0 0.0
        %2526 = vmatprep.subr.mxu0 0.0
        %2527 = vmatpush1.msra.mxu0 0.0
        %2528 = vmatprep.subr.mxu0 0.0
        %2529 = vmatpush1.msra.mxu0 0.0
        %2530 = vmatprep.subr.mxu0 0.0
        %2531 = vmatpush1.msra.mxu0 0.0
        %2532 = vmatprep.subr.mxu0 0.0
        %2533 = vmatpush1.msra.mxu0 0.0
        %2534 = vmatprep.subr.mxu0 0.0
        %2535 = vmatpush1.msra.mxu0 0.0
        %2536 = vmatprep.subr.mxu0 0.0
        %2537 = vmatpush1.msra.mxu0 0.0
        %2538 = vmatprep.subr.mxu0 0.0
        %2539 = vmatpush1.msra.mxu0 0.0
        %2540 = vmatprep.subr.mxu0 0.0
        %2541 = vmatpush1.msra.mxu0 0.0
        %2542 = vmatprep.subr.mxu0 0.0
        %2543 = vmatpush1.msra.mxu0 0.0
        %2544 = vmatprep.subr.mxu0 0.0
        %2545 = vmatpush1.msra.mxu0 0.0
        %2546 = vmatprep.subr.mxu0 0.0
        %2547 = vmatpush1.msra.mxu0 0.0
        %2548 = vmatprep.subr.mxu0 0.0
        %2549 = vmatpush1.msra.mxu0 0.0
        %2550 = vmatprep.subr.mxu0 0.0
        %2551 = vmatpush1.msra.mxu0 0.0
        %2552 = vmatprep.subr.mxu0 0.0
        %2553 = vmatpush1.msra.mxu0 0.0
        %2554 = vmatprep.subr.mxu0 0.0
        %2555 = vmatpush1.msra.mxu0 0.0
        %2556 = vmatprep.subr.mxu0 0.0
        %2557 = vmatpush1.msra.mxu0 0.0
        %2558 = vmatprep.mubr.f32.mxu0 0.0
        %2559 = vmatmul.mubr.f32.gmra.mrb[0].mxu0 %v2492
        %v2560 = vpop.f32.mrb[0].mxu0
        %v2561 = vadd.f32 %v2489, %v2560
        %v2562 = vpop.f32.mrb[0].mxu0
        %2563 = vdwg.mxu0
        %2564 = vst [vmem:[%s475] sm:$0xff] %v2561
        %s2565 = sand.u32 %s340, 1
        %s2566 = scalar_lea.sflag [#allocation3], %s2565
        %s2567 = sand.u32 %s340, 1
        %s2568 = smul.addr %s2567, 8
        %s2569 = scalar_lea.vmem [#allocation2], %s2568
        // Predicated region
        $region77: #{decoder_forward.1} parent=75 // pred_check
          %p2570 = pneg %p350
        $region78: #{decoder_forward.1} parent=75 // pred_check_branch
          %2572 = sbr.rel (%p2570) target = $region80
        $region79: #{decoder_forward.1} parent=75 // pred_region
          %s2574 = ssub.s32 128, 128
          %2575 = vsyncadd %s2566, %s2574
          %s2576 = smul.addr %s28, 128
          %s2577 = scalar_lea.hbm %s14, %s2576
          %s2579 = sshll.u32 %s2569, 4
          %s2580 = int_to_ptr.vmem [resolvable:$true] %s2579
          %2582 = dma.vmem_to_hbm [thread:$0]  %s2580, 128, %s2577, %s2566
        $region80: #{decoder_forward.1} parent=75 // pred_fallthru
          _
      $region76: #{decoder_forward.1} parent=5 // pred_fallthru
        _
      %p2583 = scmp.le.s32.totalorder 2, %s23
      // Predicated region
      $region81: #{decoder_forward.1} parent=5 // pred_check
        %p2584 = pneg %p2583
      $region82: #{decoder_forward.1} parent=5 // pred_check_branch
        %2586 = sbr.rel (%p2584) target = $region84
      $region83: #{decoder_forward.1} parent=5 // pred_region
        %s2587 = ssub.s32 %s23, 2
        // Predicated region
        $region85: #{decoder_forward.1} parent=83 // pred_check
          %p2588 = pneg %p356
        $region86: #{decoder_forward.1} parent=83 // pred_check_branch
          %2590 = sbr.rel (%p2588) target = $region88
        $region87: #{decoder_forward.1} parent=83 // pred_region
          %s2591 = sand.u32 %s341, 1
          %s2592 = scalar_lea.sflag [#allocation3], %s2591
          %s2593 = sand.u32 %s341, 1
          %s2594 = smul.addr %s2593, 8
          %s2595 = scalar_lea.vmem [#allocation2], %s2594
          %2596 = dma.done %s2592, 128
        $region88: #{decoder_forward.1} parent=83 // pred_fallthru
          _
      $region84: #{decoder_forward.1} parent=5 // pred_fallthru
        _
    $region6: #{decoder_forward.1} parent=1 // loop_footer
      %s27 = sadd.s32 1, %s23
    $region7: #{decoder_forward.1} parent=1 // loop_footer_branch
      %22 = sbr.rel target = $region3
    $region8: #{decoder_forward.1} parent=1 // loop_exit
      _
    %2597 = vsyncpa [#allocation3], 1
    %s2598 = scalar_lea.sflag [#allocation3], 1
    %2599 = vsyncpa %s2598, 1

</llo_original>
